<compile_context>
chip_gen: v6e
topology: v6e:2x2x1
jax: 0.10.0
libtpu: 0.0.40
codegen_flags: <defaults>
</compile_context>

<pallas_src>
import math

import jax
import jax.numpy as jnp
from jax.experimental import pallas as pl
from jax.experimental.pallas import tpu as pltpu


def _round_up(x, m):
    return ((x + m - 1) // m) * m


# ----------------------------------------------------------------------------
# Kernel
# ----------------------------------------------------------------------------
def _dqn_kernel(
    x_ref,                                   # (bt, D_pad) bf16
    w1, b1, w2, b2, w3, b3, w4, b4,          # shared trunk
    wh1, bh1,                                # fused head layer-1  (256, 512)
    wo2, bo2, wd2, bd2,                      # head layer-2 (256, 128) each
    wo3, bo3, wd3, bd3,                      # head layer-3 padded to (128, 128)
    out_ref,                                 # (bt, 256) f32: [:,:128]=off, [:,128:]=def
):
    acc_t = jnp.float32
    mxu_t = jnp.bfloat16

    def linear(h, w_ref, b_ref):
        # bf16 x bf16 MXU matmul, f32 accumulation, f32 bias add.
        return jnp.dot(h, w_ref[...], preferred_element_type=acc_t) + b_ref[...]

    def linear_relu(h, w_ref, b_ref):
        # bias + ReLU on the f32 accumulator, then cast back to bf16 for the
        # next MXU matmul.
        return jnp.maximum(linear(h, w_ref, b_ref), 0.0).astype(mxu_t)

    # shared trunk
    h = x_ref[...]
    h = linear_relu(h, w1, b1)
    h = linear_relu(h, w2, b2)
    h = linear_relu(h, w3, b3)
    h = linear_relu(h, w4, b4)               # (bt, 256)

    # fused first layer of both heads: one (bt,256) @ (256,512) matmul
    od = linear_relu(h, wh1, bh1)            # (bt, 512): [:256]=off, [256:]=def

    # per-head layer 2
    o = linear_relu(od[:, :256], wo2, bo2)   # (bt, 128)
    d = linear_relu(od[:, 256:], wd2, bd2)   # (bt, 128)

    # per-head layer 3, outputs zero-padded to 128 lanes -> lane-dense stores
    out_ref[:, 0:128] = linear(o, wo3, bo3).astype(out_ref.dtype)
    out_ref[:, 128:256] = linear(d, wd3, bd3).astype(out_ref.dtype)


# ----------------------------------------------------------------------------
# Parameter packing (fusion / padding / bf16 cast) for the kernel
# ----------------------------------------------------------------------------
def pack_params(params, weight_dtype=jnp.bfloat16):
    """params: list of 10 (W, b) pairs in module order
         [shared1..4, off1..3, def1..3], W:(in,out) f32, b:(1,out) f32.
       Returns (kernel_params, meta)."""
    (w1, b1), (w2, b2), (w3, b3), (w4, b4), \
        (wo1, bo1), (wo2, bo2), (wo3, bo3), \
        (wd1, bd1), (wd2, bd2), (wd3, bd3) = params

    D = w1.shape[0]
    A = wo3.shape[1]
    assert A <= 128, "output_dim > 128 not supported by this packing"
    D_pad = _round_up(D, 128)

    # pad input features of layer 1 (x is zero-padded to match)
    w1p = jnp.zeros((D_pad, 512), w1.dtype).at[:D, :].set(w1)

    # fuse the two heads' first layers: (256, 512) = [wo1 | wd1]
    wh1 = jnp.concatenate([wo1, wd1], axis=1)
    bh1 = jnp.concatenate([bo1, bd1], axis=1)

    # pad final layers to 128 output lanes for lane-dense stores
    wo3p = jnp.zeros((128, 128), wo3.dtype).at[:, :A].set(wo3)
    bo3p = jnp.zeros((1, 128), bo3.dtype).at[:, :A].set(bo3)
    wd3p = jnp.zeros((128, 128), wd3.dtype).at[:, :A].set(wd3)
    bd3p = jnp.zeros((1, 128), bd3.dtype).at[:, :A].set(bd3)

    def w(a):  # weights in bf16 (halves weight HBM traffic, native MXU rate)
        return a.astype(weight_dtype)

    def b(a):  # biases stay f32 (added on the f32 accumulator)
        return a.astype(jnp.float32)

    kernel_params = [
        w(w1p), b(b1), w(w2), b(b2), w(w3), b(b3), w(w4), b(b4),
        w(wh1), b(bh1),
        w(wo2), b(bo2), w(wd2), b(bd2),
        w(wo3p), b(bo3p), w(wd3p), b(bd3p),
    ]
    meta = {"input_dim": D, "d_pad": D_pad, "output_dim": A}
    return kernel_params, meta


# ----------------------------------------------------------------------------
# Wrapper
# ----------------------------------------------------------------------------
def two_headed_dqn_forward(x, packed, *, batch_tile=None):
    """x: (B, input_dim) float32.  packed: result of pack_params().
       Returns (offensive_q, defensive_q), each (B, output_dim) float32."""
    kparams, meta = packed
    B, D = x.shape
    assert D == meta["input_dim"]
    D_pad = meta["d_pad"]
    A = meta["output_dim"]

    if batch_tile is None:
        b8 = _round_up(max(B, 1), 8)
        # 128 rows fill the MXU on v5e and give >=2 grid steps (v7x 2-TC
        # sharding) for real batches; tiny batches use a single small tile.
        batch_tile = b8 if b8 <= 128 else 128
    B_pad = _round_up(B, batch_tile)

    # pad batch + features, cast activations to bf16 for the MXU
    xp = jnp.zeros((B_pad, D_pad), jnp.bfloat16)
    xp = xp.at[:B, :D].set(x.astype(jnp.bfloat16))

    grid = (B_pad // batch_tile,)

    x_spec = pl.BlockSpec((batch_tile, D_pad), lambda i: (i, 0))
    # NOTE: bind ndim explicitly (default arg) to avoid the late-binding
    # closure bug flagged in review.
    param_specs = [
        pl.BlockSpec(p.shape, lambda i, nd=p.ndim: (0,) * nd) for p in kparams
    ]
    out_spec = pl.BlockSpec((batch_tile, 256), lambda i: (i, 0))

    out = pl.pallas_call(
        _dqn_kernel,
        grid_spec=pltpu.PrefetchScalarGridSpec(
            num_scalar_prefetch=0,
            grid=grid,
            in_specs=[x_spec] + param_specs,
            out_specs=out_spec,
        ),
        out_shape=jax.ShapeDtypeStruct((B_pad, 256), jnp.float32),
        compiler_params=pltpu.CompilerParams(
            dimension_semantics=("parallel",),
        ),
    )(xp, *kparams)

    offensive_q = out[:B, :A]
    defensive_q = out[:B, 128:128 + A]
    return offensive_q, defensive_q


# ----------------------------------------------------------------------------
# Deterministic parameter init (mirrors nn.Linear default: U(-1/sqrt(in), ..))
# ----------------------------------------------------------------------------
def _init_linear(key, fan_in, fan_out):
    kw, kb = jax.random.split(key)
    bound = 1.0 / math.sqrt(fan_in)
    w = jax.random.uniform(kw, (fan_in, fan_out), jnp.float32, -bound, bound)
    b = jax.random.uniform(kb, (1, fan_out), jnp.float32, -bound, bound)
    return w, b


def make_params(key, input_dim, output_dim):
    dims = [
        (input_dim, 512), (512, 512), (512, 256), (256, 256),   # shared
        (256, 256), (256, 128), (128, output_dim),               # offensive
        (256, 256), (256, 128), (128, output_dim),               # defensive
    ]
    keys = jax.random.split(key, len(dims))
    return [_init_linear(k, fi, fo) for k, (fi, fo) in zip(keys, dims)]


# ----------------------------------------------------------------------------
# Pure-JAX reference with the same bf16 matmul precision (for correctness)
# ----------------------------------------------------------------------------
def reference_forward(x, params):
    def lin(h, w, b):
        return jnp.dot(h.astype(jnp.bfloat16), w.astype(jnp.bfloat16),
                       preferred_element_type=jnp.float32) + b

    def lin_relu(h, w, b):
        return jnp.maximum(lin(h, w, b), 0.0)

    (w1, b1), (w2, b2), (w3, b3), (w4, b4), \
        (wo1, bo1), (wo2, bo2), (wo3, bo3), \
        (wd1, bd1), (wd2, bd2), (wd3, bd3) = params

    h = x
    h = lin_relu(h, w1, b1)
    h = lin_relu(h, w2, b2)
    h = lin_relu(h, w3, b3)
    h = lin_relu(h, w4, b4)
    o = lin_relu(h, wo1, bo1)
    o = lin_relu(o, wo2, bo2)
    off = lin(o, wo3, bo3)
    d = lin_relu(h, wd1, bd1)
    d = lin_relu(d, wd2, bd2)
    deff = lin(d, wd3, bd3)
    return off, deff


# ----------------------------------------------------------------------------
if __name__ == "__main__":
    key = jax.random.PRNGKey(0)
    k_param, k_x = jax.random.split(key)

    batch = 256          # -> grid of 2 steps at batch_tile=128 (v7x 2-TC sharding)
    input_dim = 243      # 9x9 board, 3-way one-hot (transform_state_for_nn)
    output_dim = 24

    params = make_params(k_param, input_dim, output_dim)
    packed = pack_params(params)
    x = jax.random.normal(k_x, (batch, input_dim), jnp.float32)

    off_q, def_q = two_headed_dqn_forward(x, packed)
    off_q = jax.block_until_ready(off_q)
    def_q = jax.block_until_ready(def_q)

    off_ref, def_ref = reference_forward(x, params)
    assert off_q.shape == (batch, output_dim)
    assert def_q.shape == (batch, output_dim)
    assert jnp.allclose(off_q, off_ref, atol=2e-2, rtol=2e-2)
    assert jnp.allclose(def_q, def_ref, atol=2e-2, rtol=2e-2)

    print("KERNEL_OK")
</pallas_src>

<mosaic_0001>
module attributes {stable_mosaic.version = 11 : i64} {
  func.func @_dqn_kernel(%arg0: i32, %arg1: memref<128x256xbf16, #tpu.memory_space<vmem>>, %arg2: memref<256x512xbf16, #tpu.memory_space<vmem>>, %arg3: memref<1x512xf32, #tpu.memory_space<vmem>>, %arg4: memref<512x512xbf16, #tpu.memory_space<vmem>>, %arg5: memref<1x512xf32, #tpu.memory_space<vmem>>, %arg6: memref<512x256xbf16, #tpu.memory_space<vmem>>, %arg7: memref<1x256xf32, #tpu.memory_space<vmem>>, %arg8: memref<256x256xbf16, #tpu.memory_space<vmem>>, %arg9: memref<1x256xf32, #tpu.memory_space<vmem>>, %arg10: memref<256x512xbf16, #tpu.memory_space<vmem>>, %arg11: memref<1x512xf32, #tpu.memory_space<vmem>>, %arg12: memref<256x128xbf16, #tpu.memory_space<vmem>>, %arg13: memref<1x128xf32, #tpu.memory_space<vmem>>, %arg14: memref<256x128xbf16, #tpu.memory_space<vmem>>, %arg15: memref<1x128xf32, #tpu.memory_space<vmem>>, %arg16: memref<128x128xbf16, #tpu.memory_space<vmem>>, %arg17: memref<1x128xf32, #tpu.memory_space<vmem>>, %arg18: memref<128x128xbf16, #tpu.memory_space<vmem>>, %arg19: memref<1x128xf32, #tpu.memory_space<vmem>>, %arg20: memref<128x256xf32, #tpu.memory_space<vmem>>) attributes {dimension_semantics = [#tpu.dimension_semantics<parallel>], iteration_bounds = array<i64: 2>, scalar_prefetch = 0 : i64, scratch_operands = 0 : i64, tpu.core_type = #tpu.core_type<tc>, window_params = [{transform_indices = @transform_0, window_bounds = array<i64: 128, 256>}, {pipeline_mode = #tpu.pipeline_mode<synchronous>, transform_indices = @transform_1, window_bounds = array<i64: 256, 512>}, {pipeline_mode = #tpu.pipeline_mode<synchronous>, transform_indices = @transform_2, window_bounds = array<i64: 1, 512>}, {pipeline_mode = #tpu.pipeline_mode<synchronous>, transform_indices = @transform_3, window_bounds = array<i64: 512, 512>}, {pipeline_mode = #tpu.pipeline_mode<synchronous>, transform_indices = @transform_4, window_bounds = array<i64: 1, 512>}, {pipeline_mode = #tpu.pipeline_mode<synchronous>, transform_indices = @transform_5, window_bounds = array<i64: 512, 256>}, {pipeline_mode = #tpu.pipeline_mode<synchronous>, transform_indices = @transform_6, window_bounds = array<i64: 1, 256>}, {pipeline_mode = #tpu.pipeline_mode<synchronous>, transform_indices = @transform_7, window_bounds = array<i64: 256, 256>}, {pipeline_mode = #tpu.pipeline_mode<synchronous>, transform_indices = @transform_8, window_bounds = array<i64: 1, 256>}, {pipeline_mode = #tpu.pipeline_mode<synchronous>, transform_indices = @transform_9, window_bounds = array<i64: 256, 512>}, {pipeline_mode = #tpu.pipeline_mode<synchronous>, transform_indices = @transform_10, window_bounds = array<i64: 1, 512>}, {pipeline_mode = #tpu.pipeline_mode<synchronous>, transform_indices = @transform_11, window_bounds = array<i64: 256, 128>}, {pipeline_mode = #tpu.pipeline_mode<synchronous>, transform_indices = @transform_12, window_bounds = array<i64: 1, 128>}, {pipeline_mode = #tpu.pipeline_mode<synchronous>, transform_indices = @transform_13, window_bounds = array<i64: 256, 128>}, {pipeline_mode = #tpu.pipeline_mode<synchronous>, transform_indices = @transform_14, window_bounds = array<i64: 1, 128>}, {pipeline_mode = #tpu.pipeline_mode<synchronous>, transform_indices = @transform_15, window_bounds = array<i64: 128, 128>}, {pipeline_mode = #tpu.pipeline_mode<synchronous>, transform_indices = @transform_16, window_bounds = array<i64: 1, 128>}, {pipeline_mode = #tpu.pipeline_mode<synchronous>, transform_indices = @transform_17, window_bounds = array<i64: 128, 128>}, {pipeline_mode = #tpu.pipeline_mode<synchronous>, transform_indices = @transform_18, window_bounds = array<i64: 1, 128>}, {transform_indices = @transform_19, window_bounds = array<i64: 128, 256>}]} {
    %c0 = arith.constant 0 : index
    %c0_0 = arith.constant 0 : index
    %0 = vector.load %arg1[%c0, %c0_0] : memref<128x256xbf16, #tpu.memory_space<vmem>>, vector<128x256xbf16>
    %c0_1 = arith.constant 0 : index
    %c0_2 = arith.constant 0 : index
    %1 = vector.load %arg2[%c0_1, %c0_2] : memref<256x512xbf16, #tpu.memory_space<vmem>>, vector<256x512xbf16>
    %cst = arith.constant dense<0.000000e+00> : vector<128x512xf32>
    %2 = tpu.matmul %0, %1, %cst {dimension_numbers = #tpu.dot_dimension_numbers<[1], [0], [0], [1], [0, 0, 1, 1], [], []>} : vector<128x256xbf16>, vector<256x512xbf16>, vector<128x512xf32> -> vector<128x512xf32>
    %c0_3 = arith.constant 0 : index
    %c0_4 = arith.constant 0 : index
    %3 = vector.load %arg3[%c0_3, %c0_4] : memref<1x512xf32, #tpu.memory_space<vmem>>, vector<1x512xf32>
    %4 = vector.broadcast %3 : vector<1x512xf32> to vector<128x512xf32>
    %5 = arith.addf %2, %4 : vector<128x512xf32>
    %cst_5 = arith.constant 0.000000e+00 : f32
    %6 = vector.broadcast %cst_5 : f32 to vector<128x512xf32>
    %7 = arith.maximumf %5, %6 : vector<128x512xf32>
    %8 = arith.truncf %7 : vector<128x512xf32> to vector<128x512xbf16>
    %c0_6 = arith.constant 0 : index
    %c0_7 = arith.constant 0 : index
    %9 = vector.load %arg4[%c0_6, %c0_7] : memref<512x512xbf16, #tpu.memory_space<vmem>>, vector<512x512xbf16>
    %cst_8 = arith.constant dense<0.000000e+00> : vector<128x512xf32>
    %10 = tpu.matmul %8, %9, %cst_8 {dimension_numbers = #tpu.dot_dimension_numbers<[1], [0], [0], [1], [0, 0, 1, 1], [], []>} : vector<128x512xbf16>, vector<512x512xbf16>, vector<128x512xf32> -> vector<128x512xf32>
    %c0_9 = arith.constant 0 : index
    %c0_10 = arith.constant 0 : index
    %11 = vector.load %arg5[%c0_9, %c0_10] : memref<1x512xf32, #tpu.memory_space<vmem>>, vector<1x512xf32>
    %12 = vector.broadcast %11 : vector<1x512xf32> to vector<128x512xf32>
    %13 = arith.addf %10, %12 : vector<128x512xf32>
    %cst_11 = arith.constant 0.000000e+00 : f32
    %14 = vector.broadcast %cst_11 : f32 to vector<128x512xf32>
    %15 = arith.maximumf %13, %14 : vector<128x512xf32>
    %16 = arith.truncf %15 : vector<128x512xf32> to vector<128x512xbf16>
    %c0_12 = arith.constant 0 : index
    %c0_13 = arith.constant 0 : index
    %17 = vector.load %arg6[%c0_12, %c0_13] : memref<512x256xbf16, #tpu.memory_space<vmem>>, vector<512x256xbf16>
    %cst_14 = arith.constant dense<0.000000e+00> : vector<128x256xf32>
    %18 = tpu.matmul %16, %17, %cst_14 {dimension_numbers = #tpu.dot_dimension_numbers<[1], [0], [0], [1], [0, 0, 1, 1], [], []>} : vector<128x512xbf16>, vector<512x256xbf16>, vector<128x256xf32> -> vector<128x256xf32>
    %c0_15 = arith.constant 0 : index
    %c0_16 = arith.constant 0 : index
    %19 = vector.load %arg7[%c0_15, %c0_16] : memref<1x256xf32, #tpu.memory_space<vmem>>, vector<1x256xf32>
    %20 = vector.broadcast %19 : vector<1x256xf32> to vector<128x256xf32>
    %21 = arith.addf %18, %20 : vector<128x256xf32>
    %cst_17 = arith.constant 0.000000e+00 : f32
    %22 = vector.broadcast %cst_17 : f32 to vector<128x256xf32>
    %23 = arith.maximumf %21, %22 : vector<128x256xf32>
    %24 = arith.truncf %23 : vector<128x256xf32> to vector<128x256xbf16>
    %c0_18 = arith.constant 0 : index
    %c0_19 = arith.constant 0 : index
    %25 = vector.load %arg8[%c0_18, %c0_19] : memref<256x256xbf16, #tpu.memory_space<vmem>>, vector<256x256xbf16>
    %cst_20 = arith.constant dense<0.000000e+00> : vector<128x256xf32>
    %26 = tpu.matmul %24, %25, %cst_20 {dimension_numbers = #tpu.dot_dimension_numbers<[1], [0], [0], [1], [0, 0, 1, 1], [], []>} : vector<128x256xbf16>, vector<256x256xbf16>, vector<128x256xf32> -> vector<128x256xf32>
    %c0_21 = arith.constant 0 : index
    %c0_22 = arith.constant 0 : index
    %27 = vector.load %arg9[%c0_21, %c0_22] : memref<1x256xf32, #tpu.memory_space<vmem>>, vector<1x256xf32>
    %28 = vector.broadcast %27 : vector<1x256xf32> to vector<128x256xf32>
    %29 = arith.addf %26, %28 : vector<128x256xf32>
    %cst_23 = arith.constant 0.000000e+00 : f32
    %30 = vector.broadcast %cst_23 : f32 to vector<128x256xf32>
    %31 = arith.maximumf %29, %30 : vector<128x256xf32>
    %32 = arith.truncf %31 : vector<128x256xf32> to vector<128x256xbf16>
    %c0_24 = arith.constant 0 : index
    %c0_25 = arith.constant 0 : index
    %33 = vector.load %arg10[%c0_24, %c0_25] : memref<256x512xbf16, #tpu.memory_space<vmem>>, vector<256x512xbf16>
    %cst_26 = arith.constant dense<0.000000e+00> : vector<128x512xf32>
    %34 = tpu.matmul %32, %33, %cst_26 {dimension_numbers = #tpu.dot_dimension_numbers<[1], [0], [0], [1], [0, 0, 1, 1], [], []>} : vector<128x256xbf16>, vector<256x512xbf16>, vector<128x512xf32> -> vector<128x512xf32>
    %c0_27 = arith.constant 0 : index
    %c0_28 = arith.constant 0 : index
    %35 = vector.load %arg11[%c0_27, %c0_28] : memref<1x512xf32, #tpu.memory_space<vmem>>, vector<1x512xf32>
    %36 = vector.broadcast %35 : vector<1x512xf32> to vector<128x512xf32>
    %37 = arith.addf %34, %36 : vector<128x512xf32>
    %cst_29 = arith.constant 0.000000e+00 : f32
    %38 = vector.broadcast %cst_29 : f32 to vector<128x512xf32>
    %39 = arith.maximumf %37, %38 : vector<128x512xf32>
    %40 = arith.truncf %39 : vector<128x512xf32> to vector<128x512xbf16>
    %41 = vector.extract_strided_slice %40 {offsets = [0, 0], sizes = [128, 256], strides = [1, 1]} : vector<128x512xbf16> to vector<128x256xbf16>
    %c0_30 = arith.constant 0 : index
    %c0_31 = arith.constant 0 : index
    %42 = vector.load %arg12[%c0_30, %c0_31] : memref<256x128xbf16, #tpu.memory_space<vmem>>, vector<256x128xbf16>
    %cst_32 = arith.constant dense<0.000000e+00> : vector<128x128xf32>
    %43 = tpu.matmul %41, %42, %cst_32 {dimension_numbers = #tpu.dot_dimension_numbers<[1], [0], [0], [1], [0, 0, 1, 1], [], []>} : vector<128x256xbf16>, vector<256x128xbf16>, vector<128x128xf32> -> vector<128x128xf32>
    %c0_33 = arith.constant 0 : index
    %c0_34 = arith.constant 0 : index
    %44 = vector.load %arg13[%c0_33, %c0_34] : memref<1x128xf32, #tpu.memory_space<vmem>>, vector<1x128xf32>
    %45 = vector.broadcast %44 : vector<1x128xf32> to vector<128x128xf32>
    %46 = arith.addf %43, %45 : vector<128x128xf32>
    %cst_35 = arith.constant 0.000000e+00 : f32
    %47 = vector.broadcast %cst_35 : f32 to vector<128x128xf32>
    %48 = arith.maximumf %46, %47 : vector<128x128xf32>
    %49 = arith.truncf %48 : vector<128x128xf32> to vector<128x128xbf16>
    %50 = vector.extract_strided_slice %40 {offsets = [0, 256], sizes = [128, 256], strides = [1, 1]} : vector<128x512xbf16> to vector<128x256xbf16>
    %c0_36 = arith.constant 0 : index
    %c0_37 = arith.constant 0 : index
    %51 = vector.load %arg14[%c0_36, %c0_37] : memref<256x128xbf16, #tpu.memory_space<vmem>>, vector<256x128xbf16>
    %cst_38 = arith.constant dense<0.000000e+00> : vector<128x128xf32>
    %52 = tpu.matmul %50, %51, %cst_38 {dimension_numbers = #tpu.dot_dimension_numbers<[1], [0], [0], [1], [0, 0, 1, 1], [], []>} : vector<128x256xbf16>, vector<256x128xbf16>, vector<128x128xf32> -> vector<128x128xf32>
    %c0_39 = arith.constant 0 : index
    %c0_40 = arith.constant 0 : index
    %53 = vector.load %arg15[%c0_39, %c0_40] : memref<1x128xf32, #tpu.memory_space<vmem>>, vector<1x128xf32>
    %54 = vector.broadcast %53 : vector<1x128xf32> to vector<128x128xf32>
    %55 = arith.addf %52, %54 : vector<128x128xf32>
    %cst_41 = arith.constant 0.000000e+00 : f32
    %56 = vector.broadcast %cst_41 : f32 to vector<128x128xf32>
    %57 = arith.maximumf %55, %56 : vector<128x128xf32>
    %58 = arith.truncf %57 : vector<128x128xf32> to vector<128x128xbf16>
    %c0_42 = arith.constant 0 : index
    %c0_43 = arith.constant 0 : index
    %59 = vector.load %arg16[%c0_42, %c0_43] : memref<128x128xbf16, #tpu.memory_space<vmem>>, vector<128x128xbf16>
    %cst_44 = arith.constant dense<0.000000e+00> : vector<128x128xf32>
    %60 = tpu.matmul %49, %59, %cst_44 {dimension_numbers = #tpu.dot_dimension_numbers<[1], [0], [0], [1], [0, 0, 1, 1], [], []>} : vector<128x128xbf16>, vector<128x128xbf16>, vector<128x128xf32> -> vector<128x128xf32>
    %c0_45 = arith.constant 0 : index
    %c0_46 = arith.constant 0 : index
    %61 = vector.load %arg17[%c0_45, %c0_46] : memref<1x128xf32, #tpu.memory_space<vmem>>, vector<1x128xf32>
    %62 = vector.broadcast %61 : vector<1x128xf32> to vector<128x128xf32>
    %63 = arith.addf %60, %62 : vector<128x128xf32>
    %c0_47 = arith.constant 0 : index
    %c0_48 = arith.constant 0 : index
    %64 = vector.load %arg20[%c0_47, %c0_48] : memref<128x256xf32, #tpu.memory_space<vmem>>, vector<128x128xf32>
    tpu.vector_store %arg20[%c0_47, %c0_48], %63 {strides = array<i32>} : memref<128x256xf32, #tpu.memory_space<vmem>>, vector<128x128xf32>,
    %c0_49 = arith.constant 0 : index
    %c0_50 = arith.constant 0 : index
    %65 = vector.load %arg18[%c0_49, %c0_50] : memref<128x128xbf16, #tpu.memory_space<vmem>>, vector<128x128xbf16>
    %cst_51 = arith.constant dense<0.000000e+00> : vector<128x128xf32>
    %66 = tpu.matmul %58, %65, %cst_51 {dimension_numbers = #tpu.dot_dimension_numbers<[1], [0], [0], [1], [0, 0, 1, 1], [], []>} : vector<128x128xbf16>, vector<128x128xbf16>, vector<128x128xf32> -> vector<128x128xf32>
    %c0_52 = arith.constant 0 : index
    %c0_53 = arith.constant 0 : index
    %67 = vector.load %arg19[%c0_52, %c0_53] : memref<1x128xf32, #tpu.memory_space<vmem>>, vector<1x128xf32>
    %68 = vector.broadcast %67 : vector<1x128xf32> to vector<128x128xf32>
    %69 = arith.addf %66, %68 : vector<128x128xf32>
    %c0_54 = arith.constant 0 : index
    %c128 = arith.constant 128 : index
    %70 = vector.load %arg20[%c0_54, %c128] : memref<128x256xf32, #tpu.memory_space<vmem>>, vector<128x128xf32>
    tpu.vector_store %arg20[%c0_54, %c128], %69 {strides = array<i32>} : memref<128x256xf32, #tpu.memory_space<vmem>>, vector<128x128xf32>,
    return
  }
  func.func @transform_0(%arg0: i32) -> (i32, i32) {
    %c0_i32 = arith.constant 0 : i32
    %c0_i32_0 = arith.constant 0 : i32
    return %arg0, %c0_i32 : i32, i32
  }
  func.func @transform_1(%arg0: i32) -> (i32, i32) {
    %c0_i32 = arith.constant 0 : i32
    %c0_i32_0 = arith.constant 0 : i32
    %c0_i32_1 = arith.constant 0 : i32
    return %c0_i32, %c0_i32_0 : i32, i32
  }
  func.func @transform_2(%arg0: i32) -> (i32, i32) {
    %c0_i32 = arith.constant 0 : i32
    %c0_i32_0 = arith.constant 0 : i32
    %c0_i32_1 = arith.constant 0 : i32
    return %c0_i32, %c0_i32_0 : i32, i32
  }
  func.func @transform_3(%arg0: i32) -> (i32, i32) {
    %c0_i32 = arith.constant 0 : i32
    %c0_i32_0 = arith.constant 0 : i32
    %c0_i32_1 = arith.constant 0 : i32
    return %c0_i32, %c0_i32_0 : i32, i32
  }
  func.func @transform_4(%arg0: i32) -> (i32, i32) {
    %c0_i32 = arith.constant 0 : i32
    %c0_i32_0 = arith.constant 0 : i32
    %c0_i32_1 = arith.constant 0 : i32
    return %c0_i32, %c0_i32_0 : i32, i32
  }
  func.func @transform_5(%arg0: i32) -> (i32, i32) {
    %c0_i32 = arith.constant 0 : i32
    %c0_i32_0 = arith.constant 0 : i32
    %c0_i32_1 = arith.constant 0 : i32
    return %c0_i32, %c0_i32_0 : i32, i32
  }
  func.func @transform_6(%arg0: i32) -> (i32, i32) {
    %c0_i32 = arith.constant 0 : i32
    %c0_i32_0 = arith.constant 0 : i32
    %c0_i32_1 = arith.constant 0 : i32
    return %c0_i32, %c0_i32_0 : i32, i32
  }
  func.func @transform_7(%arg0: i32) -> (i32, i32) {
    %c0_i32 = arith.constant 0 : i32
    %c0_i32_0 = arith.constant 0 : i32
    %c0_i32_1 = arith.constant 0 : i32
    return %c0_i32, %c0_i32_0 : i32, i32
  }
  func.func @transform_8(%arg0: i32) -> (i32, i32) {
    %c0_i32 = arith.constant 0 : i32
    %c0_i32_0 = arith.constant 0 : i32
    %c0_i32_1 = arith.constant 0 : i32
    return %c0_i32, %c0_i32_0 : i32, i32
  }
  func.func @transform_9(%arg0: i32) -> (i32, i32) {
    %c0_i32 = arith.constant 0 : i32
    %c0_i32_0 = arith.constant 0 : i32
    %c0_i32_1 = arith.constant 0 : i32
    return %c0_i32, %c0_i32_0 : i32, i32
  }
  func.func @transform_10(%arg0: i32) -> (i32, i32) {
    %c0_i32 = arith.constant 0 : i32
    %c0_i32_0 = arith.constant 0 : i32
    %c0_i32_1 = arith.constant 0 : i32
    return %c0_i32, %c0_i32_0 : i32, i32
  }
  func.func @transform_11(%arg0: i32) -> (i32, i32) {
    %c0_i32 = arith.constant 0 : i32
    %c0_i32_0 = arith.constant 0 : i32
    %c0_i32_1 = arith.constant 0 : i32
    return %c0_i32, %c0_i32_0 : i32, i32
  }
  func.func @transform_12(%arg0: i32) -> (i32, i32) {
    %c0_i32 = arith.constant 0 : i32
    %c0_i32_0 = arith.constant 0 : i32
    %c0_i32_1 = arith.constant 0 : i32
    return %c0_i32, %c0_i32_0 : i32, i32
  }
  func.func @transform_13(%arg0: i32) -> (i32, i32) {
    %c0_i32 = arith.constant 0 : i32
    %c0_i32_0 = arith.constant 0 : i32
    %c0_i32_1 = arith.constant 0 : i32
    return %c0_i32, %c0_i32_0 : i32, i32
  }
  func.func @transform_14(%arg0: i32) -> (i32, i32) {
    %c0_i32 = arith.constant 0 : i32
    %c0_i32_0 = arith.constant 0 : i32
    %c0_i32_1 = arith.constant 0 : i32
    return %c0_i32, %c0_i32_0 : i32, i32
  }
  func.func @transform_15(%arg0: i32) -> (i32, i32) {
    %c0_i32 = arith.constant 0 : i32
    %c0_i32_0 = arith.constant 0 : i32
    %c0_i32_1 = arith.constant 0 : i32
    return %c0_i32, %c0_i32_0 : i32, i32
  }
  func.func @transform_16(%arg0: i32) -> (i32, i32) {
    %c0_i32 = arith.constant 0 : i32
    %c0_i32_0 = arith.constant 0 : i32
    %c0_i32_1 = arith.constant 0 : i32
    return %c0_i32, %c0_i32_0 : i32, i32
  }
  func.func @transform_17(%arg0: i32) -> (i32, i32) {
    %c0_i32 = arith.constant 0 : i32
    %c0_i32_0 = arith.constant 0 : i32
    %c0_i32_1 = arith.constant 0 : i32
    return %c0_i32, %c0_i32_0 : i32, i32
  }
  func.func @transform_18(%arg0: i32) -> (i32, i32) {
    %c0_i32 = arith.constant 0 : i32
    %c0_i32_0 = arith.constant 0 : i32
    %c0_i32_1 = arith.constant 0 : i32
    return %c0_i32, %c0_i32_0 : i32, i32
  }
  func.func @transform_19(%arg0: i32) -> (i32, i32) {
    %c0_i32 = arith.constant 0 : i32
    %c0_i32_0 = arith.constant 0 : i32
    return %arg0, %c0_i32 : i32, i32
  }
}

</mosaic_0001>

<llo_original>
// kernel: tpu_custom_call.1
$region0: #{tpu_custom_call.1}
  #allocation0 [shape = 'u32[]', space=smem, size = 0x4, offset = 0x4, fixed_abs, tag = 'smem constant byte address 0x4 - core index']
  #allocation1 [shape = 'u32[144,128]{1,0:T(1,128)}', space=vmem, size = 0x12000, scoped, tag = 'internal scratch']
  %s0 = inlined_call_operand.hbm [shape: bf16[256,256], index: 0, kind: input, shape index: {}]
  %s1 = inlined_call_operand.hbm [shape: bf16[256,512], index: 1, kind: input, shape index: {}]
  %s2 = inlined_call_operand.hbm [shape: f32[1,512], index: 2, kind: input, shape index: {}]
  %s3 = inlined_call_operand.hbm [shape: bf16[512,512], index: 3, kind: input, shape index: {}]
  %s4 = inlined_call_operand.vmem [shape: f32[1,512], index: 4, kind: input, shape index: {}]
  %s5 = inlined_call_operand.hbm [shape: bf16[512,256], index: 5, kind: input, shape index: {}]
  %s6 = inlined_call_operand.vmem [shape: f32[1,256], index: 6, kind: input, shape index: {}]
  %s7 = inlined_call_operand.hbm [shape: bf16[256,256], index: 7, kind: input, shape index: {}]
  %s8 = inlined_call_operand.vmem [shape: f32[1,256], index: 8, kind: input, shape index: {}]
  %s9 = inlined_call_operand.hbm [shape: bf16[256,512], index: 9, kind: input, shape index: {}]
  %s10 = inlined_call_operand.vmem [shape: f32[1,512], index: 10, kind: input, shape index: {}]
  %s11 = inlined_call_operand.hbm [shape: bf16[256,128], index: 11, kind: input, shape index: {}]
  %s12 = inlined_call_operand.vmem [shape: f32[1,128], index: 12, kind: input, shape index: {}]
  %s13 = inlined_call_operand.hbm [shape: bf16[256,128], index: 13, kind: input, shape index: {}]
  %s14 = inlined_call_operand.vmem [shape: f32[1,128], index: 14, kind: input, shape index: {}]
  %s15 = inlined_call_operand.hbm [shape: bf16[128,128], index: 15, kind: input, shape index: {}]
  %s16 = inlined_call_operand.vmem [shape: f32[1,128], index: 16, kind: input, shape index: {}]
  %s17 = inlined_call_operand.hbm [shape: bf16[128,128], index: 17, kind: input, shape index: {}]
  %s18 = inlined_call_operand.vmem [shape: f32[1,128], index: 18, kind: input, shape index: {}]
  %s19 = inlined_call_operand.hbm [shape: f32[256,256], index: 19, kind: output, shape index: {}]
  %s20 = sld [smem:[#allocation0]]
  $region153: #{tpu_custom_call.1} parent=0
    _
  %s22 = ssub.s32 1, %s20
  %s23 = scalar_select 0, %s22, %s20
  $region1: #{tpu_custom_call.1} parent=0
    #allocation2 [shape = 'u8[131072]{0}', space=vmem, size = 0x20000, scoped, tag = 'input window, operand 0']
    #allocation3 [shape = 's32[2]{0}', space=sflag, size = 0x8, scoped, tag = 'scoped memory for tpu_custom_call.1']
    #allocation4 [shape = 's32[2]{0}', space=sflag, size = 0x8, scoped, tag = 'scoped memory for tpu_custom_call.1']
    #allocation5 [shape = 'u8[262144]{0}', space=vmem, size = 0x40000, scoped, tag = 'input window, operand 1, single buffered']
    #allocation6 [shape = 's32[1]{0}', space=sflag, size = 0x4, scoped, tag = 'scoped memory for tpu_custom_call.1']
    #allocation7 [shape = 'u8[2048]{0}', space=vmem, size = 0x800, scoped, tag = 'input window, operand 2, single buffered']
    #allocation8 [shape = 'u8[524288]{0}', space=vmem, size = 0x80000, scoped, tag = 'input window, operand 3, single buffered']
    #allocation9 [shape = 's32[1]{0}', space=sflag, size = 0x4, scoped, tag = 'scoped memory for tpu_custom_call.1']
    #allocation10 [shape = 'u8[262144]{0}', space=vmem, size = 0x40000, scoped, tag = 'input window, operand 5, single buffered']
    #allocation11 [shape = 'u8[131072]{0}', space=vmem, size = 0x20000, scoped, tag = 'input window, operand 7, single buffered']
    #allocation12 [shape = 's32[1]{0}', space=sflag, size = 0x4, scoped, tag = 'scoped memory for tpu_custom_call.1']
    #allocation13 [shape = 'u8[262144]{0}', space=vmem, size = 0x40000, scoped, tag = 'input window, operand 9, single buffered']
    #allocation14 [shape = 'u8[65536]{0}', space=vmem, size = 0x10000, scoped, tag = 'input window, operand 11, single buffered']
    #allocation15 [shape = 's32[1]{0}', space=sflag, size = 0x4, scoped, tag = 'scoped memory for tpu_custom_call.1']
    #allocation16 [shape = 'u8[65536]{0}', space=vmem, size = 0x10000, scoped, tag = 'input window, operand 13, single buffered']
    #allocation17 [shape = 'u8[32768]{0}', space=vmem, size = 0x8000, scoped, tag = 'input window, operand 15, single buffered']
    #allocation18 [shape = 's32[1]{0}', space=sflag, size = 0x4, scoped, tag = 'scoped memory for tpu_custom_call.1']
    #allocation19 [shape = 'u8[32768]{0}', space=vmem, size = 0x8000, scoped, tag = 'input window, operand 17, single buffered']
    #allocation20 [shape = 'u8[262144]{0}', space=vmem, size = 0x40000, scoped, tag = 'output window, operand 0']
    %24 = vsyncpa [#allocation3], 0
    %s25 = scalar_lea.sflag [#allocation3], 1
    %26 = vsyncpa %s25, 0
    %27 = vsyncpa [#allocation6], 0
    %28 = vsyncpa [#allocation9], 0
    %29 = vsyncpa [#allocation12], 0
    %30 = vsyncpa [#allocation15], 0
    %31 = vsyncpa [#allocation18], 0
    %32 = vsyncpa [#allocation4], 0
    %s33 = scalar_lea.sflag [#allocation4], 1
    %34 = vsyncpa %s33, 0
    loop: start=0, step=1, limit=4
    $region2: #{tpu_custom_call.1} parent=1 // loop_pre_header
      _
    $region3: #{tpu_custom_call.1} parent=1 // loop_header
      %s36 = sphi 0, %s40
      %p37 = scmp.ge.s32.totalorder %s36, 4
      %s46 = sphi 0, %s48
      %s49 = sphi 0, %s46
      %s50 = sphi 0, %s49
      %s66 = sphi 0, %s50
      %s70 = sphi 0, %s70
      %s72 = sphi 0, %s70
      %s73 = sphi 0, %s72
      %s87 = sphi 0, %s73
      %s91 = sphi 0, %s91
      %s93 = sphi 0, %s91
      %s94 = sphi 0, %s93
      %s108 = sphi 0, %s94
      %s112 = sphi 0, %s112
      %s114 = sphi 0, %s112
      %s115 = sphi 0, %s114
      %s129 = sphi 0, %s115
      %s133 = sphi 0, %s133
      %s135 = sphi 0, %s133
      %s136 = sphi 0, %s135
      %s150 = sphi 0, %s136
      %s154 = sphi 0, %s154
      %s156 = sphi 0, %s154
      %s157 = sphi 0, %s156
      %s171 = sphi 0, %s157
      %s175 = sphi 0, %s175
      %s177 = sphi 0, %s175
      %s178 = sphi 0, %s177
      %s192 = sphi 0, %s178
      %s196 = sphi 0, %s196
      %s198 = sphi 0, %s196
      %s199 = sphi 0, %s198
      %s213 = sphi 0, %s199
      %s217 = sphi 0, %s217
      %s219 = sphi 0, %s217
      %s220 = sphi 0, %s219
      %s234 = sphi 0, %s220
      %s238 = sphi 0, %s238
      %s240 = sphi 0, %s238
      %s241 = sphi 0, %s240
      %s255 = sphi 0, %s241
      %s259 = sphi 0, %s259
      %s261 = sphi 0, %s259
      %s262 = sphi 0, %s261
      %s276 = sphi 0, %s262
      %s280 = sphi 0, %s280
      %s282 = sphi 0, %s280
      %s283 = sphi 0, %s282
      %s297 = sphi 0, %s283
      %s301 = sphi 0, %s301
      %s303 = sphi 0, %s301
      %s304 = sphi 0, %s303
      %s318 = sphi 0, %s304
      %s322 = sphi 0, %s322
      %s324 = sphi 0, %s322
      %s325 = sphi 0, %s324
      %s339 = sphi 0, %s325
      %s343 = sphi 0, %s343
      %s345 = sphi 0, %s343
      %s346 = sphi 0, %s345
      %s360 = sphi 0, %s346
      %s364 = sphi 0, %s364
      %s366 = sphi 0, %s364
      %s367 = sphi 0, %s366
      %s381 = sphi 0, %s367
      %s385 = sphi 0, %s385
      %s387 = sphi 0, %s385
      %s388 = sphi 0, %s387
      %s402 = sphi 0, %s388
      %s406 = sphi 0, %s406
      %s408 = sphi 0, %s406
      %s409 = sphi 0, %s408
      %s423 = sphi 0, %s409
      %s427 = sphi 0, %s427
      %s429 = sphi 0, %s427
      %s430 = sphi 0, %s429
      %s444 = sphi 0, %s430
      %s450 = sphi 0, %s452
      %s453 = sphi 0, %s450
      %s454 = sphi 0, %s453
      %s470 = sphi 0, %s454
    $region4: #{tpu_custom_call.1} parent=1 // loop_header_branch
      %39 = sbr.rel (%p37) target = $region8
    $region5: #{tpu_custom_call.1} parent=1 // loop_body
      %s41 = ssub.s32 %s36, 1
      %s42 = ssub.s32 %s36, 2
      %s43 = sadd.s32 %s36, 1
      %s44 = ssub.s32 %s36, %s43
      %p45 = scmp.eq.s32.totalorder %s44, 0
      %s47 = sadd.s32 %s46, 1
      %s48 = scalar_select %p45, %s46, %s47
      %p51 = pneg %p45
      %p52 = scmp.eq.s32.totalorder %s36, 1
      %p53 = por %p51, %p52
      %p54 = scmp.ne.s32.totalorder %s46, %s49
      %p55 = scmp.eq.s32.totalorder %s36, 0
      %p56 = por %p54, %p55
      %p57 = scmp.ne.s32.totalorder %s46, %s49
      %p58 = scmp.eq.s32.totalorder %s41, 1
      %p59 = por %p57, %p58
      %p60 = scmp.ne.s32.totalorder %s49, %s50
      %p61 = scmp.eq.s32.totalorder %s41, 0
      %p62 = por %p60, %p61
      %p63 = scmp.ne.s32.totalorder %s49, %s50
      %p64 = scmp.eq.s32.totalorder %s42, 1
      %p65 = por %p63, %p64
      %p67 = scmp.ne.s32.totalorder %s50, %s66
      %p68 = scmp.eq.s32.totalorder %s42, 0
      %p69 = por %p67, %p68
      %s71 = sadd.s32 %s70, 1
      %p74 = scmp.eq.s32.totalorder %s36, 1
      %p75 = scmp.ne.s32.totalorder %s70, %s72
      %p76 = scmp.eq.s32.totalorder %s36, 0
      %p77 = por %p75, %p76
      %p78 = scmp.ne.s32.totalorder %s70, %s72
      %p79 = scmp.eq.s32.totalorder %s41, 1
      %p80 = por %p78, %p79
      %p81 = scmp.ne.s32.totalorder %s72, %s73
      %p82 = scmp.eq.s32.totalorder %s41, 0
      %p83 = por %p81, %p82
      %p84 = scmp.ne.s32.totalorder %s72, %s73
      %p85 = scmp.eq.s32.totalorder %s42, 1
      %p86 = por %p84, %p85
      %p88 = scmp.ne.s32.totalorder %s73, %s87
      %p89 = scmp.eq.s32.totalorder %s42, 0
      %p90 = por %p88, %p89
      %s92 = sadd.s32 %s91, 1
      %p95 = scmp.eq.s32.totalorder %s36, 1
      %p96 = scmp.ne.s32.totalorder %s91, %s93
      %p97 = scmp.eq.s32.totalorder %s36, 0
      %p98 = por %p96, %p97
      %p99 = scmp.ne.s32.totalorder %s91, %s93
      %p100 = scmp.eq.s32.totalorder %s41, 1
      %p101 = por %p99, %p100
      %p102 = scmp.ne.s32.totalorder %s93, %s94
      %p103 = scmp.eq.s32.totalorder %s41, 0
      %p104 = por %p102, %p103
      %p105 = scmp.ne.s32.totalorder %s93, %s94
      %p106 = scmp.eq.s32.totalorder %s42, 1
      %p107 = por %p105, %p106
      %p109 = scmp.ne.s32.totalorder %s94, %s108
      %p110 = scmp.eq.s32.totalorder %s42, 0
      %p111 = por %p109, %p110
      %s113 = sadd.s32 %s112, 1
      %p116 = scmp.eq.s32.totalorder %s36, 1
      %p117 = scmp.ne.s32.totalorder %s112, %s114
      %p118 = scmp.eq.s32.totalorder %s36, 0
      %p119 = por %p117, %p118
      %p120 = scmp.ne.s32.totalorder %s112, %s114
      %p121 = scmp.eq.s32.totalorder %s41, 1
      %p122 = por %p120, %p121
      %p123 = scmp.ne.s32.totalorder %s114, %s115
      %p124 = scmp.eq.s32.totalorder %s41, 0
      %p125 = por %p123, %p124
      %p126 = scmp.ne.s32.totalorder %s114, %s115
      %p127 = scmp.eq.s32.totalorder %s42, 1
      %p128 = por %p126, %p127
      %p130 = scmp.ne.s32.totalorder %s115, %s129
      %p131 = scmp.eq.s32.totalorder %s42, 0
      %p132 = por %p130, %p131
      %s134 = sadd.s32 %s133, 1
      %p137 = scmp.eq.s32.totalorder %s36, 1
      %p138 = scmp.ne.s32.totalorder %s133, %s135
      %p139 = scmp.eq.s32.totalorder %s36, 0
      %p140 = por %p138, %p139
      %p141 = scmp.ne.s32.totalorder %s133, %s135
      %p142 = scmp.eq.s32.totalorder %s41, 1
      %p143 = por %p141, %p142
      %p144 = scmp.ne.s32.totalorder %s135, %s136
      %p145 = scmp.eq.s32.totalorder %s41, 0
      %p146 = por %p144, %p145
      %p147 = scmp.ne.s32.totalorder %s135, %s136
      %p148 = scmp.eq.s32.totalorder %s42, 1
      %p149 = por %p147, %p148
      %p151 = scmp.ne.s32.totalorder %s136, %s150
      %p152 = scmp.eq.s32.totalorder %s42, 0
      %p153 = por %p151, %p152
      %s155 = sadd.s32 %s154, 1
      %p158 = scmp.eq.s32.totalorder %s36, 1
      %p159 = scmp.ne.s32.totalorder %s154, %s156
      %p160 = scmp.eq.s32.totalorder %s36, 0
      %p161 = por %p159, %p160
      %p162 = scmp.ne.s32.totalorder %s154, %s156
      %p163 = scmp.eq.s32.totalorder %s41, 1
      %p164 = por %p162, %p163
      %p165 = scmp.ne.s32.totalorder %s156, %s157
      %p166 = scmp.eq.s32.totalorder %s41, 0
      %p167 = por %p165, %p166
      %p168 = scmp.ne.s32.totalorder %s156, %s157
      %p169 = scmp.eq.s32.totalorder %s42, 1
      %p170 = por %p168, %p169
      %p172 = scmp.ne.s32.totalorder %s157, %s171
      %p173 = scmp.eq.s32.totalorder %s42, 0
      %p174 = por %p172, %p173
      %s176 = sadd.s32 %s175, 1
      %p179 = scmp.eq.s32.totalorder %s36, 1
      %p180 = scmp.ne.s32.totalorder %s175, %s177
      %p181 = scmp.eq.s32.totalorder %s36, 0
      %p182 = por %p180, %p181
      %p183 = scmp.ne.s32.totalorder %s175, %s177
      %p184 = scmp.eq.s32.totalorder %s41, 1
      %p185 = por %p183, %p184
      %p186 = scmp.ne.s32.totalorder %s177, %s178
      %p187 = scmp.eq.s32.totalorder %s41, 0
      %p188 = por %p186, %p187
      %p189 = scmp.ne.s32.totalorder %s177, %s178
      %p190 = scmp.eq.s32.totalorder %s42, 1
      %p191 = por %p189, %p190
      %p193 = scmp.ne.s32.totalorder %s178, %s192
      %p194 = scmp.eq.s32.totalorder %s42, 0
      %p195 = por %p193, %p194
      %s197 = sadd.s32 %s196, 1
      %p200 = scmp.eq.s32.totalorder %s36, 1
      %p201 = scmp.ne.s32.totalorder %s196, %s198
      %p202 = scmp.eq.s32.totalorder %s36, 0
      %p203 = por %p201, %p202
      %p204 = scmp.ne.s32.totalorder %s196, %s198
      %p205 = scmp.eq.s32.totalorder %s41, 1
      %p206 = por %p204, %p205
      %p207 = scmp.ne.s32.totalorder %s198, %s199
      %p208 = scmp.eq.s32.totalorder %s41, 0
      %p209 = por %p207, %p208
      %p210 = scmp.ne.s32.totalorder %s198, %s199
      %p211 = scmp.eq.s32.totalorder %s42, 1
      %p212 = por %p210, %p211
      %p214 = scmp.ne.s32.totalorder %s199, %s213
      %p215 = scmp.eq.s32.totalorder %s42, 0
      %p216 = por %p214, %p215
      %s218 = sadd.s32 %s217, 1
      %p221 = scmp.eq.s32.totalorder %s36, 1
      %p222 = scmp.ne.s32.totalorder %s217, %s219
      %p223 = scmp.eq.s32.totalorder %s36, 0
      %p224 = por %p222, %p223
      %p225 = scmp.ne.s32.totalorder %s217, %s219
      %p226 = scmp.eq.s32.totalorder %s41, 1
      %p227 = por %p225, %p226
      %p228 = scmp.ne.s32.totalorder %s219, %s220
      %p229 = scmp.eq.s32.totalorder %s41, 0
      %p230 = por %p228, %p229
      %p231 = scmp.ne.s32.totalorder %s219, %s220
      %p232 = scmp.eq.s32.totalorder %s42, 1
      %p233 = por %p231, %p232
      %p235 = scmp.ne.s32.totalorder %s220, %s234
      %p236 = scmp.eq.s32.totalorder %s42, 0
      %p237 = por %p235, %p236
      %s239 = sadd.s32 %s238, 1
      %p242 = scmp.eq.s32.totalorder %s36, 1
      %p243 = scmp.ne.s32.totalorder %s238, %s240
      %p244 = scmp.eq.s32.totalorder %s36, 0
      %p245 = por %p243, %p244
      %p246 = scmp.ne.s32.totalorder %s238, %s240
      %p247 = scmp.eq.s32.totalorder %s41, 1
      %p248 = por %p246, %p247
      %p249 = scmp.ne.s32.totalorder %s240, %s241
      %p250 = scmp.eq.s32.totalorder %s41, 0
      %p251 = por %p249, %p250
      %p252 = scmp.ne.s32.totalorder %s240, %s241
      %p253 = scmp.eq.s32.totalorder %s42, 1
      %p254 = por %p252, %p253
      %p256 = scmp.ne.s32.totalorder %s241, %s255
      %p257 = scmp.eq.s32.totalorder %s42, 0
      %p258 = por %p256, %p257
      %s260 = sadd.s32 %s259, 1
      %p263 = scmp.eq.s32.totalorder %s36, 1
      %p264 = scmp.ne.s32.totalorder %s259, %s261
      %p265 = scmp.eq.s32.totalorder %s36, 0
      %p266 = por %p264, %p265
      %p267 = scmp.ne.s32.totalorder %s259, %s261
      %p268 = scmp.eq.s32.totalorder %s41, 1
      %p269 = por %p267, %p268
      %p270 = scmp.ne.s32.totalorder %s261, %s262
      %p271 = scmp.eq.s32.totalorder %s41, 0
      %p272 = por %p270, %p271
      %p273 = scmp.ne.s32.totalorder %s261, %s262
      %p274 = scmp.eq.s32.totalorder %s42, 1
      %p275 = por %p273, %p274
      %p277 = scmp.ne.s32.totalorder %s262, %s276
      %p278 = scmp.eq.s32.totalorder %s42, 0
      %p279 = por %p277, %p278
      %s281 = sadd.s32 %s280, 1
      %p284 = scmp.eq.s32.totalorder %s36, 1
      %p285 = scmp.ne.s32.totalorder %s280, %s282
      %p286 = scmp.eq.s32.totalorder %s36, 0
      %p287 = por %p285, %p286
      %p288 = scmp.ne.s32.totalorder %s280, %s282
      %p289 = scmp.eq.s32.totalorder %s41, 1
      %p290 = por %p288, %p289
      %p291 = scmp.ne.s32.totalorder %s282, %s283
      %p292 = scmp.eq.s32.totalorder %s41, 0
      %p293 = por %p291, %p292
      %p294 = scmp.ne.s32.totalorder %s282, %s283
      %p295 = scmp.eq.s32.totalorder %s42, 1
      %p296 = por %p294, %p295
      %p298 = scmp.ne.s32.totalorder %s283, %s297
      %p299 = scmp.eq.s32.totalorder %s42, 0
      %p300 = por %p298, %p299
      %s302 = sadd.s32 %s301, 1
      %p305 = scmp.eq.s32.totalorder %s36, 1
      %p306 = scmp.ne.s32.totalorder %s301, %s303
      %p307 = scmp.eq.s32.totalorder %s36, 0
      %p308 = por %p306, %p307
      %p309 = scmp.ne.s32.totalorder %s301, %s303
      %p310 = scmp.eq.s32.totalorder %s41, 1
      %p311 = por %p309, %p310
      %p312 = scmp.ne.s32.totalorder %s303, %s304
      %p313 = scmp.eq.s32.totalorder %s41, 0
      %p314 = por %p312, %p313
      %p315 = scmp.ne.s32.totalorder %s303, %s304
      %p316 = scmp.eq.s32.totalorder %s42, 1
      %p317 = por %p315, %p316
      %p319 = scmp.ne.s32.totalorder %s304, %s318
      %p320 = scmp.eq.s32.totalorder %s42, 0
      %p321 = por %p319, %p320
      %s323 = sadd.s32 %s322, 1
      %p326 = scmp.eq.s32.totalorder %s36, 1
      %p327 = scmp.ne.s32.totalorder %s322, %s324
      %p328 = scmp.eq.s32.totalorder %s36, 0
      %p329 = por %p327, %p328
      %p330 = scmp.ne.s32.totalorder %s322, %s324
      %p331 = scmp.eq.s32.totalorder %s41, 1
      %p332 = por %p330, %p331
      %p333 = scmp.ne.s32.totalorder %s324, %s325
      %p334 = scmp.eq.s32.totalorder %s41, 0
      %p335 = por %p333, %p334
      %p336 = scmp.ne.s32.totalorder %s324, %s325
      %p337 = scmp.eq.s32.totalorder %s42, 1
      %p338 = por %p336, %p337
      %p340 = scmp.ne.s32.totalorder %s325, %s339
      %p341 = scmp.eq.s32.totalorder %s42, 0
      %p342 = por %p340, %p341
      %s344 = sadd.s32 %s343, 1
      %p347 = scmp.eq.s32.totalorder %s36, 1
      %p348 = scmp.ne.s32.totalorder %s343, %s345
      %p349 = scmp.eq.s32.totalorder %s36, 0
      %p350 = por %p348, %p349
      %p351 = scmp.ne.s32.totalorder %s343, %s345
      %p352 = scmp.eq.s32.totalorder %s41, 1
      %p353 = por %p351, %p352
      %p354 = scmp.ne.s32.totalorder %s345, %s346
      %p355 = scmp.eq.s32.totalorder %s41, 0
      %p356 = por %p354, %p355
      %p357 = scmp.ne.s32.totalorder %s345, %s346
      %p358 = scmp.eq.s32.totalorder %s42, 1
      %p359 = por %p357, %p358
      %p361 = scmp.ne.s32.totalorder %s346, %s360
      %p362 = scmp.eq.s32.totalorder %s42, 0
      %p363 = por %p361, %p362
      %s365 = sadd.s32 %s364, 1
      %p368 = scmp.eq.s32.totalorder %s36, 1
      %p369 = scmp.ne.s32.totalorder %s364, %s366
      %p370 = scmp.eq.s32.totalorder %s36, 0
      %p371 = por %p369, %p370
      %p372 = scmp.ne.s32.totalorder %s364, %s366
      %p373 = scmp.eq.s32.totalorder %s41, 1
      %p374 = por %p372, %p373
      %p375 = scmp.ne.s32.totalorder %s366, %s367
      %p376 = scmp.eq.s32.totalorder %s41, 0
      %p377 = por %p375, %p376
      %p378 = scmp.ne.s32.totalorder %s366, %s367
      %p379 = scmp.eq.s32.totalorder %s42, 1
      %p380 = por %p378, %p379
      %p382 = scmp.ne.s32.totalorder %s367, %s381
      %p383 = scmp.eq.s32.totalorder %s42, 0
      %p384 = por %p382, %p383
      %s386 = sadd.s32 %s385, 1
      %p389 = scmp.eq.s32.totalorder %s36, 1
      %p390 = scmp.ne.s32.totalorder %s385, %s387
      %p391 = scmp.eq.s32.totalorder %s36, 0
      %p392 = por %p390, %p391
      %p393 = scmp.ne.s32.totalorder %s385, %s387
      %p394 = scmp.eq.s32.totalorder %s41, 1
      %p395 = por %p393, %p394
      %p396 = scmp.ne.s32.totalorder %s387, %s388
      %p397 = scmp.eq.s32.totalorder %s41, 0
      %p398 = por %p396, %p397
      %p399 = scmp.ne.s32.totalorder %s387, %s388
      %p400 = scmp.eq.s32.totalorder %s42, 1
      %p401 = por %p399, %p400
      %p403 = scmp.ne.s32.totalorder %s388, %s402
      %p404 = scmp.eq.s32.totalorder %s42, 0
      %p405 = por %p403, %p404
      %s407 = sadd.s32 %s406, 1
      %p410 = scmp.eq.s32.totalorder %s36, 1
      %p411 = scmp.ne.s32.totalorder %s406, %s408
      %p412 = scmp.eq.s32.totalorder %s36, 0
      %p413 = por %p411, %p412
      %p414 = scmp.ne.s32.totalorder %s406, %s408
      %p415 = scmp.eq.s32.totalorder %s41, 1
      %p416 = por %p414, %p415
      %p417 = scmp.ne.s32.totalorder %s408, %s409
      %p418 = scmp.eq.s32.totalorder %s41, 0
      %p419 = por %p417, %p418
      %p420 = scmp.ne.s32.totalorder %s408, %s409
      %p421 = scmp.eq.s32.totalorder %s42, 1
      %p422 = por %p420, %p421
      %p424 = scmp.ne.s32.totalorder %s409, %s423
      %p425 = scmp.eq.s32.totalorder %s42, 0
      %p426 = por %p424, %p425
      %s428 = sadd.s32 %s427, 1
      %p431 = scmp.eq.s32.totalorder %s36, 1
      %p432 = scmp.ne.s32.totalorder %s427, %s429
      %p433 = scmp.eq.s32.totalorder %s36, 0
      %p434 = por %p432, %p433
      %p435 = scmp.ne.s32.totalorder %s427, %s429
      %p436 = scmp.eq.s32.totalorder %s41, 1
      %p437 = por %p435, %p436
      %p438 = scmp.ne.s32.totalorder %s429, %s430
      %p439 = scmp.eq.s32.totalorder %s41, 0
      %p440 = por %p438, %p439
      %p441 = scmp.ne.s32.totalorder %s429, %s430
      %p442 = scmp.eq.s32.totalorder %s42, 1
      %p443 = por %p441, %p442
      %p445 = scmp.ne.s32.totalorder %s430, %s444
      %p446 = scmp.eq.s32.totalorder %s42, 0
      %p447 = por %p445, %p446
      %s448 = ssub.s32 %s36, %s43
      %p449 = scmp.eq.s32.totalorder %s448, 0
      %s451 = sadd.s32 %s450, 1
      %s452 = scalar_select %p449, %s450, %s451
      %p455 = pneg %p449
      %p456 = scmp.eq.s32.totalorder %s36, 1
      %p457 = por %p455, %p456
      %p458 = scmp.ne.s32.totalorder %s450, %s453
      %p459 = scmp.eq.s32.totalorder %s36, 0
      %p460 = por %p458, %p459
      %p461 = scmp.ne.s32.totalorder %s450, %s453
      %p462 = scmp.eq.s32.totalorder %s41, 1
      %p463 = por %p461, %p462
      %p464 = scmp.ne.s32.totalorder %s453, %s454
      %p465 = scmp.eq.s32.totalorder %s41, 0
      %p466 = por %p464, %p465
      %p467 = scmp.ne.s32.totalorder %s453, %s454
      %p468 = scmp.eq.s32.totalorder %s42, 1
      %p469 = por %p467, %p468
      %p471 = scmp.ne.s32.totalorder %s454, %s470
      %p472 = scmp.eq.s32.totalorder %s42, 0
      %p473 = por %p471, %p472
      %p474 = scmp.le.s32.totalorder 1, %s36
      %p475 = scmp.lt.s32.totalorder %s36, 3
      %p476 = pnand %p474, %p475
      %p477 = pneg %p476
      // Predicated region
      $region9: #{tpu_custom_call.1} parent=5 // pred_check
        _
      $region10: #{tpu_custom_call.1} parent=5 // pred_check_branch
        %479 = sbr.rel (%p476) target = $region12
      $region11: #{tpu_custom_call.1} parent=5 // pred_region
        %s480 = ssub.s32 %s36, 1
        // Predicated region
        $region13: #{tpu_custom_call.1} parent=11 // pred_check
          %p481 = pneg %p83
        $region14: #{tpu_custom_call.1} parent=11 // pred_check_branch
          %483 = sbr.rel (%p481) target = $region16
        $region15: #{tpu_custom_call.1} parent=11 // pred_region
          %s485 = ssub.s32 8192, 8192
          %486 = vsyncadd [#allocation6], %s485
          %s487 = sshll.u32 [#allocation5], 4
          %s488 = int_to_ptr.vmem [resolvable:$true] %s487
          %493 = dma.hbm_to_vmem [thread:$0]  %s1, 8192, %s488, [#allocation6], 256, 256, 16
        $region16: #{tpu_custom_call.1} parent=11 // pred_fallthru
          _
        // Predicated region
        $region17: #{tpu_custom_call.1} parent=11 // pred_check
          %p494 = pneg %p104
        $region18: #{tpu_custom_call.1} parent=11 // pred_check_branch
          %496 = sbr.rel (%p494) target = $region20
        $region19: #{tpu_custom_call.1} parent=11 // pred_region
          %s498 = ssub.s32 64, 64
          %499 = vsyncadd [#allocation6], %s498
          %s501 = sshll.u32 [#allocation7], 4
          %s502 = int_to_ptr.vmem [resolvable:$true] %s501
          %504 = dma.hbm_to_vmem [thread:$0]  %s2, 64, %s502, [#allocation6]
        $region20: #{tpu_custom_call.1} parent=11 // pred_fallthru
          _
        // Predicated region
        $region21: #{tpu_custom_call.1} parent=11 // pred_check
          %p505 = pneg %p125
        $region22: #{tpu_custom_call.1} parent=11 // pred_check_branch
          %507 = sbr.rel (%p505) target = $region24
        $region23: #{tpu_custom_call.1} parent=11 // pred_region
          %s509 = ssub.s32 16384, 16384
          %510 = vsyncadd [#allocation9], %s509
          %s511 = sshll.u32 [#allocation8], 4
          %s512 = int_to_ptr.vmem [resolvable:$true] %s511
          %517 = dma.hbm_to_vmem [thread:$0]  %s3, 16384, %s512, [#allocation9], 256, 256, 16
        $region24: #{tpu_custom_call.1} parent=11 // pred_fallthru
          _
        // Predicated region
        $region25: #{tpu_custom_call.1} parent=11 // pred_check
          %p518 = pneg %p146
        $region26: #{tpu_custom_call.1} parent=11 // pred_check_branch
          %520 = sbr.rel (%p518) target = $region28
        $region27: #{tpu_custom_call.1} parent=11 // pred_region
          _
        $region28: #{tpu_custom_call.1} parent=11 // pred_fallthru
          _
        // Predicated region
        $region29: #{tpu_custom_call.1} parent=11 // pred_check
          %p521 = pneg %p167
        $region30: #{tpu_custom_call.1} parent=11 // pred_check_branch
          %523 = sbr.rel (%p521) target = $region32
        $region31: #{tpu_custom_call.1} parent=11 // pred_region
          %s525 = ssub.s32 8192, 8192
          %526 = vsyncadd [#allocation9], %s525
          %s527 = sshll.u32 [#allocation10], 4
          %s528 = int_to_ptr.vmem [resolvable:$true] %s527
          %533 = dma.hbm_to_vmem [thread:$0]  %s5, 8192, %s528, [#allocation9], 128, 128, 8
        $region32: #{tpu_custom_call.1} parent=11 // pred_fallthru
          _
        // Predicated region
        $region33: #{tpu_custom_call.1} parent=11 // pred_check
          %p534 = pneg %p188
        $region34: #{tpu_custom_call.1} parent=11 // pred_check_branch
          %536 = sbr.rel (%p534) target = $region36
        $region35: #{tpu_custom_call.1} parent=11 // pred_region
          _
        $region36: #{tpu_custom_call.1} parent=11 // pred_fallthru
          _
        // Predicated region
        $region37: #{tpu_custom_call.1} parent=11 // pred_check
          %p537 = pneg %p209
        $region38: #{tpu_custom_call.1} parent=11 // pred_check_branch
          %539 = sbr.rel (%p537) target = $region40
        $region39: #{tpu_custom_call.1} parent=11 // pred_region
          %s541 = ssub.s32 4096, 4096
          %542 = vsyncadd [#allocation12], %s541
          %s543 = sshll.u32 [#allocation11], 4
          %s544 = int_to_ptr.vmem [resolvable:$true] %s543
          %549 = dma.hbm_to_vmem [thread:$0]  %s7, 4096, %s544, [#allocation12], 128, 128, 8
        $region40: #{tpu_custom_call.1} parent=11 // pred_fallthru
          _
        // Predicated region
        $region41: #{tpu_custom_call.1} parent=11 // pred_check
          %p550 = pneg %p230
        $region42: #{tpu_custom_call.1} parent=11 // pred_check_branch
          %552 = sbr.rel (%p550) target = $region44
        $region43: #{tpu_custom_call.1} parent=11 // pred_region
          _
        $region44: #{tpu_custom_call.1} parent=11 // pred_fallthru
          _
        // Predicated region
        $region45: #{tpu_custom_call.1} parent=11 // pred_check
          %p553 = pneg %p251
        $region46: #{tpu_custom_call.1} parent=11 // pred_check_branch
          %555 = sbr.rel (%p553) target = $region48
        $region47: #{tpu_custom_call.1} parent=11 // pred_region
          %s557 = ssub.s32 8192, 8192
          %558 = vsyncadd [#allocation12], %s557
          %s559 = sshll.u32 [#allocation13], 4
          %s560 = int_to_ptr.vmem [resolvable:$true] %s559
          %565 = dma.hbm_to_vmem [thread:$0]  %s9, 8192, %s560, [#allocation12], 256, 256, 16
        $region48: #{tpu_custom_call.1} parent=11 // pred_fallthru
          _
        // Predicated region
        $region49: #{tpu_custom_call.1} parent=11 // pred_check
          %p566 = pneg %p272
        $region50: #{tpu_custom_call.1} parent=11 // pred_check_branch
          %568 = sbr.rel (%p566) target = $region52
        $region51: #{tpu_custom_call.1} parent=11 // pred_region
          _
        $region52: #{tpu_custom_call.1} parent=11 // pred_fallthru
          _
        // Predicated region
        $region53: #{tpu_custom_call.1} parent=11 // pred_check
          %p569 = pneg %p293
        $region54: #{tpu_custom_call.1} parent=11 // pred_check_branch
          %571 = sbr.rel (%p569) target = $region56
        $region55: #{tpu_custom_call.1} parent=11 // pred_region
          %s573 = ssub.s32 2048, 2048
          %574 = vsyncadd [#allocation15], %s573
          %s575 = sshll.u32 [#allocation14], 4
          %s576 = int_to_ptr.vmem [resolvable:$true] %s575
          %581 = dma.hbm_to_vmem [thread:$0]  %s11, 2048, %s576, [#allocation15], 64, 64, 4
        $region56: #{tpu_custom_call.1} parent=11 // pred_fallthru
          _
        // Predicated region
        $region57: #{tpu_custom_call.1} parent=11 // pred_check
          %p582 = pneg %p314
        $region58: #{tpu_custom_call.1} parent=11 // pred_check_branch
          %584 = sbr.rel (%p582) target = $region60
        $region59: #{tpu_custom_call.1} parent=11 // pred_region
          _
        $region60: #{tpu_custom_call.1} parent=11 // pred_fallthru
          _
        // Predicated region
        $region61: #{tpu_custom_call.1} parent=11 // pred_check
          %p585 = pneg %p335
        $region62: #{tpu_custom_call.1} parent=11 // pred_check_branch
          %587 = sbr.rel (%p585) target = $region64
        $region63: #{tpu_custom_call.1} parent=11 // pred_region
          %s589 = ssub.s32 2048, 2048
          %590 = vsyncadd [#allocation15], %s589
          %s591 = sshll.u32 [#allocation16], 4
          %s592 = int_to_ptr.vmem [resolvable:$true] %s591
          %597 = dma.hbm_to_vmem [thread:$0]  %s13, 2048, %s592, [#allocation15], 64, 64, 4
        $region64: #{tpu_custom_call.1} parent=11 // pred_fallthru
          _
        // Predicated region
        $region65: #{tpu_custom_call.1} parent=11 // pred_check
          %p598 = pneg %p356
        $region66: #{tpu_custom_call.1} parent=11 // pred_check_branch
          %600 = sbr.rel (%p598) target = $region68
        $region67: #{tpu_custom_call.1} parent=11 // pred_region
          _
        $region68: #{tpu_custom_call.1} parent=11 // pred_fallthru
          _
        // Predicated region
        $region69: #{tpu_custom_call.1} parent=11 // pred_check
          %p601 = pneg %p377
        $region70: #{tpu_custom_call.1} parent=11 // pred_check_branch
          %603 = sbr.rel (%p601) target = $region72
        $region71: #{tpu_custom_call.1} parent=11 // pred_region
          %s605 = ssub.s32 1024, 1024
          %606 = vsyncadd [#allocation18], %s605
          %s607 = sshll.u32 [#allocation17], 4
          %s608 = int_to_ptr.vmem [resolvable:$true] %s607
          %613 = dma.hbm_to_vmem [thread:$0]  %s15, 1024, %s608, [#allocation18], 64, 64, 4
        $region72: #{tpu_custom_call.1} parent=11 // pred_fallthru
          _
        // Predicated region
        $region73: #{tpu_custom_call.1} parent=11 // pred_check
          %p614 = pneg %p398
        $region74: #{tpu_custom_call.1} parent=11 // pred_check_branch
          %616 = sbr.rel (%p614) target = $region76
        $region75: #{tpu_custom_call.1} parent=11 // pred_region
          _
        $region76: #{tpu_custom_call.1} parent=11 // pred_fallthru
          _
        // Predicated region
        $region77: #{tpu_custom_call.1} parent=11 // pred_check
          %p617 = pneg %p419
        $region78: #{tpu_custom_call.1} parent=11 // pred_check_branch
          %619 = sbr.rel (%p617) target = $region80
        $region79: #{tpu_custom_call.1} parent=11 // pred_region
          %s621 = ssub.s32 1024, 1024
          %622 = vsyncadd [#allocation18], %s621
          %s623 = sshll.u32 [#allocation19], 4
          %s624 = int_to_ptr.vmem [resolvable:$true] %s623
          %629 = dma.hbm_to_vmem [thread:$0]  %s17, 1024, %s624, [#allocation18], 64, 64, 4
        $region80: #{tpu_custom_call.1} parent=11 // pred_fallthru
          _
        // Predicated region
        $region81: #{tpu_custom_call.1} parent=11 // pred_check
          %p630 = pneg %p440
        $region82: #{tpu_custom_call.1} parent=11 // pred_check_branch
          %632 = sbr.rel (%p630) target = $region84
        $region83: #{tpu_custom_call.1} parent=11 // pred_region
          _
        $region84: #{tpu_custom_call.1} parent=11 // pred_fallthru
          _
      $region12: #{tpu_custom_call.1} parent=5 // pred_fallthru
        _
      %p633 = scmp.lt.s32.totalorder %s36, 2
      // Predicated region
      $region85: #{tpu_custom_call.1} parent=5 // pred_check
        %p634 = pneg %p633
      $region86: #{tpu_custom_call.1} parent=5 // pred_check_branch
        %636 = sbr.rel (%p634) target = $region88
      $region87: #{tpu_custom_call.1} parent=5 // pred_region
        // Predicated region
        $region89: #{tpu_custom_call.1} parent=87 // pred_check
          %p637 = pneg %p56
        $region90: #{tpu_custom_call.1} parent=87 // pred_check_branch
          %639 = sbr.rel (%p637) target = $region92
        $region91: #{tpu_custom_call.1} parent=87 // pred_region
          %s640 = sand.u32 %s46, 1
          %s641 = scalar_lea.sflag [#allocation3], %s640
          %s642 = sand.u32 %s46, 1
          %s643 = smul.addr %s642, 128
          %s644 = scalar_lea.vmem [#allocation2], %s643
          %s645 = smul.u32 16, %s36
          %s647 = ssub.s32 2048, 2048
          %648 = vsyncadd %s641, %s647
          %s649 = smul.addr %s645, 2
          %s650 = smul.addr %s649, 64
          %s651 = scalar_lea.hbm %s0, %s650
          %s652 = sshll.u32 %s644, 4
          %s653 = int_to_ptr.vmem [resolvable:$true] %s652
          %658 = dma.hbm_to_vmem [thread:$0]  %s651, 2048, %s653, %s641, 128, 128, 8
        $region92: #{tpu_custom_call.1} parent=87 // pred_fallthru
          _
      $region88: #{tpu_custom_call.1} parent=5 // pred_fallthru
        _
      %p659 = scmp.le.s32.totalorder 1, %s36
      %p660 = scmp.lt.s32.totalorder %s36, 3
      %p661 = pnand %p659, %p660
      %p662 = pneg %p661
      // Predicated region
      $region93: #{tpu_custom_call.1} parent=5 // pred_check
        _
      $region94: #{tpu_custom_call.1} parent=5 // pred_check_branch
        %664 = sbr.rel (%p661) target = $region96
      $region95: #{tpu_custom_call.1} parent=5 // pred_region
        %s665 = ssub.s32 %s36, 1
        %s666 = sand.u32 %s49, 1
        %s667 = scalar_lea.sflag [#allocation3], %s666
        %s668 = sand.u32 %s49, 1
        %s669 = smul.addr %s668, 128
        %s670 = scalar_lea.vmem [#allocation2], %s669
        // Predicated region
        $region97: #{tpu_custom_call.1} parent=95 // pred_check
          %p671 = pneg %p62
        $region98: #{tpu_custom_call.1} parent=95 // pred_check_branch
          %673 = sbr.rel (%p671) target = $region100
        $region99: #{tpu_custom_call.1} parent=95 // pred_region
          %674 = dma.done %s667, 2048
        $region100: #{tpu_custom_call.1} parent=95 // pred_fallthru
          _
        // Predicated region
        $region101: #{tpu_custom_call.1} parent=95 // pred_check
          %p675 = pneg %p83
        $region102: #{tpu_custom_call.1} parent=95 // pred_check_branch
          %677 = sbr.rel (%p675) target = $region104
        $region103: #{tpu_custom_call.1} parent=95 // pred_region
          %678 = dma.done [#allocation6], 8192
        $region104: #{tpu_custom_call.1} parent=95 // pred_fallthru
          _
        // Predicated region
        $region105: #{tpu_custom_call.1} parent=95 // pred_check
          %p679 = pneg %p104
        $region106: #{tpu_custom_call.1} parent=95 // pred_check_branch
          %681 = sbr.rel (%p679) target = $region108
        $region107: #{tpu_custom_call.1} parent=95 // pred_region
          %682 = dma.done [#allocation6], 64
        $region108: #{tpu_custom_call.1} parent=95 // pred_fallthru
          _
        // Predicated region
        $region109: #{tpu_custom_call.1} parent=95 // pred_check
          %p683 = pneg %p125
        $region110: #{tpu_custom_call.1} parent=95 // pred_check_branch
          %685 = sbr.rel (%p683) target = $region112
        $region111: #{tpu_custom_call.1} parent=95 // pred_region
          %686 = dma.done [#allocation9], 16384
        $region112: #{tpu_custom_call.1} parent=95 // pred_fallthru
          _
        // Predicated region
        $region113: #{tpu_custom_call.1} parent=95 // pred_check
          %p687 = pneg %p167
        $region114: #{tpu_custom_call.1} parent=95 // pred_check_branch
          %689 = sbr.rel (%p687) target = $region116
        $region115: #{tpu_custom_call.1} parent=95 // pred_region
          %690 = dma.done [#allocation9], 8192
        $region116: #{tpu_custom_call.1} parent=95 // pred_fallthru
          _
        // Predicated region
        $region117: #{tpu_custom_call.1} parent=95 // pred_check
          %p691 = pneg %p209
        $region118: #{tpu_custom_call.1} parent=95 // pred_check_branch
          %693 = sbr.rel (%p691) target = $region120
        $region119: #{tpu_custom_call.1} parent=95 // pred_region
          %694 = dma.done [#allocation12], 4096
        $region120: #{tpu_custom_call.1} parent=95 // pred_fallthru
          _
        // Predicated region
        $region121: #{tpu_custom_call.1} parent=95 // pred_check
          %p695 = pneg %p251
        $region122: #{tpu_custom_call.1} parent=95 // pred_check_branch
          %697 = sbr.rel (%p695) target = $region124
        $region123: #{tpu_custom_call.1} parent=95 // pred_region
          %698 = dma.done [#allocation12], 8192
        $region124: #{tpu_custom_call.1} parent=95 // pred_fallthru
          _
        // Predicated region
        $region125: #{tpu_custom_call.1} parent=95 // pred_check
          %p699 = pneg %p293
        $region126: #{tpu_custom_call.1} parent=95 // pred_check_branch
          %701 = sbr.rel (%p699) target = $region128
        $region127: #{tpu_custom_call.1} parent=95 // pred_region
          %702 = dma.done [#allocation15], 2048
        $region128: #{tpu_custom_call.1} parent=95 // pred_fallthru
          _
        // Predicated region
        $region129: #{tpu_custom_call.1} parent=95 // pred_check
          %p703 = pneg %p335
        $region130: #{tpu_custom_call.1} parent=95 // pred_check_branch
          %705 = sbr.rel (%p703) target = $region132
        $region131: #{tpu_custom_call.1} parent=95 // pred_region
          %706 = dma.done [#allocation15], 2048
        $region132: #{tpu_custom_call.1} parent=95 // pred_fallthru
          _
        // Predicated region
        $region133: #{tpu_custom_call.1} parent=95 // pred_check
          %p707 = pneg %p377
        $region134: #{tpu_custom_call.1} parent=95 // pred_check_branch
          %709 = sbr.rel (%p707) target = $region136
        $region135: #{tpu_custom_call.1} parent=95 // pred_region
          %710 = dma.done [#allocation18], 1024
        $region136: #{tpu_custom_call.1} parent=95 // pred_fallthru
          _
        // Predicated region
        $region137: #{tpu_custom_call.1} parent=95 // pred_check
          %p711 = pneg %p419
        $region138: #{tpu_custom_call.1} parent=95 // pred_check_branch
          %713 = sbr.rel (%p711) target = $region140
        $region139: #{tpu_custom_call.1} parent=95 // pred_region
          %714 = dma.done [#allocation18], 1024
        $region140: #{tpu_custom_call.1} parent=95 // pred_fallthru
          _
        %s715 = sand.u32 %s49, 1
        %s716 = scalar_lea.sflag [#allocation3], %s715
        %s717 = sand.u32 %s49, 1
        %s718 = smul.addr %s717, 128
        %s719 = scalar_lea.vmem [#allocation2], %s718
        %p720 = pneg %p62
        %p721 = pneg %p59
        %p722 = pneg %p83
        %p723 = pneg %p80
        %p724 = pneg %p104
        %p725 = pneg %p101
        %p726 = pneg %p125
        %p727 = pneg %p122
        %p728 = pneg %p146
        %p729 = pneg %p143
        %p730 = pneg %p167
        %p731 = pneg %p164
        %p732 = pneg %p188
        %p733 = pneg %p185
        %p734 = pneg %p209
        %p735 = pneg %p206
        %p736 = pneg %p230
        %p737 = pneg %p227
        %p738 = pneg %p251
        %p739 = pneg %p248
        %p740 = pneg %p272
        %p741 = pneg %p269
        %p742 = pneg %p293
        %p743 = pneg %p290
        %p744 = pneg %p314
        %p745 = pneg %p311
        %p746 = pneg %p335
        %p747 = pneg %p332
        %p748 = pneg %p356
        %p749 = pneg %p353
        %p750 = pneg %p377
        %p751 = pneg %p374
        %p752 = pneg %p398
        %p753 = pneg %p395
        %p754 = pneg %p419
        %p755 = pneg %p416
        %p756 = pneg %p440
        %p757 = pneg %p437
        %p758 = pneg %p466
        %p759 = pneg %p463
        %s760 = sand.u32 %s453, 1
        %s761 = scalar_lea.sflag [#allocation4], %s760
        %s762 = sand.u32 %s453, 1
        %s763 = smul.addr %s762, 256
        %s764 = scalar_lea.vmem [#allocation20], %s763
        %s765 = smul.u32 16, %s41
        %s766 = smul.u32 16, %s41
        %v768 = vld [vmem:[%s670] sm:$0xff]
        %v769 = vld [vmem:[%s670 + $0x8] sm:$0xff]
        %v770 = vld [vmem:[%s670 + $0x10] sm:$0xff]
        %v771 = vld [vmem:[%s670 + $0x18] sm:$0xff]
        %v772 = vld [vmem:[%s670 + $0x20] sm:$0xff]
        %v773 = vld [vmem:[%s670 + $0x28] sm:$0xff]
        %v774 = vld [vmem:[%s670 + $0x30] sm:$0xff]
        %v775 = vld [vmem:[%s670 + $0x38] sm:$0xff]
        %v776 = vld [vmem:[%s670 + $0x40] sm:$0xff]
        %v777 = vld [vmem:[%s670 + $0x48] sm:$0xff]
        %v778 = vld [vmem:[%s670 + $0x50] sm:$0xff]
        %v779 = vld [vmem:[%s670 + $0x58] sm:$0xff]
        %v780 = vld [vmem:[%s670 + $0x60] sm:$0xff]
        %v781 = vld [vmem:[%s670 + $0x68] sm:$0xff]
        %v782 = vld [vmem:[%s670 + $0x70] sm:$0xff]
        %v783 = vld [vmem:[%s670 + $0x78] sm:$0xff]
        %v784 = vld [vmem:[#allocation5] sm:$0xff]
        %v785 = vld [vmem:[#allocation5 + $0x8] sm:$0xff]
        %v786 = vld [vmem:[#allocation5 + $0x10] sm:$0xff]
        %v787 = vld [vmem:[#allocation5 + $0x18] sm:$0xff]
        %v788 = vld [vmem:[#allocation5 + $0x20] sm:$0xff]
        %v789 = vld [vmem:[#allocation5 + $0x28] sm:$0xff]
        %v790 = vld [vmem:[#allocation5 + $0x30] sm:$0xff]
        %v791 = vld [vmem:[#allocation5 + $0x38] sm:$0xff]
        %v792 = vld [vmem:[#allocation5 + $0x40] sm:$0xff]
        %v793 = vld [vmem:[#allocation5 + $0x48] sm:$0xff]
        %v794 = vld [vmem:[#allocation5 + $0x50] sm:$0xff]
        %v795 = vld [vmem:[#allocation5 + $0x58] sm:$0xff]
        %v796 = vld [vmem:[#allocation5 + $0x60] sm:$0xff]
        %v797 = vld [vmem:[#allocation5 + $0x68] sm:$0xff]
        %v798 = vld [vmem:[#allocation5 + $0x70] sm:$0xff]
        %v799 = vld [vmem:[#allocation5 + $0x78] sm:$0xff]
        %v800 = vld [vmem:[#allocation5 + $0x80] sm:$0xff]
        %v801 = vld [vmem:[#allocation5 + $0x88] sm:$0xff]
        %v802 = vld [vmem:[#allocation5 + $0x90] sm:$0xff]
        %v803 = vld [vmem:[#allocation5 + $0x98] sm:$0xff]
        %v804 = vld [vmem:[#allocation5 + $0xa0] sm:$0xff]
        %v805 = vld [vmem:[#allocation5 + $0xa8] sm:$0xff]
        %v806 = vld [vmem:[#allocation5 + $0xb0] sm:$0xff]
        %v807 = vld [vmem:[#allocation5 + $0xb8] sm:$0xff]
        %v808 = vld [vmem:[#allocation5 + $0xc0] sm:$0xff]
        %v809 = vld [vmem:[#allocation5 + $0xc8] sm:$0xff]
        %v810 = vld [vmem:[#allocation5 + $0xd0] sm:$0xff]
        %v811 = vld [vmem:[#allocation5 + $0xd8] sm:$0xff]
        %v812 = vld [vmem:[#allocation5 + $0xe0] sm:$0xff]
        %v813 = vld [vmem:[#allocation5 + $0xe8] sm:$0xff]
        %v814 = vld [vmem:[#allocation5 + $0xf0] sm:$0xff]
        %v815 = vld [vmem:[#allocation5 + $0xf8] sm:$0xff]
        %v816 = vld [vmem:[#allocation5 + $0x100] sm:$0xff]
        %v817 = vld [vmem:[#allocation5 + $0x108] sm:$0xff]
        %v818 = vld [vmem:[#allocation5 + $0x110] sm:$0xff]
        %v819 = vld [vmem:[#allocation5 + $0x118] sm:$0xff]
        %v820 = vld [vmem:[#allocation5 + $0x120] sm:$0xff]
        %v821 = vld [vmem:[#allocation5 + $0x128] sm:$0xff]
        %v822 = vld [vmem:[#allocation5 + $0x130] sm:$0xff]
        %v823 = vld [vmem:[#allocation5 + $0x138] sm:$0xff]
        %v824 = vld [vmem:[#allocation5 + $0x140] sm:$0xff]
        %v825 = vld [vmem:[#allocation5 + $0x148] sm:$0xff]
        %v826 = vld [vmem:[#allocation5 + $0x150] sm:$0xff]
        %v827 = vld [vmem:[#allocation5 + $0x158] sm:$0xff]
        %v828 = vld [vmem:[#allocation5 + $0x160] sm:$0xff]
        %v829 = vld [vmem:[#allocation5 + $0x168] sm:$0xff]
        %v830 = vld [vmem:[#allocation5 + $0x170] sm:$0xff]
        %v831 = vld [vmem:[#allocation5 + $0x178] sm:$0xff]
        %v832 = vld [vmem:[#allocation5 + $0x180] sm:$0xff]
        %v833 = vld [vmem:[#allocation5 + $0x188] sm:$0xff]
        %v834 = vld [vmem:[#allocation5 + $0x190] sm:$0xff]
        %v835 = vld [vmem:[#allocation5 + $0x198] sm:$0xff]
        %v836 = vld [vmem:[#allocation5 + $0x1a0] sm:$0xff]
        %v837 = vld [vmem:[#allocation5 + $0x1a8] sm:$0xff]
        %v838 = vld [vmem:[#allocation5 + $0x1b0] sm:$0xff]
        %v839 = vld [vmem:[#allocation5 + $0x1b8] sm:$0xff]
        %v840 = vld [vmem:[#allocation5 + $0x1c0] sm:$0xff]
        %v841 = vld [vmem:[#allocation5 + $0x1c8] sm:$0xff]
        %v842 = vld [vmem:[#allocation5 + $0x1d0] sm:$0xff]
        %v843 = vld [vmem:[#allocation5 + $0x1d8] sm:$0xff]
        %v844 = vld [vmem:[#allocation5 + $0x1e0] sm:$0xff]
        %v845 = vld [vmem:[#allocation5 + $0x1e8] sm:$0xff]
        %v846 = vld [vmem:[#allocation5 + $0x1f0] sm:$0xff]
        %v847 = vld [vmem:[#allocation5 + $0x1f8] sm:$0xff]
        %v848 = vld [vmem:[#allocation7] sm:$0xf]
        %v850 = vlaneseq
        %v851 = vshrl.u32 %v850, 7
        %v852 = vsub.s32 0, %v851
        %v853 = vrot.slane %v848, %v852
        %v854 = vlaneseq
        %v855 = vshrl.u32 %v854, 7
        %v856 = vsub.s32 1, %v855
        %v857 = vrot.slane %v848, %v856
        %v858 = vlaneseq
        %v859 = vshrl.u32 %v858, 7
        %v860 = vsub.s32 2, %v859
        %v861 = vrot.slane %v848, %v860
        %v862 = vlaneseq
        %v863 = vshrl.u32 %v862, 7
        %v864 = vsub.s32 3, %v863
        %v865 = vrot.slane %v848, %v864
        %v886 = vunpack.c.l.b16 %v768
        %v887 = vunpack.c.h.b16 %v768
        %v888 = vunpack.c.l.b16 %v769
        %v889 = vunpack.c.h.b16 %v769
        %v890 = vunpack.c.l.b16 %v770
        %v891 = vunpack.c.h.b16 %v770
        %v892 = vunpack.c.l.b16 %v771
        %v893 = vunpack.c.h.b16 %v771
        %v894 = vunpack.c.l.b16 %v772
        %v895 = vunpack.c.h.b16 %v772
        %v896 = vunpack.c.l.b16 %v773
        %v897 = vunpack.c.h.b16 %v773
        %v898 = vunpack.c.l.b16 %v774
        %v899 = vunpack.c.h.b16 %v774
        %v900 = vunpack.c.l.b16 %v775
        %v901 = vunpack.c.h.b16 %v775
        %v902 = vunpack.c.l.b16 %v776
        %v903 = vunpack.c.h.b16 %v776
        %v904 = vunpack.c.l.b16 %v777
        %v905 = vunpack.c.h.b16 %v777
        %v906 = vunpack.c.l.b16 %v778
        %v907 = vunpack.c.h.b16 %v778
        %v908 = vunpack.c.l.b16 %v779
        %v909 = vunpack.c.h.b16 %v779
        %v910 = vunpack.c.l.b16 %v780
        %v911 = vunpack.c.h.b16 %v780
        %v912 = vunpack.c.l.b16 %v781
        %v913 = vunpack.c.h.b16 %v781
        %v914 = vunpack.c.l.b16 %v782
        %v915 = vunpack.c.h.b16 %v782
        %v916 = vunpack.c.l.b16 %v783
        %v917 = vunpack.c.h.b16 %v783
        %v918 = vpack.c.b16 %v888, %v886
        %v919 = vpack.c.b16 %v889, %v887
        %v920 = vpack.c.b16 %v892, %v890
        %v921 = vpack.c.b16 %v893, %v891
        %v922 = vpack.c.b16 %v896, %v894
        %v923 = vpack.c.b16 %v897, %v895
        %v924 = vpack.c.b16 %v900, %v898
        %v925 = vpack.c.b16 %v901, %v899
        %v926 = vpack.c.b16 %v904, %v902
        %v927 = vpack.c.b16 %v905, %v903
        %v928 = vpack.c.b16 %v908, %v906
        %v929 = vpack.c.b16 %v909, %v907
        %v930 = vpack.c.b16 %v912, %v910
        %v931 = vpack.c.b16 %v913, %v911
        %v932 = vpack.c.b16 %v916, %v914
        %v933 = vpack.c.b16 %v917, %v915
        %v1014 = vunpack.c.l.b16 %v784
        %v1015 = vunpack.c.h.b16 %v784
        %v1016 = vunpack.c.l.b16 %v785
        %v1017 = vunpack.c.h.b16 %v785
        %v1018 = vunpack.c.l.b16 %v786
        %v1019 = vunpack.c.h.b16 %v786
        %v1020 = vunpack.c.l.b16 %v787
        %v1021 = vunpack.c.h.b16 %v787
        %v1022 = vunpack.c.l.b16 %v788
        %v1023 = vunpack.c.h.b16 %v788
        %v1024 = vunpack.c.l.b16 %v789
        %v1025 = vunpack.c.h.b16 %v789
        %v1026 = vunpack.c.l.b16 %v790
        %v1027 = vunpack.c.h.b16 %v790
        %v1028 = vunpack.c.l.b16 %v791
        %v1029 = vunpack.c.h.b16 %v791
        %v1030 = vunpack.c.l.b16 %v792
        %v1031 = vunpack.c.h.b16 %v792
        %v1032 = vunpack.c.l.b16 %v793
        %v1033 = vunpack.c.h.b16 %v793
        %v1034 = vunpack.c.l.b16 %v794
        %v1035 = vunpack.c.h.b16 %v794
        %v1036 = vunpack.c.l.b16 %v795
        %v1037 = vunpack.c.h.b16 %v795
        %v1038 = vunpack.c.l.b16 %v796
        %v1039 = vunpack.c.h.b16 %v796
        %v1040 = vunpack.c.l.b16 %v797
        %v1041 = vunpack.c.h.b16 %v797
        %v1042 = vunpack.c.l.b16 %v798
        %v1043 = vunpack.c.h.b16 %v798
        %v1044 = vunpack.c.l.b16 %v799
        %v1045 = vunpack.c.h.b16 %v799
        %v1046 = vunpack.c.l.b16 %v800
        %v1047 = vunpack.c.h.b16 %v800
        %v1048 = vunpack.c.l.b16 %v801
        %v1049 = vunpack.c.h.b16 %v801
        %v1050 = vunpack.c.l.b16 %v802
        %v1051 = vunpack.c.h.b16 %v802
        %v1052 = vunpack.c.l.b16 %v803
        %v1053 = vunpack.c.h.b16 %v803
        %v1054 = vunpack.c.l.b16 %v804
        %v1055 = vunpack.c.h.b16 %v804
        %v1056 = vunpack.c.l.b16 %v805
        %v1057 = vunpack.c.h.b16 %v805
        %v1058 = vunpack.c.l.b16 %v806
        %v1059 = vunpack.c.h.b16 %v806
        %v1060 = vunpack.c.l.b16 %v807
        %v1061 = vunpack.c.h.b16 %v807
        %v1062 = vunpack.c.l.b16 %v808
        %v1063 = vunpack.c.h.b16 %v808
        %v1064 = vunpack.c.l.b16 %v809
        %v1065 = vunpack.c.h.b16 %v809
        %v1066 = vunpack.c.l.b16 %v810
        %v1067 = vunpack.c.h.b16 %v810
        %v1068 = vunpack.c.l.b16 %v811
        %v1069 = vunpack.c.h.b16 %v811
        %v1070 = vunpack.c.l.b16 %v812
        %v1071 = vunpack.c.h.b16 %v812
        %v1072 = vunpack.c.l.b16 %v813
        %v1073 = vunpack.c.h.b16 %v813
        %v1074 = vunpack.c.l.b16 %v814
        %v1075 = vunpack.c.h.b16 %v814
        %v1076 = vunpack.c.l.b16 %v815
        %v1077 = vunpack.c.h.b16 %v815
        %v1078 = vunpack.c.l.b16 %v816
        %v1079 = vunpack.c.h.b16 %v816
        %v1080 = vunpack.c.l.b16 %v817
        %v1081 = vunpack.c.h.b16 %v817
        %v1082 = vunpack.c.l.b16 %v818
        %v1083 = vunpack.c.h.b16 %v818
        %v1084 = vunpack.c.l.b16 %v819
        %v1085 = vunpack.c.h.b16 %v819
        %v1086 = vunpack.c.l.b16 %v820
        %v1087 = vunpack.c.h.b16 %v820
        %v1088 = vunpack.c.l.b16 %v821
        %v1089 = vunpack.c.h.b16 %v821
        %v1090 = vunpack.c.l.b16 %v822
        %v1091 = vunpack.c.h.b16 %v822
        %v1092 = vunpack.c.l.b16 %v823
        %v1093 = vunpack.c.h.b16 %v823
        %v1094 = vunpack.c.l.b16 %v824
        %v1095 = vunpack.c.h.b16 %v824
        %v1096 = vunpack.c.l.b16 %v825
        %v1097 = vunpack.c.h.b16 %v825
        %v1098 = vunpack.c.l.b16 %v826
        %v1099 = vunpack.c.h.b16 %v826
        %v1100 = vunpack.c.l.b16 %v827
        %v1101 = vunpack.c.h.b16 %v827
        %v1102 = vunpack.c.l.b16 %v828
        %v1103 = vunpack.c.h.b16 %v828
        %v1104 = vunpack.c.l.b16 %v829
        %v1105 = vunpack.c.h.b16 %v829
        %v1106 = vunpack.c.l.b16 %v830
        %v1107 = vunpack.c.h.b16 %v830
        %v1108 = vunpack.c.l.b16 %v831
        %v1109 = vunpack.c.h.b16 %v831
        %v1110 = vunpack.c.l.b16 %v832
        %v1111 = vunpack.c.h.b16 %v832
        %v1112 = vunpack.c.l.b16 %v833
        %v1113 = vunpack.c.h.b16 %v833
        %v1114 = vunpack.c.l.b16 %v834
        %v1115 = vunpack.c.h.b16 %v834
        %v1116 = vunpack.c.l.b16 %v835
        %v1117 = vunpack.c.h.b16 %v835
        %v1118 = vunpack.c.l.b16 %v836
        %v1119 = vunpack.c.h.b16 %v836
        %v1120 = vunpack.c.l.b16 %v837
        %v1121 = vunpack.c.h.b16 %v837
        %v1122 = vunpack.c.l.b16 %v838
        %v1123 = vunpack.c.h.b16 %v838
        %v1124 = vunpack.c.l.b16 %v839
        %v1125 = vunpack.c.h.b16 %v839
        %v1126 = vunpack.c.l.b16 %v840
        %v1127 = vunpack.c.h.b16 %v840
        %v1128 = vunpack.c.l.b16 %v841
        %v1129 = vunpack.c.h.b16 %v841
        %v1130 = vunpack.c.l.b16 %v842
        %v1131 = vunpack.c.h.b16 %v842
        %v1132 = vunpack.c.l.b16 %v843
        %v1133 = vunpack.c.h.b16 %v843
        %v1134 = vunpack.c.l.b16 %v844
        %v1135 = vunpack.c.h.b16 %v844
        %v1136 = vunpack.c.l.b16 %v845
        %v1137 = vunpack.c.h.b16 %v845
        %v1138 = vunpack.c.l.b16 %v846
        %v1139 = vunpack.c.h.b16 %v846
        %v1140 = vunpack.c.l.b16 %v847
        %v1141 = vunpack.c.h.b16 %v847
        %v1142 = vpack.c.b16 %v1018, %v1014
        %v1143 = vpack.c.b16 %v1019, %v1015
        %v1144 = vpack.c.b16 %v1020, %v1016
        %v1145 = vpack.c.b16 %v1021, %v1017
        %v1146 = vpack.c.b16 %v1026, %v1022
        %v1147 = vpack.c.b16 %v1027, %v1023
        %v1148 = vpack.c.b16 %v1028, %v1024
        %v1149 = vpack.c.b16 %v1029, %v1025
        %v1150 = vpack.c.b16 %v1034, %v1030
        %v1151 = vpack.c.b16 %v1035, %v1031
        %v1152 = vpack.c.b16 %v1036, %v1032
        %v1153 = vpack.c.b16 %v1037, %v1033
        %v1154 = vpack.c.b16 %v1042, %v1038
        %v1155 = vpack.c.b16 %v1043, %v1039
        %v1156 = vpack.c.b16 %v1044, %v1040
        %v1157 = vpack.c.b16 %v1045, %v1041
        %v1158 = vpack.c.b16 %v1050, %v1046
        %v1159 = vpack.c.b16 %v1051, %v1047
        %v1160 = vpack.c.b16 %v1052, %v1048
        %v1161 = vpack.c.b16 %v1053, %v1049
        %v1162 = vpack.c.b16 %v1058, %v1054
        %v1163 = vpack.c.b16 %v1059, %v1055
        %v1164 = vpack.c.b16 %v1060, %v1056
        %v1165 = vpack.c.b16 %v1061, %v1057
        %v1166 = vpack.c.b16 %v1066, %v1062
        %v1167 = vpack.c.b16 %v1067, %v1063
        %v1168 = vpack.c.b16 %v1068, %v1064
        %v1169 = vpack.c.b16 %v1069, %v1065
        %v1170 = vpack.c.b16 %v1074, %v1070
        %v1171 = vpack.c.b16 %v1075, %v1071
        %v1172 = vpack.c.b16 %v1076, %v1072
        %v1173 = vpack.c.b16 %v1077, %v1073
        %v1174 = vpack.c.b16 %v1082, %v1078
        %v1175 = vpack.c.b16 %v1083, %v1079
        %v1176 = vpack.c.b16 %v1084, %v1080
        %v1177 = vpack.c.b16 %v1085, %v1081
        %v1178 = vpack.c.b16 %v1090, %v1086
        %v1179 = vpack.c.b16 %v1091, %v1087
        %v1180 = vpack.c.b16 %v1092, %v1088
        %v1181 = vpack.c.b16 %v1093, %v1089
        %v1182 = vpack.c.b16 %v1098, %v1094
        %v1183 = vpack.c.b16 %v1099, %v1095
        %v1184 = vpack.c.b16 %v1100, %v1096
        %v1185 = vpack.c.b16 %v1101, %v1097
        %v1186 = vpack.c.b16 %v1106, %v1102
        %v1187 = vpack.c.b16 %v1107, %v1103
        %v1188 = vpack.c.b16 %v1108, %v1104
        %v1189 = vpack.c.b16 %v1109, %v1105
        %v1190 = vpack.c.b16 %v1114, %v1110
        %v1191 = vpack.c.b16 %v1115, %v1111
        %v1192 = vpack.c.b16 %v1116, %v1112
        %v1193 = vpack.c.b16 %v1117, %v1113
        %v1194 = vpack.c.b16 %v1122, %v1118
        %v1195 = vpack.c.b16 %v1123, %v1119
        %v1196 = vpack.c.b16 %v1124, %v1120
        %v1197 = vpack.c.b16 %v1125, %v1121
        %v1198 = vpack.c.b16 %v1130, %v1126
        %v1199 = vpack.c.b16 %v1131, %v1127
        %v1200 = vpack.c.b16 %v1132, %v1128
        %v1201 = vpack.c.b16 %v1133, %v1129
        %v1202 = vpack.c.b16 %v1138, %v1134
        %v1203 = vpack.c.b16 %v1139, %v1135
        %v1204 = vpack.c.b16 %v1140, %v1136
        %v1205 = vpack.c.b16 %v1141, %v1137
        %1270 = vmatprep.subr.bf16.mxu0 %v1171
        %1271 = vmatpush1.bf16.msra.mxu0 %v1170
        %1272 = vmatprep.subr.bf16.mxu0 %v1167
        %1273 = vmatpush1.bf16.msra.mxu0 %v1166
        %1274 = vmatprep.subr.bf16.mxu0 %v1163
        %1275 = vmatpush1.bf16.msra.mxu0 %v1162
        %1276 = vmatprep.subr.bf16.mxu0 %v1159
        %1277 = vmatpush1.bf16.msra.mxu0 %v1158
        %1278 = vmatprep.subr.bf16.mxu0 %v1155
        %1279 = vmatpush1.bf16.msra.mxu0 %v1154
        %1280 = vmatprep.subr.bf16.mxu0 %v1151
        %1281 = vmatpush1.bf16.msra.mxu0 %v1150
        %1282 = vmatprep.subr.bf16.mxu0 %v1147
        %1283 = vmatpush1.bf16.msra.mxu0 %v1146
        %1284 = vmatprep.subr.bf16.mxu0 %v1143
        %1285 = vmatpush1.bf16.msra.mxu0 %v1142
        %1286 = vmatprep.subr.bf16.mxu0 %v1203
        %1287 = vmatpush2.bf16.msra.mxu0 %v1202
        %1288 = vmatprep.subr.bf16.mxu0 %v1199
        %1289 = vmatpush2.bf16.msra.mxu0 %v1198
        %1290 = vmatprep.subr.bf16.mxu0 %v1195
        %1291 = vmatpush2.bf16.msra.mxu0 %v1194
        %1292 = vmatprep.subr.bf16.mxu0 %v1191
        %1293 = vmatpush2.bf16.msra.mxu0 %v1190
        %1294 = vmatprep.subr.bf16.mxu0 %v1187
        %1295 = vmatpush2.bf16.msra.mxu0 %v1186
        %1296 = vmatprep.subr.bf16.mxu0 %v1183
        %1297 = vmatpush2.bf16.msra.mxu0 %v1182
        %1298 = vmatprep.subr.bf16.mxu0 %v1179
        %1299 = vmatpush2.bf16.msra.mxu0 %v1178
        %1300 = vmatprep.subr.bf16.mxu0 %v1175
        %1301 = vmatpush2.bf16.msra.mxu0 %v1174
        %1302 = vmatprep.mubr.bf16.mxu0 %v919
        %1303 = vmatmul.mubr.bf16.gmra.mxu0 %v918
        %v1304 = vpop.f32.mrf.mxu0
        %v1305 = vadd.f32 %v853, %v1304
        %v1306 = vpop.f32.mrf.mxu0
        %v1307 = vadd.f32 %v857, %v1306
        %v1308 = vpop.f32.mrf.mxu0
        %v1309 = vadd.f32 %v853, %v1308
        %v1310 = vpop.f32.mrf.mxu0
        %v1311 = vadd.f32 %v857, %v1310
        %1312 = vmatprep.mubr.bf16.mxu0 %v921
        %1313 = vmatmul.mubr.bf16.gmra.mxu0 %v920
        %v1314 = vpop.f32.mrf.mxu0
        %v1315 = vadd.f32 %v853, %v1314
        %v1316 = vpop.f32.mrf.mxu0
        %v1317 = vadd.f32 %v857, %v1316
        %v1318 = vpop.f32.mrf.mxu0
        %v1319 = vadd.f32 %v853, %v1318
        %v1320 = vpop.f32.mrf.mxu0
        %v1321 = vadd.f32 %v857, %v1320
        %1322 = vmatprep.mubr.bf16.mxu0 %v923
        %1323 = vmatmul.mubr.bf16.gmra.mxu0 %v922
        %v1324 = vpop.f32.mrf.mxu0
        %v1325 = vadd.f32 %v853, %v1324
        %v1326 = vpop.f32.mrf.mxu0
        %v1327 = vadd.f32 %v857, %v1326
        %v1328 = vpop.f32.mrf.mxu0
        %v1329 = vadd.f32 %v853, %v1328
        %v1330 = vpop.f32.mrf.mxu0
        %v1331 = vadd.f32 %v857, %v1330
        %1332 = vmatprep.mubr.bf16.mxu0 %v925
        %1333 = vmatmul.mubr.bf16.gmra.mxu0 %v924
        %v1334 = vpop.f32.mrf.mxu0
        %v1335 = vadd.f32 %v853, %v1334
        %v1336 = vpop.f32.mrf.mxu0
        %v1337 = vadd.f32 %v857, %v1336
        %v1338 = vpop.f32.mrf.mxu0
        %v1339 = vadd.f32 %v853, %v1338
        %v1340 = vpop.f32.mrf.mxu0
        %v1341 = vadd.f32 %v857, %v1340
        %1342 = vmatprep.mubr.bf16.mxu0 %v927
        %1343 = vmatmul.mubr.bf16.gmra.mxu0 %v926
        %v1344 = vpop.f32.mrf.mxu0
        %v1345 = vadd.f32 %v853, %v1344
        %v1346 = vpop.f32.mrf.mxu0
        %v1347 = vadd.f32 %v857, %v1346
        %v1348 = vpop.f32.mrf.mxu0
        %v1349 = vadd.f32 %v853, %v1348
        %v1350 = vpop.f32.mrf.mxu0
        %v1351 = vadd.f32 %v857, %v1350
        %1352 = vmatprep.mubr.bf16.mxu0 %v929
        %1353 = vmatmul.mubr.bf16.gmra.mxu0 %v928
        %v1354 = vpop.f32.mrf.mxu0
        %v1355 = vadd.f32 %v853, %v1354
        %v1356 = vpop.f32.mrf.mxu0
        %v1357 = vadd.f32 %v857, %v1356
        %v1358 = vpop.f32.mrf.mxu0
        %v1359 = vadd.f32 %v853, %v1358
        %v1360 = vpop.f32.mrf.mxu0
        %v1361 = vadd.f32 %v857, %v1360
        %1362 = vmatprep.mubr.bf16.mxu0 %v931
        %1363 = vmatmul.mubr.bf16.gmra.mxu0 %v930
        %v1364 = vpop.f32.mrf.mxu0
        %v1365 = vadd.f32 %v853, %v1364
        %v1366 = vpop.f32.mrf.mxu0
        %v1367 = vadd.f32 %v857, %v1366
        %v1368 = vpop.f32.mrf.mxu0
        %v1369 = vadd.f32 %v853, %v1368
        %v1370 = vpop.f32.mrf.mxu0
        %v1371 = vadd.f32 %v857, %v1370
        %1372 = vmatprep.mubr.bf16.mxu0 %v933
        %1373 = vmatmul.mubr.bf16.gmra.mxu0 %v932
        %v1374 = vpop.f32.mrf.mxu0
        %v1375 = vadd.f32 %v853, %v1374
        %v1376 = vpop.f32.mrf.mxu0
        %v1377 = vadd.f32 %v857, %v1376
        %v1378 = vpop.f32.mrf.mxu0
        %v1379 = vadd.f32 %v853, %v1378
        %v1380 = vpop.f32.mrf.mxu0
        %v1381 = vadd.f32 %v857, %v1380
        %1382 = vdwg.mxu0
        %1383 = vmatprep.subr.bf16.mxu0 %v1173
        %1384 = vmatpush1.bf16.msra.mxu0 %v1172
        %1385 = vmatprep.subr.bf16.mxu0 %v1169
        %1386 = vmatpush1.bf16.msra.mxu0 %v1168
        %1387 = vmatprep.subr.bf16.mxu0 %v1165
        %1388 = vmatpush1.bf16.msra.mxu0 %v1164
        %1389 = vmatprep.subr.bf16.mxu0 %v1161
        %1390 = vmatpush1.bf16.msra.mxu0 %v1160
        %1391 = vmatprep.subr.bf16.mxu0 %v1157
        %1392 = vmatpush1.bf16.msra.mxu0 %v1156
        %1393 = vmatprep.subr.bf16.mxu0 %v1153
        %1394 = vmatpush1.bf16.msra.mxu0 %v1152
        %1395 = vmatprep.subr.bf16.mxu0 %v1149
        %1396 = vmatpush1.bf16.msra.mxu0 %v1148
        %1397 = vmatprep.subr.bf16.mxu0 %v1145
        %1398 = vmatpush1.bf16.msra.mxu0 %v1144
        %1399 = vmatprep.subr.bf16.mxu0 %v1205
        %1400 = vmatpush2.bf16.msra.mxu0 %v1204
        %1401 = vmatprep.subr.bf16.mxu0 %v1201
        %1402 = vmatpush2.bf16.msra.mxu0 %v1200
        %1403 = vmatprep.subr.bf16.mxu0 %v1197
        %1404 = vmatpush2.bf16.msra.mxu0 %v1196
        %1405 = vmatprep.subr.bf16.mxu0 %v1193
        %1406 = vmatpush2.bf16.msra.mxu0 %v1192
        %1407 = vmatprep.subr.bf16.mxu0 %v1189
        %1408 = vmatpush2.bf16.msra.mxu0 %v1188
        %1409 = vmatprep.subr.bf16.mxu0 %v1185
        %1410 = vmatpush2.bf16.msra.mxu0 %v1184
        %1411 = vmatprep.subr.bf16.mxu0 %v1181
        %1412 = vmatpush2.bf16.msra.mxu0 %v1180
        %1413 = vmatprep.subr.bf16.mxu0 %v1177
        %1414 = vmatpush2.bf16.msra.mxu0 %v1176
        %1415 = vmatprep.mubr.bf16.mxu0 %v919
        %1416 = vmatmul.mubr.bf16.gmra.mxu0 %v918
        %v1417 = vpop.f32.mrf.mxu0
        %v1418 = vadd.f32 %v861, %v1417
        %v1419 = vpop.f32.mrf.mxu0
        %v1420 = vadd.f32 %v865, %v1419
        %v1421 = vpop.f32.mrf.mxu0
        %v1422 = vadd.f32 %v861, %v1421
        %v1423 = vpop.f32.mrf.mxu0
        %v1424 = vadd.f32 %v865, %v1423
        %1425 = vmatprep.mubr.bf16.mxu0 %v921
        %1426 = vmatmul.mubr.bf16.gmra.mxu0 %v920
        %v1427 = vpop.f32.mrf.mxu0
        %v1428 = vadd.f32 %v861, %v1427
        %v1429 = vpop.f32.mrf.mxu0
        %v1430 = vadd.f32 %v865, %v1429
        %v1431 = vpop.f32.mrf.mxu0
        %v1432 = vadd.f32 %v861, %v1431
        %v1433 = vpop.f32.mrf.mxu0
        %v1434 = vadd.f32 %v865, %v1433
        %1435 = vmatprep.mubr.bf16.mxu0 %v923
        %1436 = vmatmul.mubr.bf16.gmra.mxu0 %v922
        %v1437 = vpop.f32.mrf.mxu0
        %v1438 = vadd.f32 %v861, %v1437
        %v1439 = vpop.f32.mrf.mxu0
        %v1440 = vadd.f32 %v865, %v1439
        %v1441 = vpop.f32.mrf.mxu0
        %v1442 = vadd.f32 %v861, %v1441
        %v1443 = vpop.f32.mrf.mxu0
        %v1444 = vadd.f32 %v865, %v1443
        %1445 = vmatprep.mubr.bf16.mxu0 %v925
        %1446 = vmatmul.mubr.bf16.gmra.mxu0 %v924
        %v1447 = vpop.f32.mrf.mxu0
        %v1448 = vadd.f32 %v861, %v1447
        %v1449 = vpop.f32.mrf.mxu0
        %v1450 = vadd.f32 %v865, %v1449
        %v1451 = vpop.f32.mrf.mxu0
        %v1452 = vadd.f32 %v861, %v1451
        %v1453 = vpop.f32.mrf.mxu0
        %v1454 = vadd.f32 %v865, %v1453
        %1455 = vmatprep.mubr.bf16.mxu0 %v927
        %1456 = vmatmul.mubr.bf16.gmra.mxu0 %v926
        %v1457 = vpop.f32.mrf.mxu0
        %v1458 = vadd.f32 %v861, %v1457
        %v1459 = vpop.f32.mrf.mxu0
        %v1460 = vadd.f32 %v865, %v1459
        %v1461 = vpop.f32.mrf.mxu0
        %v1462 = vadd.f32 %v861, %v1461
        %v1463 = vpop.f32.mrf.mxu0
        %v1464 = vadd.f32 %v865, %v1463
        %1465 = vmatprep.mubr.bf16.mxu0 %v929
        %1466 = vmatmul.mubr.bf16.gmra.mxu0 %v928
        %v1467 = vpop.f32.mrf.mxu0
        %v1468 = vadd.f32 %v861, %v1467
        %v1469 = vpop.f32.mrf.mxu0
        %v1470 = vadd.f32 %v865, %v1469
        %v1471 = vpop.f32.mrf.mxu0
        %v1472 = vadd.f32 %v861, %v1471
        %v1473 = vpop.f32.mrf.mxu0
        %v1474 = vadd.f32 %v865, %v1473
        %1475 = vmatprep.mubr.bf16.mxu0 %v931
        %1476 = vmatmul.mubr.bf16.gmra.mxu0 %v930
        %v1477 = vpop.f32.mrf.mxu0
        %v1478 = vadd.f32 %v861, %v1477
        %v1479 = vpop.f32.mrf.mxu0
        %v1480 = vadd.f32 %v865, %v1479
        %v1481 = vpop.f32.mrf.mxu0
        %v1482 = vadd.f32 %v861, %v1481
        %v1483 = vpop.f32.mrf.mxu0
        %v1484 = vadd.f32 %v865, %v1483
        %1485 = vmatprep.mubr.bf16.mxu0 %v933
        %1486 = vmatmul.mubr.bf16.gmra.mxu0 %v932
        %v1487 = vpop.f32.mrf.mxu0
        %v1488 = vadd.f32 %v861, %v1487
        %v1489 = vpop.f32.mrf.mxu0
        %v1490 = vadd.f32 %v865, %v1489
        %v1491 = vpop.f32.mrf.mxu0
        %v1492 = vadd.f32 %v861, %v1491
        %v1493 = vpop.f32.mrf.mxu0
        %v1494 = vadd.f32 %v865, %v1493
        %1495 = vdwg.mxu0
        %v1496 = vmax.f32 %v1305, 0.0
        %v1497 = vmax.f32 %v1307, 0.0
        %v1498 = vmax.f32 %v1418, 0.0
        %v1499 = vmax.f32 %v1420, 0.0
        %v1500 = vmax.f32 %v1309, 0.0
        %v1501 = vmax.f32 %v1311, 0.0
        %v1502 = vmax.f32 %v1422, 0.0
        %v1503 = vmax.f32 %v1424, 0.0
        %v1504 = vmax.f32 %v1315, 0.0
        %v1505 = vmax.f32 %v1317, 0.0
        %v1506 = vmax.f32 %v1428, 0.0
        %v1507 = vmax.f32 %v1430, 0.0
        %v1508 = vmax.f32 %v1319, 0.0
        %v1509 = vmax.f32 %v1321, 0.0
        %v1510 = vmax.f32 %v1432, 0.0
        %v1511 = vmax.f32 %v1434, 0.0
        %v1512 = vmax.f32 %v1325, 0.0
        %v1513 = vmax.f32 %v1327, 0.0
        %v1514 = vmax.f32 %v1438, 0.0
        %v1515 = vmax.f32 %v1440, 0.0
        %v1516 = vmax.f32 %v1329, 0.0
        %v1517 = vmax.f32 %v1331, 0.0
        %v1518 = vmax.f32 %v1442, 0.0
        %v1519 = vmax.f32 %v1444, 0.0
        %v1520 = vmax.f32 %v1335, 0.0
        %v1521 = vmax.f32 %v1337, 0.0
        %v1522 = vmax.f32 %v1448, 0.0
        %v1523 = vmax.f32 %v1450, 0.0
        %v1524 = vmax.f32 %v1339, 0.0
        %v1525 = vmax.f32 %v1341, 0.0
        %v1526 = vmax.f32 %v1452, 0.0
        %v1527 = vmax.f32 %v1454, 0.0
        %v1528 = vmax.f32 %v1345, 0.0
        %v1529 = vmax.f32 %v1347, 0.0
        %v1530 = vmax.f32 %v1458, 0.0
        %v1531 = vmax.f32 %v1460, 0.0
        %v1532 = vmax.f32 %v1349, 0.0
        %v1533 = vmax.f32 %v1351, 0.0
        %v1534 = vmax.f32 %v1462, 0.0
        %v1535 = vmax.f32 %v1464, 0.0
        %v1536 = vmax.f32 %v1355, 0.0
        %v1537 = vmax.f32 %v1357, 0.0
        %v1538 = vmax.f32 %v1468, 0.0
        %v1539 = vmax.f32 %v1470, 0.0
        %v1540 = vmax.f32 %v1359, 0.0
        %v1541 = vmax.f32 %v1361, 0.0
        %v1542 = vmax.f32 %v1472, 0.0
        %v1543 = vmax.f32 %v1474, 0.0
        %v1544 = vmax.f32 %v1365, 0.0
        %v1545 = vmax.f32 %v1367, 0.0
        %v1546 = vmax.f32 %v1478, 0.0
        %v1547 = vmax.f32 %v1480, 0.0
        %v1548 = vmax.f32 %v1369, 0.0
        %v1549 = vmax.f32 %v1371, 0.0
        %v1550 = vmax.f32 %v1482, 0.0
        %v1551 = vmax.f32 %v1484, 0.0
        %v1552 = vmax.f32 %v1375, 0.0
        %v1553 = vmax.f32 %v1377, 0.0
        %v1554 = vmax.f32 %v1488, 0.0
        %v1555 = vmax.f32 %v1490, 0.0
        %v1556 = vmax.f32 %v1379, 0.0
        %v1557 = vmax.f32 %v1381, 0.0
        %v1558 = vmax.f32 %v1492, 0.0
        %v1559 = vmax.f32 %v1494, 0.0
        %v1560 = vpack.c.bf16 %v1500, %v1496
        %v1561 = vpack.c.bf16 %v1501, %v1497
        %v1562 = vpack.c.bf16 %v1502, %v1498
        %v1563 = vpack.c.bf16 %v1503, %v1499
        %v1564 = vpack.c.bf16 %v1508, %v1504
        %v1565 = vpack.c.bf16 %v1509, %v1505
        %v1566 = vpack.c.bf16 %v1510, %v1506
        %v1567 = vpack.c.bf16 %v1511, %v1507
        %v1568 = vpack.c.bf16 %v1516, %v1512
        %v1569 = vpack.c.bf16 %v1517, %v1513
        %v1570 = vpack.c.bf16 %v1518, %v1514
        %v1571 = vpack.c.bf16 %v1519, %v1515
        %v1572 = vpack.c.bf16 %v1524, %v1520
        %v1573 = vpack.c.bf16 %v1525, %v1521
        %v1574 = vpack.c.bf16 %v1526, %v1522
        %v1575 = vpack.c.bf16 %v1527, %v1523
        %v1576 = vpack.c.bf16 %v1532, %v1528
        %v1577 = vpack.c.bf16 %v1533, %v1529
        %v1578 = vpack.c.bf16 %v1534, %v1530
        %v1579 = vpack.c.bf16 %v1535, %v1531
        %v1580 = vpack.c.bf16 %v1540, %v1536
        %v1581 = vpack.c.bf16 %v1541, %v1537
        %v1582 = vpack.c.bf16 %v1542, %v1538
        %v1583 = vpack.c.bf16 %v1543, %v1539
        %v1584 = vpack.c.bf16 %v1548, %v1544
        %v1585 = vpack.c.bf16 %v1549, %v1545
        %v1586 = vpack.c.bf16 %v1550, %v1546
        %v1587 = vpack.c.bf16 %v1551, %v1547
        %v1588 = vpack.c.bf16 %v1556, %v1552
        %v1589 = vpack.c.bf16 %v1557, %v1553
        %v1590 = vpack.c.bf16 %v1558, %v1554
        %v1591 = vpack.c.bf16 %v1559, %v1555
        %v1592 = vld [vmem:[#allocation8] sm:$0xff]
        %v1593 = vld [vmem:[#allocation8 + $0x8] sm:$0xff]
        %v1594 = vld [vmem:[#allocation8 + $0x10] sm:$0xff]
        %v1595 = vld [vmem:[#allocation8 + $0x18] sm:$0xff]
        %v1596 = vld [vmem:[#allocation8 + $0x20] sm:$0xff]
        %v1597 = vld [vmem:[#allocation8 + $0x28] sm:$0xff]
        %v1598 = vld [vmem:[#allocation8 + $0x30] sm:$0xff]
        %v1599 = vld [vmem:[#allocation8 + $0x38] sm:$0xff]
        %v1600 = vld [vmem:[#allocation8 + $0x40] sm:$0xff]
        %v1601 = vld [vmem:[#allocation8 + $0x48] sm:$0xff]
        %v1602 = vld [vmem:[#allocation8 + $0x50] sm:$0xff]
        %v1603 = vld [vmem:[#allocation8 + $0x58] sm:$0xff]
        %v1604 = vld [vmem:[#allocation8 + $0x60] sm:$0xff]
        %v1605 = vld [vmem:[#allocation8 + $0x68] sm:$0xff]
        %v1606 = vld [vmem:[#allocation8 + $0x70] sm:$0xff]
        %v1607 = vld [vmem:[#allocation8 + $0x78] sm:$0xff]
        %v1608 = vld [vmem:[#allocation8 + $0x80] sm:$0xff]
        %v1609 = vld [vmem:[#allocation8 + $0x88] sm:$0xff]
        %v1610 = vld [vmem:[#allocation8 + $0x90] sm:$0xff]
        %v1611 = vld [vmem:[#allocation8 + $0x98] sm:$0xff]
        %v1612 = vld [vmem:[#allocation8 + $0xa0] sm:$0xff]
        %v1613 = vld [vmem:[#allocation8 + $0xa8] sm:$0xff]
        %v1614 = vld [vmem:[#allocation8 + $0xb0] sm:$0xff]
        %v1615 = vld [vmem:[#allocation8 + $0xb8] sm:$0xff]
        %v1616 = vld [vmem:[#allocation8 + $0xc0] sm:$0xff]
        %v1617 = vld [vmem:[#allocation8 + $0xc8] sm:$0xff]
        %v1618 = vld [vmem:[#allocation8 + $0xd0] sm:$0xff]
        %v1619 = vld [vmem:[#allocation8 + $0xd8] sm:$0xff]
        %v1620 = vld [vmem:[#allocation8 + $0xe0] sm:$0xff]
        %v1621 = vld [vmem:[#allocation8 + $0xe8] sm:$0xff]
        %v1622 = vld [vmem:[#allocation8 + $0xf0] sm:$0xff]
        %v1623 = vld [vmem:[#allocation8 + $0xf8] sm:$0xff]
        %v1624 = vld [vmem:[#allocation8 + $0x100] sm:$0xff]
        %v1625 = vld [vmem:[#allocation8 + $0x108] sm:$0xff]
        %v1626 = vld [vmem:[#allocation8 + $0x110] sm:$0xff]
        %v1627 = vld [vmem:[#allocation8 + $0x118] sm:$0xff]
        %v1628 = vld [vmem:[#allocation8 + $0x120] sm:$0xff]
        %v1629 = vld [vmem:[#allocation8 + $0x128] sm:$0xff]
        %v1630 = vld [vmem:[#allocation8 + $0x130] sm:$0xff]
        %v1631 = vld [vmem:[#allocation8 + $0x138] sm:$0xff]
        %v1632 = vld [vmem:[#allocation8 + $0x140] sm:$0xff]
        %v1633 = vld [vmem:[#allocation8 + $0x148] sm:$0xff]
        %v1634 = vld [vmem:[#allocation8 + $0x150] sm:$0xff]
        %v1635 = vld [vmem:[#allocation8 + $0x158] sm:$0xff]
        %v1636 = vld [vmem:[#allocation8 + $0x160] sm:$0xff]
        %v1637 = vld [vmem:[#allocation8 + $0x168] sm:$0xff]
        %v1638 = vld [vmem:[#allocation8 + $0x170] sm:$0xff]
        %v1639 = vld [vmem:[#allocation8 + $0x178] sm:$0xff]
        %v1640 = vld [vmem:[#allocation8 + $0x180] sm:$0xff]
        %v1641 = vld [vmem:[#allocation8 + $0x188] sm:$0xff]
        %v1642 = vld [vmem:[#allocation8 + $0x190] sm:$0xff]
        %v1643 = vld [vmem:[#allocation8 + $0x198] sm:$0xff]
        %v1644 = vld [vmem:[#allocation8 + $0x1a0] sm:$0xff]
        %v1645 = vld [vmem:[#allocation8 + $0x1a8] sm:$0xff]
        %v1646 = vld [vmem:[#allocation8 + $0x1b0] sm:$0xff]
        %v1647 = vld [vmem:[#allocation8 + $0x1b8] sm:$0xff]
        %v1648 = vld [vmem:[#allocation8 + $0x1c0] sm:$0xff]
        %v1649 = vld [vmem:[#allocation8 + $0x1c8] sm:$0xff]
        %v1650 = vld [vmem:[#allocation8 + $0x1d0] sm:$0xff]
        %v1651 = vld [vmem:[#allocation8 + $0x1d8] sm:$0xff]
        %v1652 = vld [vmem:[#allocation8 + $0x1e0] sm:$0xff]
        %v1653 = vld [vmem:[#allocation8 + $0x1e8] sm:$0xff]
        %v1654 = vld [vmem:[#allocation8 + $0x1f0] sm:$0xff]
        %v1655 = vld [vmem:[#allocation8 + $0x1f8] sm:$0xff]
        %v1656 = vld [vmem:[#allocation8 + $0x200] sm:$0xff]
        %v1657 = vld [vmem:[#allocation8 + $0x208] sm:$0xff]
        %v1658 = vld [vmem:[#allocation8 + $0x210] sm:$0xff]
        %v1659 = vld [vmem:[#allocation8 + $0x218] sm:$0xff]
        %v1660 = vld [vmem:[#allocation8 + $0x220] sm:$0xff]
        %v1661 = vld [vmem:[#allocation8 + $0x228] sm:$0xff]
        %v1662 = vld [vmem:[#allocation8 + $0x230] sm:$0xff]
        %v1663 = vld [vmem:[#allocation8 + $0x238] sm:$0xff]
        %v1664 = vld [vmem:[#allocation8 + $0x240] sm:$0xff]
        %v1665 = vld [vmem:[#allocation8 + $0x248] sm:$0xff]
        %v1666 = vld [vmem:[#allocation8 + $0x250] sm:$0xff]
        %v1667 = vld [vmem:[#allocation8 + $0x258] sm:$0xff]
        %v1668 = vld [vmem:[#allocation8 + $0x260] sm:$0xff]
        %v1669 = vld [vmem:[#allocation8 + $0x268] sm:$0xff]
        %v1670 = vld [vmem:[#allocation8 + $0x270] sm:$0xff]
        %v1671 = vld [vmem:[#allocation8 + $0x278] sm:$0xff]
        %v1672 = vld [vmem:[#allocation8 + $0x280] sm:$0xff]
        %v1673 = vld [vmem:[#allocation8 + $0x288] sm:$0xff]
        %v1674 = vld [vmem:[#allocation8 + $0x290] sm:$0xff]
        %v1675 = vld [vmem:[#allocation8 + $0x298] sm:$0xff]
        %v1676 = vld [vmem:[#allocation8 + $0x2a0] sm:$0xff]
        %v1677 = vld [vmem:[#allocation8 + $0x2a8] sm:$0xff]
        %v1678 = vld [vmem:[#allocation8 + $0x2b0] sm:$0xff]
        %v1679 = vld [vmem:[#allocation8 + $0x2b8] sm:$0xff]
        %v1680 = vld [vmem:[#allocation8 + $0x2c0] sm:$0xff]
        %v1681 = vld [vmem:[#allocation8 + $0x2c8] sm:$0xff]
        %v1682 = vld [vmem:[#allocation8 + $0x2d0] sm:$0xff]
        %v1683 = vld [vmem:[#allocation8 + $0x2d8] sm:$0xff]
        %v1684 = vld [vmem:[#allocation8 + $0x2e0] sm:$0xff]
        %v1685 = vld [vmem:[#allocation8 + $0x2e8] sm:$0xff]
        %v1686 = vld [vmem:[#allocation8 + $0x2f0] sm:$0xff]
        %v1687 = vld [vmem:[#allocation8 + $0x2f8] sm:$0xff]
        %v1688 = vld [vmem:[#allocation8 + $0x300] sm:$0xff]
        %v1689 = vld [vmem:[#allocation8 + $0x308] sm:$0xff]
        %v1690 = vld [vmem:[#allocation8 + $0x310] sm:$0xff]
        %v1691 = vld [vmem:[#allocation8 + $0x318] sm:$0xff]
        %v1692 = vld [vmem:[#allocation8 + $0x320] sm:$0xff]
        %v1693 = vld [vmem:[#allocation8 + $0x328] sm:$0xff]
        %v1694 = vld [vmem:[#allocation8 + $0x330] sm:$0xff]
        %v1695 = vld [vmem:[#allocation8 + $0x338] sm:$0xff]
        %v1696 = vld [vmem:[#allocation8 + $0x340] sm:$0xff]
        %v1697 = vld [vmem:[#allocation8 + $0x348] sm:$0xff]
        %v1698 = vld [vmem:[#allocation8 + $0x350] sm:$0xff]
        %v1699 = vld [vmem:[#allocation8 + $0x358] sm:$0xff]
        %v1700 = vld [vmem:[#allocation8 + $0x360] sm:$0xff]
        %v1701 = vld [vmem:[#allocation8 + $0x368] sm:$0xff]
        %v1702 = vld [vmem:[#allocation8 + $0x370] sm:$0xff]
        %v1703 = vld [vmem:[#allocation8 + $0x378] sm:$0xff]
        %v1704 = vld [vmem:[#allocation8 + $0x380] sm:$0xff]
        %v1705 = vld [vmem:[#allocation8 + $0x388] sm:$0xff]
        %v1706 = vld [vmem:[#allocation8 + $0x390] sm:$0xff]
        %v1707 = vld [vmem:[#allocation8 + $0x398] sm:$0xff]
        %v1708 = vld [vmem:[#allocation8 + $0x3a0] sm:$0xff]
        %v1709 = vld [vmem:[#allocation8 + $0x3a8] sm:$0xff]
        %v1710 = vld [vmem:[#allocation8 + $0x3b0] sm:$0xff]
        %v1711 = vld [vmem:[#allocation8 + $0x3b8] sm:$0xff]
        %v1712 = vld [vmem:[#allocation8 + $0x3c0] sm:$0xff]
        %v1713 = vld [vmem:[#allocation8 + $0x3c8] sm:$0xff]
        %v1714 = vld [vmem:[#allocation8 + $0x3d0] sm:$0xff]
        %v1715 = vld [vmem:[#allocation8 + $0x3d8] sm:$0xff]
        %v1716 = vld [vmem:[#allocation8 + $0x3e0] sm:$0xff]
        %v1717 = vld [vmem:[#allocation8 + $0x3e8] sm:$0xff]
        %v1718 = vld [vmem:[#allocation8 + $0x3f0] sm:$0xff]
        %v1719 = vld [vmem:[#allocation8 + $0x3f8] sm:$0xff]
        %v1720 = vld [vmem:[%s4] sm:$0xf]
        %v1722 = vlaneseq
        %v1723 = vshrl.u32 %v1722, 7
        %v1724 = vsub.s32 0, %v1723
        %v1725 = vrot.slane %v1720, %v1724
        %v1726 = vlaneseq
        %v1727 = vshrl.u32 %v1726, 7
        %v1728 = vsub.s32 1, %v1727
        %v1729 = vrot.slane %v1720, %v1728
        %v1730 = vlaneseq
        %v1731 = vshrl.u32 %v1730, 7
        %v1732 = vsub.s32 2, %v1731
        %v1733 = vrot.slane %v1720, %v1732
        %v1734 = vlaneseq
        %v1735 = vshrl.u32 %v1734, 7
        %v1736 = vsub.s32 3, %v1735
        %v1737 = vrot.slane %v1720, %v1736
        %v1870 = vunpack.c.l.b16 %v1592
        %v1871 = vunpack.c.h.b16 %v1592
        %v1872 = vunpack.c.l.b16 %v1593
        %v1873 = vunpack.c.h.b16 %v1593
        %v1874 = vunpack.c.l.b16 %v1594
        %v1875 = vunpack.c.h.b16 %v1594
        %v1876 = vunpack.c.l.b16 %v1595
        %v1877 = vunpack.c.h.b16 %v1595
        %v1878 = vunpack.c.l.b16 %v1596
        %v1879 = vunpack.c.h.b16 %v1596
        %v1880 = vunpack.c.l.b16 %v1597
        %v1881 = vunpack.c.h.b16 %v1597
        %v1882 = vunpack.c.l.b16 %v1598
        %v1883 = vunpack.c.h.b16 %v1598
        %v1884 = vunpack.c.l.b16 %v1599
        %v1885 = vunpack.c.h.b16 %v1599
        %v1886 = vunpack.c.l.b16 %v1600
        %v1887 = vunpack.c.h.b16 %v1600
        %v1888 = vunpack.c.l.b16 %v1601
        %v1889 = vunpack.c.h.b16 %v1601
        %v1890 = vunpack.c.l.b16 %v1602
        %v1891 = vunpack.c.h.b16 %v1602
        %v1892 = vunpack.c.l.b16 %v1603
        %v1893 = vunpack.c.h.b16 %v1603
        %v1894 = vunpack.c.l.b16 %v1604
        %v1895 = vunpack.c.h.b16 %v1604
        %v1896 = vunpack.c.l.b16 %v1605
        %v1897 = vunpack.c.h.b16 %v1605
        %v1898 = vunpack.c.l.b16 %v1606
        %v1899 = vunpack.c.h.b16 %v1606
        %v1900 = vunpack.c.l.b16 %v1607
        %v1901 = vunpack.c.h.b16 %v1607
        %v1902 = vunpack.c.l.b16 %v1608
        %v1903 = vunpack.c.h.b16 %v1608
        %v1904 = vunpack.c.l.b16 %v1609
        %v1905 = vunpack.c.h.b16 %v1609
        %v1906 = vunpack.c.l.b16 %v1610
        %v1907 = vunpack.c.h.b16 %v1610
        %v1908 = vunpack.c.l.b16 %v1611
        %v1909 = vunpack.c.h.b16 %v1611
        %v1910 = vunpack.c.l.b16 %v1612
        %v1911 = vunpack.c.h.b16 %v1612
        %v1912 = vunpack.c.l.b16 %v1613
        %v1913 = vunpack.c.h.b16 %v1613
        %v1914 = vunpack.c.l.b16 %v1614
        %v1915 = vunpack.c.h.b16 %v1614
        %v1916 = vunpack.c.l.b16 %v1615
        %v1917 = vunpack.c.h.b16 %v1615
        %v1918 = vunpack.c.l.b16 %v1616
        %v1919 = vunpack.c.h.b16 %v1616
        %v1920 = vunpack.c.l.b16 %v1617
        %v1921 = vunpack.c.h.b16 %v1617
        %v1922 = vunpack.c.l.b16 %v1618
        %v1923 = vunpack.c.h.b16 %v1618
        %v1924 = vunpack.c.l.b16 %v1619
        %v1925 = vunpack.c.h.b16 %v1619
        %v1926 = vunpack.c.l.b16 %v1620
        %v1927 = vunpack.c.h.b16 %v1620
        %v1928 = vunpack.c.l.b16 %v1621
        %v1929 = vunpack.c.h.b16 %v1621
        %v1930 = vunpack.c.l.b16 %v1622
        %v1931 = vunpack.c.h.b16 %v1622
        %v1932 = vunpack.c.l.b16 %v1623
        %v1933 = vunpack.c.h.b16 %v1623
        %v1934 = vunpack.c.l.b16 %v1624
        %v1935 = vunpack.c.h.b16 %v1624
        %v1936 = vunpack.c.l.b16 %v1625
        %v1937 = vunpack.c.h.b16 %v1625
        %v1938 = vunpack.c.l.b16 %v1626
        %v1939 = vunpack.c.h.b16 %v1626
        %v1940 = vunpack.c.l.b16 %v1627
        %v1941 = vunpack.c.h.b16 %v1627
        %v1942 = vunpack.c.l.b16 %v1628
        %v1943 = vunpack.c.h.b16 %v1628
        %v1944 = vunpack.c.l.b16 %v1629
        %v1945 = vunpack.c.h.b16 %v1629
        %v1946 = vunpack.c.l.b16 %v1630
        %v1947 = vunpack.c.h.b16 %v1630
        %v1948 = vunpack.c.l.b16 %v1631
        %v1949 = vunpack.c.h.b16 %v1631
        %v1950 = vunpack.c.l.b16 %v1632
        %v1951 = vunpack.c.h.b16 %v1632
        %v1952 = vunpack.c.l.b16 %v1633
        %v1953 = vunpack.c.h.b16 %v1633
        %v1954 = vunpack.c.l.b16 %v1634
        %v1955 = vunpack.c.h.b16 %v1634
        %v1956 = vunpack.c.l.b16 %v1635
        %v1957 = vunpack.c.h.b16 %v1635
        %v1958 = vunpack.c.l.b16 %v1636
        %v1959 = vunpack.c.h.b16 %v1636
        %v1960 = vunpack.c.l.b16 %v1637
        %v1961 = vunpack.c.h.b16 %v1637
        %v1962 = vunpack.c.l.b16 %v1638
        %v1963 = vunpack.c.h.b16 %v1638
        %v1964 = vunpack.c.l.b16 %v1639
        %v1965 = vunpack.c.h.b16 %v1639
        %v1966 = vunpack.c.l.b16 %v1640
        %v1967 = vunpack.c.h.b16 %v1640
        %v1968 = vunpack.c.l.b16 %v1641
        %v1969 = vunpack.c.h.b16 %v1641
        %v1970 = vunpack.c.l.b16 %v1642
        %v1971 = vunpack.c.h.b16 %v1642
        %v1972 = vunpack.c.l.b16 %v1643
        %v1973 = vunpack.c.h.b16 %v1643
        %v1974 = vunpack.c.l.b16 %v1644
        %v1975 = vunpack.c.h.b16 %v1644
        %v1976 = vunpack.c.l.b16 %v1645
        %v1977 = vunpack.c.h.b16 %v1645
        %v1978 = vunpack.c.l.b16 %v1646
        %v1979 = vunpack.c.h.b16 %v1646
        %v1980 = vunpack.c.l.b16 %v1647
        %v1981 = vunpack.c.h.b16 %v1647
        %v1982 = vunpack.c.l.b16 %v1648
        %v1983 = vunpack.c.h.b16 %v1648
        %v1984 = vunpack.c.l.b16 %v1649
        %v1985 = vunpack.c.h.b16 %v1649
        %v1986 = vunpack.c.l.b16 %v1650
        %v1987 = vunpack.c.h.b16 %v1650
        %v1988 = vunpack.c.l.b16 %v1651
        %v1989 = vunpack.c.h.b16 %v1651
        %v1990 = vunpack.c.l.b16 %v1652
        %v1991 = vunpack.c.h.b16 %v1652
        %v1992 = vunpack.c.l.b16 %v1653
        %v1993 = vunpack.c.h.b16 %v1653
        %v1994 = vunpack.c.l.b16 %v1654
        %v1995 = vunpack.c.h.b16 %v1654
        %v1996 = vunpack.c.l.b16 %v1655
        %v1997 = vunpack.c.h.b16 %v1655
        %v1998 = vunpack.c.l.b16 %v1656
        %v1999 = vunpack.c.h.b16 %v1656
        %v2000 = vunpack.c.l.b16 %v1657
        %v2001 = vunpack.c.h.b16 %v1657
        %v2002 = vunpack.c.l.b16 %v1658
        %v2003 = vunpack.c.h.b16 %v1658
        %v2004 = vunpack.c.l.b16 %v1659
        %v2005 = vunpack.c.h.b16 %v1659
        %v2006 = vunpack.c.l.b16 %v1660
        %v2007 = vunpack.c.h.b16 %v1660
        %v2008 = vunpack.c.l.b16 %v1661
        %v2009 = vunpack.c.h.b16 %v1661
        %v2010 = vunpack.c.l.b16 %v1662
        %v2011 = vunpack.c.h.b16 %v1662
        %v2012 = vunpack.c.l.b16 %v1663
        %v2013 = vunpack.c.h.b16 %v1663
        %v2014 = vunpack.c.l.b16 %v1664
        %v2015 = vunpack.c.h.b16 %v1664
        %v2016 = vunpack.c.l.b16 %v1665
        %v2017 = vunpack.c.h.b16 %v1665
        %v2018 = vunpack.c.l.b16 %v1666
        %v2019 = vunpack.c.h.b16 %v1666
        %v2020 = vunpack.c.l.b16 %v1667
        %v2021 = vunpack.c.h.b16 %v1667
        %v2022 = vunpack.c.l.b16 %v1668
        %v2023 = vunpack.c.h.b16 %v1668
        %v2024 = vunpack.c.l.b16 %v1669
        %v2025 = vunpack.c.h.b16 %v1669
        %v2026 = vunpack.c.l.b16 %v1670
        %v2027 = vunpack.c.h.b16 %v1670
        %v2028 = vunpack.c.l.b16 %v1671
        %v2029 = vunpack.c.h.b16 %v1671
        %v2030 = vunpack.c.l.b16 %v1672
        %v2031 = vunpack.c.h.b16 %v1672
        %v2032 = vunpack.c.l.b16 %v1673
        %v2033 = vunpack.c.h.b16 %v1673
        %v2034 = vunpack.c.l.b16 %v1674
        %v2035 = vunpack.c.h.b16 %v1674
        %v2036 = vunpack.c.l.b16 %v1675
        %v2037 = vunpack.c.h.b16 %v1675
        %v2038 = vunpack.c.l.b16 %v1676
        %v2039 = vunpack.c.h.b16 %v1676
        %v2040 = vunpack.c.l.b16 %v1677
        %v2041 = vunpack.c.h.b16 %v1677
        %v2042 = vunpack.c.l.b16 %v1678
        %v2043 = vunpack.c.h.b16 %v1678
        %v2044 = vunpack.c.l.b16 %v1679
        %v2045 = vunpack.c.h.b16 %v1679
        %v2046 = vunpack.c.l.b16 %v1680
        %v2047 = vunpack.c.h.b16 %v1680
        %v2048 = vunpack.c.l.b16 %v1681
        %v2049 = vunpack.c.h.b16 %v1681
        %v2050 = vunpack.c.l.b16 %v1682
        %v2051 = vunpack.c.h.b16 %v1682
        %v2052 = vunpack.c.l.b16 %v1683
        %v2053 = vunpack.c.h.b16 %v1683
        %v2054 = vunpack.c.l.b16 %v1684
        %v2055 = vunpack.c.h.b16 %v1684
        %v2056 = vunpack.c.l.b16 %v1685
        %v2057 = vunpack.c.h.b16 %v1685
        %v2058 = vunpack.c.l.b16 %v1686
        %v2059 = vunpack.c.h.b16 %v1686
        %v2060 = vunpack.c.l.b16 %v1687
        %v2061 = vunpack.c.h.b16 %v1687
        %v2062 = vunpack.c.l.b16 %v1688
        %v2063 = vunpack.c.h.b16 %v1688
        %v2064 = vunpack.c.l.b16 %v1689
        %v2065 = vunpack.c.h.b16 %v1689
        %v2066 = vunpack.c.l.b16 %v1690
        %v2067 = vunpack.c.h.b16 %v1690
        %v2068 = vunpack.c.l.b16 %v1691
        %v2069 = vunpack.c.h.b16 %v1691
        %v2070 = vunpack.c.l.b16 %v1692
        %v2071 = vunpack.c.h.b16 %v1692
        %v2072 = vunpack.c.l.b16 %v1693
        %v2073 = vunpack.c.h.b16 %v1693
        %v2074 = vunpack.c.l.b16 %v1694
        %v2075 = vunpack.c.h.b16 %v1694
        %v2076 = vunpack.c.l.b16 %v1695
        %v2077 = vunpack.c.h.b16 %v1695
        %v2078 = vunpack.c.l.b16 %v1696
        %v2079 = vunpack.c.h.b16 %v1696
        %v2080 = vunpack.c.l.b16 %v1697
        %v2081 = vunpack.c.h.b16 %v1697
        %v2082 = vunpack.c.l.b16 %v1698
        %v2083 = vunpack.c.h.b16 %v1698
        %v2084 = vunpack.c.l.b16 %v1699
        %v2085 = vunpack.c.h.b16 %v1699
        %v2086 = vunpack.c.l.b16 %v1700
        %v2087 = vunpack.c.h.b16 %v1700
        %v2088 = vunpack.c.l.b16 %v1701
        %v2089 = vunpack.c.h.b16 %v1701
        %v2090 = vunpack.c.l.b16 %v1702
        %v2091 = vunpack.c.h.b16 %v1702
        %v2092 = vunpack.c.l.b16 %v1703
        %v2093 = vunpack.c.h.b16 %v1703
        %v2094 = vunpack.c.l.b16 %v1704
        %v2095 = vunpack.c.h.b16 %v1704
        %v2096 = vunpack.c.l.b16 %v1705
        %v2097 = vunpack.c.h.b16 %v1705
        %v2098 = vunpack.c.l.b16 %v1706
        %v2099 = vunpack.c.h.b16 %v1706
        %v2100 = vunpack.c.l.b16 %v1707
        %v2101 = vunpack.c.h.b16 %v1707
        %v2102 = vunpack.c.l.b16 %v1708
        %v2103 = vunpack.c.h.b16 %v1708
        %v2104 = vunpack.c.l.b16 %v1709
        %v2105 = vunpack.c.h.b16 %v1709
        %v2106 = vunpack.c.l.b16 %v1710
        %v2107 = vunpack.c.h.b16 %v1710
        %v2108 = vunpack.c.l.b16 %v1711
        %v2109 = vunpack.c.h.b16 %v1711
        %v2110 = vunpack.c.l.b16 %v1712
        %v2111 = vunpack.c.h.b16 %v1712
        %v2112 = vunpack.c.l.b16 %v1713
        %v2113 = vunpack.c.h.b16 %v1713
        %v2114 = vunpack.c.l.b16 %v1714
        %v2115 = vunpack.c.h.b16 %v1714
        %v2116 = vunpack.c.l.b16 %v1715
        %v2117 = vunpack.c.h.b16 %v1715
        %v2118 = vunpack.c.l.b16 %v1716
        %v2119 = vunpack.c.h.b16 %v1716
        %v2120 = vunpack.c.l.b16 %v1717
        %v2121 = vunpack.c.h.b16 %v1717
        %v2122 = vunpack.c.l.b16 %v1718
        %v2123 = vunpack.c.h.b16 %v1718
        %v2124 = vunpack.c.l.b16 %v1719
        %v2125 = vunpack.c.h.b16 %v1719
        %v2126 = vpack.c.b16 %v1874, %v1870
        %v2127 = vpack.c.b16 %v1875, %v1871
        %v2128 = vpack.c.b16 %v1876, %v1872
        %v2129 = vpack.c.b16 %v1877, %v1873
        %v2130 = vpack.c.b16 %v1882, %v1878
        %v2131 = vpack.c.b16 %v1883, %v1879
        %v2132 = vpack.c.b16 %v1884, %v1880
        %v2133 = vpack.c.b16 %v1885, %v1881
        %v2134 = vpack.c.b16 %v1890, %v1886
        %v2135 = vpack.c.b16 %v1891, %v1887
        %v2136 = vpack.c.b16 %v1892, %v1888
        %v2137 = vpack.c.b16 %v1893, %v1889
        %v2138 = vpack.c.b16 %v1898, %v1894
        %v2139 = vpack.c.b16 %v1899, %v1895
        %v2140 = vpack.c.b16 %v1900, %v1896
        %v2141 = vpack.c.b16 %v1901, %v1897
        %v2142 = vpack.c.b16 %v1906, %v1902
        %v2143 = vpack.c.b16 %v1907, %v1903
        %v2144 = vpack.c.b16 %v1908, %v1904
        %v2145 = vpack.c.b16 %v1909, %v1905
        %v2146 = vpack.c.b16 %v1914, %v1910
        %v2147 = vpack.c.b16 %v1915, %v1911
        %v2148 = vpack.c.b16 %v1916, %v1912
        %v2149 = vpack.c.b16 %v1917, %v1913
        %v2150 = vpack.c.b16 %v1922, %v1918
        %v2151 = vpack.c.b16 %v1923, %v1919
        %v2152 = vpack.c.b16 %v1924, %v1920
        %v2153 = vpack.c.b16 %v1925, %v1921
        %v2154 = vpack.c.b16 %v1930, %v1926
        %v2155 = vpack.c.b16 %v1931, %v1927
        %v2156 = vpack.c.b16 %v1932, %v1928
        %v2157 = vpack.c.b16 %v1933, %v1929
        %v2158 = vpack.c.b16 %v1938, %v1934
        %v2159 = vpack.c.b16 %v1939, %v1935
        %v2160 = vpack.c.b16 %v1940, %v1936
        %v2161 = vpack.c.b16 %v1941, %v1937
        %v2162 = vpack.c.b16 %v1946, %v1942
        %v2163 = vpack.c.b16 %v1947, %v1943
        %v2164 = vpack.c.b16 %v1948, %v1944
        %v2165 = vpack.c.b16 %v1949, %v1945
        %v2166 = vpack.c.b16 %v1954, %v1950
        %v2167 = vpack.c.b16 %v1955, %v1951
        %v2168 = vpack.c.b16 %v1956, %v1952
        %v2169 = vpack.c.b16 %v1957, %v1953
        %v2170 = vpack.c.b16 %v1962, %v1958
        %v2171 = vpack.c.b16 %v1963, %v1959
        %v2172 = vpack.c.b16 %v1964, %v1960
        %v2173 = vpack.c.b16 %v1965, %v1961
        %v2174 = vpack.c.b16 %v1970, %v1966
        %v2175 = vpack.c.b16 %v1971, %v1967
        %v2176 = vpack.c.b16 %v1972, %v1968
        %v2177 = vpack.c.b16 %v1973, %v1969
        %v2178 = vpack.c.b16 %v1978, %v1974
        %v2179 = vpack.c.b16 %v1979, %v1975
        %v2180 = vpack.c.b16 %v1980, %v1976
        %v2181 = vpack.c.b16 %v1981, %v1977
        %v2182 = vpack.c.b16 %v1986, %v1982
        %v2183 = vpack.c.b16 %v1987, %v1983
        %v2184 = vpack.c.b16 %v1988, %v1984
        %v2185 = vpack.c.b16 %v1989, %v1985
        %v2186 = vpack.c.b16 %v1994, %v1990
        %v2187 = vpack.c.b16 %v1995, %v1991
        %v2188 = vpack.c.b16 %v1996, %v1992
        %v2189 = vpack.c.b16 %v1997, %v1993
        %v2190 = vpack.c.b16 %v2002, %v1998
        %v2191 = vpack.c.b16 %v2003, %v1999
        %v2192 = vpack.c.b16 %v2004, %v2000
        %v2193 = vpack.c.b16 %v2005, %v2001
        %v2194 = vpack.c.b16 %v2010, %v2006
        %v2195 = vpack.c.b16 %v2011, %v2007
        %v2196 = vpack.c.b16 %v2012, %v2008
        %v2197 = vpack.c.b16 %v2013, %v2009
        %v2198 = vpack.c.b16 %v2018, %v2014
        %v2199 = vpack.c.b16 %v2019, %v2015
        %v2200 = vpack.c.b16 %v2020, %v2016
        %v2201 = vpack.c.b16 %v2021, %v2017
        %v2202 = vpack.c.b16 %v2026, %v2022
        %v2203 = vpack.c.b16 %v2027, %v2023
        %v2204 = vpack.c.b16 %v2028, %v2024
        %v2205 = vpack.c.b16 %v2029, %v2025
        %v2206 = vpack.c.b16 %v2034, %v2030
        %v2207 = vpack.c.b16 %v2035, %v2031
        %v2208 = vpack.c.b16 %v2036, %v2032
        %v2209 = vpack.c.b16 %v2037, %v2033
        %v2210 = vpack.c.b16 %v2042, %v2038
        %v2211 = vpack.c.b16 %v2043, %v2039
        %v2212 = vpack.c.b16 %v2044, %v2040
        %v2213 = vpack.c.b16 %v2045, %v2041
        %v2214 = vpack.c.b16 %v2050, %v2046
        %v2215 = vpack.c.b16 %v2051, %v2047
        %v2216 = vpack.c.b16 %v2052, %v2048
        %v2217 = vpack.c.b16 %v2053, %v2049
        %v2218 = vpack.c.b16 %v2058, %v2054
        %v2219 = vpack.c.b16 %v2059, %v2055
        %v2220 = vpack.c.b16 %v2060, %v2056
        %v2221 = vpack.c.b16 %v2061, %v2057
        %v2222 = vpack.c.b16 %v2066, %v2062
        %v2223 = vpack.c.b16 %v2067, %v2063
        %v2224 = vpack.c.b16 %v2068, %v2064
        %v2225 = vpack.c.b16 %v2069, %v2065
        %v2226 = vpack.c.b16 %v2074, %v2070
        %v2227 = vpack.c.b16 %v2075, %v2071
        %v2228 = vpack.c.b16 %v2076, %v2072
        %v2229 = vpack.c.b16 %v2077, %v2073
        %v2230 = vpack.c.b16 %v2082, %v2078
        %v2231 = vpack.c.b16 %v2083, %v2079
        %v2232 = vpack.c.b16 %v2084, %v2080
        %v2233 = vpack.c.b16 %v2085, %v2081
        %v2234 = vpack.c.b16 %v2090, %v2086
        %v2235 = vpack.c.b16 %v2091, %v2087
        %v2236 = vpack.c.b16 %v2092, %v2088
        %v2237 = vpack.c.b16 %v2093, %v2089
        %v2238 = vpack.c.b16 %v2098, %v2094
        %v2239 = vpack.c.b16 %v2099, %v2095
        %v2240 = vpack.c.b16 %v2100, %v2096
        %v2241 = vpack.c.b16 %v2101, %v2097
        %v2242 = vpack.c.b16 %v2106, %v2102
        %v2243 = vpack.c.b16 %v2107, %v2103
        %v2244 = vpack.c.b16 %v2108, %v2104
        %v2245 = vpack.c.b16 %v2109, %v2105
        %v2246 = vpack.c.b16 %v2114, %v2110
        %v2247 = vpack.c.b16 %v2115, %v2111
        %v2248 = vpack.c.b16 %v2116, %v2112
        %v2249 = vpack.c.b16 %v2117, %v2113
        %v2250 = vpack.c.b16 %v2122, %v2118
        %v2251 = vpack.c.b16 %v2123, %v2119
        %v2252 = vpack.c.b16 %v2124, %v2120
        %v2253 = vpack.c.b16 %v2125, %v2121
        %2382 = vmatprep.subr.bf16.mxu0 %v2155
        %2383 = vmatpush1.bf16.msra.mxu0 %v2154
        %2384 = vmatprep.subr.bf16.mxu0 %v2151
        %2385 = vmatpush1.bf16.msra.mxu0 %v2150
        %2386 = vmatprep.subr.bf16.mxu0 %v2147
        %2387 = vmatpush1.bf16.msra.mxu0 %v2146
        %2388 = vmatprep.subr.bf16.mxu0 %v2143
        %2389 = vmatpush1.bf16.msra.mxu0 %v2142
        %2390 = vmatprep.subr.bf16.mxu0 %v2139
        %2391 = vmatpush1.bf16.msra.mxu0 %v2138
        %2392 = vmatprep.subr.bf16.mxu0 %v2135
        %2393 = vmatpush1.bf16.msra.mxu0 %v2134
        %2394 = vmatprep.subr.bf16.mxu0 %v2131
        %2395 = vmatpush1.bf16.msra.mxu0 %v2130
        %2396 = vmatprep.subr.bf16.mxu0 %v2127
        %2397 = vmatpush1.bf16.msra.mxu0 %v2126
        %2398 = vmatprep.subr.bf16.mxu0 %v2187
        %2399 = vmatpush2.bf16.msra.mxu0 %v2186
        %2400 = vmatprep.subr.bf16.mxu0 %v2183
        %2401 = vmatpush2.bf16.msra.mxu0 %v2182
        %2402 = vmatprep.subr.bf16.mxu0 %v2179
        %2403 = vmatpush2.bf16.msra.mxu0 %v2178
        %2404 = vmatprep.subr.bf16.mxu0 %v2175
        %2405 = vmatpush2.bf16.msra.mxu0 %v2174
        %2406 = vmatprep.subr.bf16.mxu0 %v2171
        %2407 = vmatpush2.bf16.msra.mxu0 %v2170
        %2408 = vmatprep.subr.bf16.mxu0 %v2167
        %2409 = vmatpush2.bf16.msra.mxu0 %v2166
        %2410 = vmatprep.subr.bf16.mxu0 %v2163
        %2411 = vmatpush2.bf16.msra.mxu0 %v2162
        %2412 = vmatprep.subr.bf16.mxu0 %v2159
        %2413 = vmatpush2.bf16.msra.mxu0 %v2158
        %2414 = vmatprep.mubr.bf16.mxu0 %v1561
        %2415 = vmatmul.mubr.bf16.gmra.mxu0 %v1560
        %v2416 = vpop.f32.mrf.mxu0
        %v2417 = vadd.f32 %v1725, %v2416
        %v2418 = vpop.f32.mrf.mxu0
        %v2419 = vadd.f32 %v1729, %v2418
        %v2420 = vpop.f32.mrf.mxu0
        %v2421 = vadd.f32 %v1725, %v2420
        %v2422 = vpop.f32.mrf.mxu0
        %v2423 = vadd.f32 %v1729, %v2422
        %2424 = vmatprep.mubr.bf16.mxu0 %v1565
        %2425 = vmatmul.mubr.bf16.gmra.mxu0 %v1564
        %v2426 = vpop.f32.mrf.mxu0
        %v2427 = vadd.f32 %v1725, %v2426
        %v2428 = vpop.f32.mrf.mxu0
        %v2429 = vadd.f32 %v1729, %v2428
        %v2430 = vpop.f32.mrf.mxu0
        %v2431 = vadd.f32 %v1725, %v2430
        %v2432 = vpop.f32.mrf.mxu0
        %v2433 = vadd.f32 %v1729, %v2432
        %2434 = vmatprep.mubr.bf16.mxu0 %v1569
        %2435 = vmatmul.mubr.bf16.gmra.mxu0 %v1568
        %v2436 = vpop.f32.mrf.mxu0
        %v2437 = vadd.f32 %v1725, %v2436
        %v2438 = vpop.f32.mrf.mxu0
        %v2439 = vadd.f32 %v1729, %v2438
        %v2440 = vpop.f32.mrf.mxu0
        %v2441 = vadd.f32 %v1725, %v2440
        %v2442 = vpop.f32.mrf.mxu0
        %v2443 = vadd.f32 %v1729, %v2442
        %2444 = vmatprep.mubr.bf16.mxu0 %v1573
        %2445 = vmatmul.mubr.bf16.gmra.mxu0 %v1572
        %v2446 = vpop.f32.mrf.mxu0
        %v2447 = vadd.f32 %v1725, %v2446
        %v2448 = vpop.f32.mrf.mxu0
        %v2449 = vadd.f32 %v1729, %v2448
        %v2450 = vpop.f32.mrf.mxu0
        %v2451 = vadd.f32 %v1725, %v2450
        %v2452 = vpop.f32.mrf.mxu0
        %v2453 = vadd.f32 %v1729, %v2452
        %2454 = vmatprep.mubr.bf16.mxu0 %v1577
        %2455 = vmatmul.mubr.bf16.gmra.mxu0 %v1576
        %v2456 = vpop.f32.mrf.mxu0
        %v2457 = vadd.f32 %v1725, %v2456
        %v2458 = vpop.f32.mrf.mxu0
        %v2459 = vadd.f32 %v1729, %v2458
        %v2460 = vpop.f32.mrf.mxu0
        %v2461 = vadd.f32 %v1725, %v2460
        %v2462 = vpop.f32.mrf.mxu0
        %v2463 = vadd.f32 %v1729, %v2462
        %2464 = vmatprep.mubr.bf16.mxu0 %v1581
        %2465 = vmatmul.mubr.bf16.gmra.mxu0 %v1580
        %v2466 = vpop.f32.mrf.mxu0
        %v2467 = vadd.f32 %v1725, %v2466
        %v2468 = vpop.f32.mrf.mxu0
        %v2469 = vadd.f32 %v1729, %v2468
        %v2470 = vpop.f32.mrf.mxu0
        %v2471 = vadd.f32 %v1725, %v2470
        %v2472 = vpop.f32.mrf.mxu0
        %v2473 = vadd.f32 %v1729, %v2472
        %2474 = vmatprep.mubr.bf16.mxu0 %v1585
        %2475 = vmatmul.mubr.bf16.gmra.mxu0 %v1584
        %v2476 = vpop.f32.mrf.mxu0
        %v2477 = vadd.f32 %v1725, %v2476
        %v2478 = vpop.f32.mrf.mxu0
        %v2479 = vadd.f32 %v1729, %v2478
        %v2480 = vpop.f32.mrf.mxu0
        %v2481 = vadd.f32 %v1725, %v2480
        %v2482 = vpop.f32.mrf.mxu0
        %v2483 = vadd.f32 %v1729, %v2482
        %2484 = vmatprep.mubr.bf16.mxu0 %v1589
        %2485 = vmatmul.mubr.bf16.gmra.mxu0 %v1588
        %v2486 = vpop.f32.mrf.mxu0
        %v2487 = vadd.f32 %v1725, %v2486
        %v2488 = vpop.f32.mrf.mxu0
        %v2489 = vadd.f32 %v1729, %v2488
        %v2490 = vpop.f32.mrf.mxu0
        %v2491 = vadd.f32 %v1725, %v2490
        %v2492 = vpop.f32.mrf.mxu0
        %v2493 = vadd.f32 %v1729, %v2492
        %2494 = vdwg.mxu0
        %2495 = vmatprep.subr.bf16.mxu0 %v2219
        %2496 = vmatpush1.bf16.msra.mxu0 %v2218
        %2497 = vmatprep.subr.bf16.mxu0 %v2215
        %2498 = vmatpush1.bf16.msra.mxu0 %v2214
        %2499 = vmatprep.subr.bf16.mxu0 %v2211
        %2500 = vmatpush1.bf16.msra.mxu0 %v2210
        %2501 = vmatprep.subr.bf16.mxu0 %v2207
        %2502 = vmatpush1.bf16.msra.mxu0 %v2206
        %2503 = vmatprep.subr.bf16.mxu0 %v2203
        %2504 = vmatpush1.bf16.msra.mxu0 %v2202
        %2505 = vmatprep.subr.bf16.mxu0 %v2199
        %2506 = vmatpush1.bf16.msra.mxu0 %v2198
        %2507 = vmatprep.subr.bf16.mxu0 %v2195
        %2508 = vmatpush1.bf16.msra.mxu0 %v2194
        %2509 = vmatprep.subr.bf16.mxu0 %v2191
        %2510 = vmatpush1.bf16.msra.mxu0 %v2190
        %2511 = vmatprep.subr.bf16.mxu0 %v2251
        %2512 = vmatpush2.bf16.msra.mxu0 %v2250
        %2513 = vmatprep.subr.bf16.mxu0 %v2247
        %2514 = vmatpush2.bf16.msra.mxu0 %v2246
        %2515 = vmatprep.subr.bf16.mxu0 %v2243
        %2516 = vmatpush2.bf16.msra.mxu0 %v2242
        %2517 = vmatprep.subr.bf16.mxu0 %v2239
        %2518 = vmatpush2.bf16.msra.mxu0 %v2238
        %2519 = vmatprep.subr.bf16.mxu0 %v2235
        %2520 = vmatpush2.bf16.msra.mxu0 %v2234
        %2521 = vmatprep.subr.bf16.mxu0 %v2231
        %2522 = vmatpush2.bf16.msra.mxu0 %v2230
        %2523 = vmatprep.subr.bf16.mxu0 %v2227
        %2524 = vmatpush2.bf16.msra.mxu0 %v2226
        %2525 = vmatprep.subr.bf16.mxu0 %v2223
        %2526 = vmatpush2.bf16.msra.mxu0 %v2222
        %2527 = vmatprep.mubr.bf16.mxu0 %v1563
        %2528 = vmatmul.mubr.bf16.gmra.mxu0 %v1562
        %v2529 = vpop.f32.mrf.mxu0
        %v2530 = vadd.f32 %v2417, %v2529
        %v2531 = vpop.f32.mrf.mxu0
        %v2532 = vadd.f32 %v2419, %v2531
        %v2533 = vpop.f32.mrf.mxu0
        %v2534 = vadd.f32 %v2421, %v2533
        %v2535 = vpop.f32.mrf.mxu0
        %v2536 = vadd.f32 %v2423, %v2535
        %2537 = vmatprep.mubr.bf16.mxu0 %v1567
        %2538 = vmatmul.mubr.bf16.gmra.mxu0 %v1566
        %v2539 = vpop.f32.mrf.mxu0
        %v2540 = vadd.f32 %v2427, %v2539
        %v2541 = vpop.f32.mrf.mxu0
        %v2542 = vadd.f32 %v2429, %v2541
        %v2543 = vpop.f32.mrf.mxu0
        %v2544 = vadd.f32 %v2431, %v2543
        %v2545 = vpop.f32.mrf.mxu0
        %v2546 = vadd.f32 %v2433, %v2545
        %2547 = vmatprep.mubr.bf16.mxu0 %v1571
        %2548 = vmatmul.mubr.bf16.gmra.mxu0 %v1570
        %v2549 = vpop.f32.mrf.mxu0
        %v2550 = vadd.f32 %v2437, %v2549
        %v2551 = vpop.f32.mrf.mxu0
        %v2552 = vadd.f32 %v2439, %v2551
        %v2553 = vpop.f32.mrf.mxu0
        %v2554 = vadd.f32 %v2441, %v2553
        %v2555 = vpop.f32.mrf.mxu0
        %v2556 = vadd.f32 %v2443, %v2555
        %2557 = vmatprep.mubr.bf16.mxu0 %v1575
        %2558 = vmatmul.mubr.bf16.gmra.mxu0 %v1574
        %v2559 = vpop.f32.mrf.mxu0
        %v2560 = vadd.f32 %v2447, %v2559
        %v2561 = vpop.f32.mrf.mxu0
        %v2562 = vadd.f32 %v2449, %v2561
        %v2563 = vpop.f32.mrf.mxu0
        %v2564 = vadd.f32 %v2451, %v2563
        %v2565 = vpop.f32.mrf.mxu0
        %v2566 = vadd.f32 %v2453, %v2565
        %2567 = vmatprep.mubr.bf16.mxu0 %v1579
        %2568 = vmatmul.mubr.bf16.gmra.mxu0 %v1578
        %v2569 = vpop.f32.mrf.mxu0
        %v2570 = vadd.f32 %v2457, %v2569
        %v2571 = vpop.f32.mrf.mxu0
        %v2572 = vadd.f32 %v2459, %v2571
        %v2573 = vpop.f32.mrf.mxu0
        %v2574 = vadd.f32 %v2461, %v2573
        %v2575 = vpop.f32.mrf.mxu0
        %v2576 = vadd.f32 %v2463, %v2575
        %2577 = vmatprep.mubr.bf16.mxu0 %v1583
        %2578 = vmatmul.mubr.bf16.gmra.mxu0 %v1582
        %v2579 = vpop.f32.mrf.mxu0
        %v2580 = vadd.f32 %v2467, %v2579
        %v2581 = vpop.f32.mrf.mxu0
        %v2582 = vadd.f32 %v2469, %v2581
        %v2583 = vpop.f32.mrf.mxu0
        %v2584 = vadd.f32 %v2471, %v2583
        %v2585 = vpop.f32.mrf.mxu0
        %v2586 = vadd.f32 %v2473, %v2585
        %2587 = vmatprep.mubr.bf16.mxu0 %v1587
        %2588 = vmatmul.mubr.bf16.gmra.mxu0 %v1586
        %v2589 = vpop.f32.mrf.mxu0
        %v2590 = vadd.f32 %v2477, %v2589
        %v2591 = vpop.f32.mrf.mxu0
        %v2592 = vadd.f32 %v2479, %v2591
        %v2593 = vpop.f32.mrf.mxu0
        %v2594 = vadd.f32 %v2481, %v2593
        %v2595 = vpop.f32.mrf.mxu0
        %v2596 = vadd.f32 %v2483, %v2595
        %2597 = vmatprep.mubr.bf16.mxu0 %v1591
        %2598 = vmatmul.mubr.bf16.gmra.mxu0 %v1590
        %v2599 = vpop.f32.mrf.mxu0
        %v2600 = vadd.f32 %v2487, %v2599
        %v2601 = vpop.f32.mrf.mxu0
        %v2602 = vadd.f32 %v2489, %v2601
        %v2603 = vpop.f32.mrf.mxu0
        %v2604 = vadd.f32 %v2491, %v2603
        %v2605 = vpop.f32.mrf.mxu0
        %v2606 = vadd.f32 %v2493, %v2605
        %2607 = vdwg.mxu0
        %2608 = vmatprep.subr.bf16.mxu0 %v2157
        %2609 = vmatpush1.bf16.msra.mxu0 %v2156
        %2610 = vmatprep.subr.bf16.mxu0 %v2153
        %2611 = vmatpush1.bf16.msra.mxu0 %v2152
        %2612 = vmatprep.subr.bf16.mxu0 %v2149
        %2613 = vmatpush1.bf16.msra.mxu0 %v2148
        %2614 = vmatprep.subr.bf16.mxu0 %v2145
        %2615 = vmatpush1.bf16.msra.mxu0 %v2144
        %2616 = vmatprep.subr.bf16.mxu0 %v2141
        %2617 = vmatpush1.bf16.msra.mxu0 %v2140
        %2618 = vmatprep.subr.bf16.mxu0 %v2137
        %2619 = vmatpush1.bf16.msra.mxu0 %v2136
        %2620 = vmatprep.subr.bf16.mxu0 %v2133
        %2621 = vmatpush1.bf16.msra.mxu0 %v2132
        %2622 = vmatprep.subr.bf16.mxu0 %v2129
        %2623 = vmatpush1.bf16.msra.mxu0 %v2128
        %2624 = vmatprep.subr.bf16.mxu0 %v2189
        %2625 = vmatpush2.bf16.msra.mxu0 %v2188
        %2626 = vmatprep.subr.bf16.mxu0 %v2185
        %2627 = vmatpush2.bf16.msra.mxu0 %v2184
        %2628 = vmatprep.subr.bf16.mxu0 %v2181
        %2629 = vmatpush2.bf16.msra.mxu0 %v2180
        %2630 = vmatprep.subr.bf16.mxu0 %v2177
        %2631 = vmatpush2.bf16.msra.mxu0 %v2176
        %2632 = vmatprep.subr.bf16.mxu0 %v2173
        %2633 = vmatpush2.bf16.msra.mxu0 %v2172
        %2634 = vmatprep.subr.bf16.mxu0 %v2169
        %2635 = vmatpush2.bf16.msra.mxu0 %v2168
        %2636 = vmatprep.subr.bf16.mxu0 %v2165
        %2637 = vmatpush2.bf16.msra.mxu0 %v2164
        %2638 = vmatprep.subr.bf16.mxu0 %v2161
        %2639 = vmatpush2.bf16.msra.mxu0 %v2160
        %2640 = vmatprep.mubr.bf16.mxu0 %v1561
        %2641 = vmatmul.mubr.bf16.gmra.mxu0 %v1560
        %v2642 = vpop.f32.mrf.mxu0
        %v2643 = vadd.f32 %v1733, %v2642
        %v2644 = vpop.f32.mrf.mxu0
        %v2645 = vadd.f32 %v1737, %v2644
        %v2646 = vpop.f32.mrf.mxu0
        %v2647 = vadd.f32 %v1733, %v2646
        %v2648 = vpop.f32.mrf.mxu0
        %v2649 = vadd.f32 %v1737, %v2648
        %2650 = vmatprep.mubr.bf16.mxu0 %v1565
        %2651 = vmatmul.mubr.bf16.gmra.mxu0 %v1564
        %v2652 = vpop.f32.mrf.mxu0
        %v2653 = vadd.f32 %v1733, %v2652
        %v2654 = vpop.f32.mrf.mxu0
        %v2655 = vadd.f32 %v1737, %v2654
        %v2656 = vpop.f32.mrf.mxu0
        %v2657 = vadd.f32 %v1733, %v2656
        %v2658 = vpop.f32.mrf.mxu0
        %v2659 = vadd.f32 %v1737, %v2658
        %2660 = vmatprep.mubr.bf16.mxu0 %v1569
        %2661 = vmatmul.mubr.bf16.gmra.mxu0 %v1568
        %v2662 = vpop.f32.mrf.mxu0
        %v2663 = vadd.f32 %v1733, %v2662
        %v2664 = vpop.f32.mrf.mxu0
        %v2665 = vadd.f32 %v1737, %v2664
        %v2666 = vpop.f32.mrf.mxu0
        %v2667 = vadd.f32 %v1733, %v2666
        %v2668 = vpop.f32.mrf.mxu0
        %v2669 = vadd.f32 %v1737, %v2668
        %2670 = vmatprep.mubr.bf16.mxu0 %v1573
        %2671 = vmatmul.mubr.bf16.gmra.mxu0 %v1572
        %v2672 = vpop.f32.mrf.mxu0
        %v2673 = vadd.f32 %v1733, %v2672
        %v2674 = vpop.f32.mrf.mxu0
        %v2675 = vadd.f32 %v1737, %v2674
        %v2676 = vpop.f32.mrf.mxu0
        %v2677 = vadd.f32 %v1733, %v2676
        %v2678 = vpop.f32.mrf.mxu0
        %v2679 = vadd.f32 %v1737, %v2678
        %2680 = vmatprep.mubr.bf16.mxu0 %v1577
        %2681 = vmatmul.mubr.bf16.gmra.mxu0 %v1576
        %v2682 = vpop.f32.mrf.mxu0
        %v2683 = vadd.f32 %v1733, %v2682
        %v2684 = vpop.f32.mrf.mxu0
        %v2685 = vadd.f32 %v1737, %v2684
        %v2686 = vpop.f32.mrf.mxu0
        %v2687 = vadd.f32 %v1733, %v2686
        %v2688 = vpop.f32.mrf.mxu0
        %v2689 = vadd.f32 %v1737, %v2688
        %2690 = vmatprep.mubr.bf16.mxu0 %v1581
        %2691 = vmatmul.mubr.bf16.gmra.mxu0 %v1580
        %v2692 = vpop.f32.mrf.mxu0
        %v2693 = vadd.f32 %v1733, %v2692
        %v2694 = vpop.f32.mrf.mxu0
        %v2695 = vadd.f32 %v1737, %v2694
        %v2696 = vpop.f32.mrf.mxu0
        %v2697 = vadd.f32 %v1733, %v2696
        %v2698 = vpop.f32.mrf.mxu0
        %v2699 = vadd.f32 %v1737, %v2698
        %2700 = vmatprep.mubr.bf16.mxu0 %v1585
        %2701 = vmatmul.mubr.bf16.gmra.mxu0 %v1584
        %v2702 = vpop.f32.mrf.mxu0
        %v2703 = vadd.f32 %v1733, %v2702
        %v2704 = vpop.f32.mrf.mxu0
        %v2705 = vadd.f32 %v1737, %v2704
        %v2706 = vpop.f32.mrf.mxu0
        %v2707 = vadd.f32 %v1733, %v2706
        %v2708 = vpop.f32.mrf.mxu0
        %v2709 = vadd.f32 %v1737, %v2708
        %2710 = vmatprep.mubr.bf16.mxu0 %v1589
        %2711 = vmatmul.mubr.bf16.gmra.mxu0 %v1588
        %v2712 = vpop.f32.mrf.mxu0
        %v2713 = vadd.f32 %v1733, %v2712
        %v2714 = vpop.f32.mrf.mxu0
        %v2715 = vadd.f32 %v1737, %v2714
        %v2716 = vpop.f32.mrf.mxu0
        %v2717 = vadd.f32 %v1733, %v2716
        %v2718 = vpop.f32.mrf.mxu0
        %v2719 = vadd.f32 %v1737, %v2718
        %2720 = vdwg.mxu0
        %2721 = vmatprep.subr.bf16.mxu0 %v2221
        %2722 = vmatpush1.bf16.msra.mxu0 %v2220
        %2723 = vmatprep.subr.bf16.mxu0 %v2217
        %2724 = vmatpush1.bf16.msra.mxu0 %v2216
        %2725 = vmatprep.subr.bf16.mxu0 %v2213
        %2726 = vmatpush1.bf16.msra.mxu0 %v2212
        %2727 = vmatprep.subr.bf16.mxu0 %v2209
        %2728 = vmatpush1.bf16.msra.mxu0 %v2208
        %2729 = vmatprep.subr.bf16.mxu0 %v2205
        %2730 = vmatpush1.bf16.msra.mxu0 %v2204
        %2731 = vmatprep.subr.bf16.mxu0 %v2201
        %2732 = vmatpush1.bf16.msra.mxu0 %v2200
        %2733 = vmatprep.subr.bf16.mxu0 %v2197
        %2734 = vmatpush1.bf16.msra.mxu0 %v2196
        %2735 = vmatprep.subr.bf16.mxu0 %v2193
        %2736 = vmatpush1.bf16.msra.mxu0 %v2192
        %2737 = vmatprep.subr.bf16.mxu0 %v2253
        %2738 = vmatpush2.bf16.msra.mxu0 %v2252
        %2739 = vmatprep.subr.bf16.mxu0 %v2249
        %2740 = vmatpush2.bf16.msra.mxu0 %v2248
        %2741 = vmatprep.subr.bf16.mxu0 %v2245
        %2742 = vmatpush2.bf16.msra.mxu0 %v2244
        %2743 = vmatprep.subr.bf16.mxu0 %v2241
        %2744 = vmatpush2.bf16.msra.mxu0 %v2240
        %2745 = vmatprep.subr.bf16.mxu0 %v2237
        %2746 = vmatpush2.bf16.msra.mxu0 %v2236
        %2747 = vmatprep.subr.bf16.mxu0 %v2233
        %2748 = vmatpush2.bf16.msra.mxu0 %v2232
        %2749 = vmatprep.subr.bf16.mxu0 %v2229
        %2750 = vmatpush2.bf16.msra.mxu0 %v2228
        %2751 = vmatprep.subr.bf16.mxu0 %v2225
        %2752 = vmatpush2.bf16.msra.mxu0 %v2224
        %2753 = vmatprep.mubr.bf16.mxu0 %v1563
        %2754 = vmatmul.mubr.bf16.gmra.mxu0 %v1562
        %v2755 = vpop.f32.mrf.mxu0
        %v2756 = vadd.f32 %v2643, %v2755
        %v2757 = vpop.f32.mrf.mxu0
        %v2758 = vadd.f32 %v2645, %v2757
        %v2759 = vpop.f32.mrf.mxu0
        %v2760 = vadd.f32 %v2647, %v2759
        %v2761 = vpop.f32.mrf.mxu0
        %v2762 = vadd.f32 %v2649, %v2761
        %2763 = vmatprep.mubr.bf16.mxu0 %v1567
        %2764 = vmatmul.mubr.bf16.gmra.mxu0 %v1566
        %v2765 = vpop.f32.mrf.mxu0
        %v2766 = vadd.f32 %v2653, %v2765
        %v2767 = vpop.f32.mrf.mxu0
        %v2768 = vadd.f32 %v2655, %v2767
        %v2769 = vpop.f32.mrf.mxu0
        %v2770 = vadd.f32 %v2657, %v2769
        %v2771 = vpop.f32.mrf.mxu0
        %v2772 = vadd.f32 %v2659, %v2771
        %2773 = vmatprep.mubr.bf16.mxu0 %v1571
        %2774 = vmatmul.mubr.bf16.gmra.mxu0 %v1570
        %v2775 = vpop.f32.mrf.mxu0
        %v2776 = vadd.f32 %v2663, %v2775
        %v2777 = vpop.f32.mrf.mxu0
        %v2778 = vadd.f32 %v2665, %v2777
        %v2779 = vpop.f32.mrf.mxu0
        %v2780 = vadd.f32 %v2667, %v2779
        %v2781 = vpop.f32.mrf.mxu0
        %v2782 = vadd.f32 %v2669, %v2781
        %2783 = vmatprep.mubr.bf16.mxu0 %v1575
        %2784 = vmatmul.mubr.bf16.gmra.mxu0 %v1574
        %v2785 = vpop.f32.mrf.mxu0
        %v2786 = vadd.f32 %v2673, %v2785
        %v2787 = vpop.f32.mrf.mxu0
        %v2788 = vadd.f32 %v2675, %v2787
        %v2789 = vpop.f32.mrf.mxu0
        %v2790 = vadd.f32 %v2677, %v2789
        %v2791 = vpop.f32.mrf.mxu0
        %v2792 = vadd.f32 %v2679, %v2791
        %2793 = vmatprep.mubr.bf16.mxu0 %v1579
        %2794 = vmatmul.mubr.bf16.gmra.mxu0 %v1578
        %v2795 = vpop.f32.mrf.mxu0
        %v2796 = vadd.f32 %v2683, %v2795
        %v2797 = vpop.f32.mrf.mxu0
        %v2798 = vadd.f32 %v2685, %v2797
        %v2799 = vpop.f32.mrf.mxu0
        %v2800 = vadd.f32 %v2687, %v2799
        %v2801 = vpop.f32.mrf.mxu0
        %v2802 = vadd.f32 %v2689, %v2801
        %2803 = vmatprep.mubr.bf16.mxu0 %v1583
        %2804 = vmatmul.mubr.bf16.gmra.mxu0 %v1582
        %v2805 = vpop.f32.mrf.mxu0
        %v2806 = vadd.f32 %v2693, %v2805
        %v2807 = vpop.f32.mrf.mxu0
        %v2808 = vadd.f32 %v2695, %v2807
        %v2809 = vpop.f32.mrf.mxu0
        %v2810 = vadd.f32 %v2697, %v2809
        %v2811 = vpop.f32.mrf.mxu0
        %v2812 = vadd.f32 %v2699, %v2811
        %2813 = vmatprep.mubr.bf16.mxu0 %v1587
        %2814 = vmatmul.mubr.bf16.gmra.mxu0 %v1586
        %v2815 = vpop.f32.mrf.mxu0
        %v2816 = vadd.f32 %v2703, %v2815
        %v2817 = vpop.f32.mrf.mxu0
        %v2818 = vadd.f32 %v2705, %v2817
        %v2819 = vpop.f32.mrf.mxu0
        %v2820 = vadd.f32 %v2707, %v2819
        %v2821 = vpop.f32.mrf.mxu0
        %v2822 = vadd.f32 %v2709, %v2821
        %2823 = vmatprep.mubr.bf16.mxu0 %v1591
        %2824 = vmatmul.mubr.bf16.gmra.mxu0 %v1590
        %v2825 = vpop.f32.mrf.mxu0
        %v2826 = vadd.f32 %v2713, %v2825
        %v2827 = vpop.f32.mrf.mxu0
        %v2828 = vadd.f32 %v2715, %v2827
        %v2829 = vpop.f32.mrf.mxu0
        %v2830 = vadd.f32 %v2717, %v2829
        %v2831 = vpop.f32.mrf.mxu0
        %v2832 = vadd.f32 %v2719, %v2831
        %2833 = vdwg.mxu0
        %v2834 = vmax.f32 %v2530, 0.0
        %v2835 = vmax.f32 %v2532, 0.0
        %v2836 = vmax.f32 %v2756, 0.0
        %v2837 = vmax.f32 %v2758, 0.0
        %v2838 = vmax.f32 %v2534, 0.0
        %v2839 = vmax.f32 %v2536, 0.0
        %v2840 = vmax.f32 %v2760, 0.0
        %v2841 = vmax.f32 %v2762, 0.0
        %v2842 = vmax.f32 %v2540, 0.0
        %v2843 = vmax.f32 %v2542, 0.0
        %v2844 = vmax.f32 %v2766, 0.0
        %v2845 = vmax.f32 %v2768, 0.0
        %v2846 = vmax.f32 %v2544, 0.0
        %v2847 = vmax.f32 %v2546, 0.0
        %v2848 = vmax.f32 %v2770, 0.0
        %v2849 = vmax.f32 %v2772, 0.0
        %v2850 = vmax.f32 %v2550, 0.0
        %v2851 = vmax.f32 %v2552, 0.0
        %v2852 = vmax.f32 %v2776, 0.0
        %v2853 = vmax.f32 %v2778, 0.0
        %v2854 = vmax.f32 %v2554, 0.0
        %v2855 = vmax.f32 %v2556, 0.0
        %v2856 = vmax.f32 %v2780, 0.0
        %v2857 = vmax.f32 %v2782, 0.0
        %v2858 = vmax.f32 %v2560, 0.0
        %v2859 = vmax.f32 %v2562, 0.0
        %v2860 = vmax.f32 %v2786, 0.0
        %v2861 = vmax.f32 %v2788, 0.0
        %v2862 = vmax.f32 %v2564, 0.0
        %v2863 = vmax.f32 %v2566, 0.0
        %v2864 = vmax.f32 %v2790, 0.0
        %v2865 = vmax.f32 %v2792, 0.0
        %v2866 = vmax.f32 %v2570, 0.0
        %v2867 = vmax.f32 %v2572, 0.0
        %v2868 = vmax.f32 %v2796, 0.0
        %v2869 = vmax.f32 %v2798, 0.0
        %v2870 = vmax.f32 %v2574, 0.0
        %v2871 = vmax.f32 %v2576, 0.0
        %v2872 = vmax.f32 %v2800, 0.0
        %v2873 = vmax.f32 %v2802, 0.0
        %v2874 = vmax.f32 %v2580, 0.0
        %v2875 = vmax.f32 %v2582, 0.0
        %v2876 = vmax.f32 %v2806, 0.0
        %v2877 = vmax.f32 %v2808, 0.0
        %v2878 = vmax.f32 %v2584, 0.0
        %v2879 = vmax.f32 %v2586, 0.0
        %v2880 = vmax.f32 %v2810, 0.0
        %v2881 = vmax.f32 %v2812, 0.0
        %v2882 = vmax.f32 %v2590, 0.0
        %v2883 = vmax.f32 %v2592, 0.0
        %v2884 = vmax.f32 %v2816, 0.0
        %v2885 = vmax.f32 %v2818, 0.0
        %v2886 = vmax.f32 %v2594, 0.0
        %v2887 = vmax.f32 %v2596, 0.0
        %v2888 = vmax.f32 %v2820, 0.0
        %v2889 = vmax.f32 %v2822, 0.0
        %v2890 = vmax.f32 %v2600, 0.0
        %v2891 = vmax.f32 %v2602, 0.0
        %v2892 = vmax.f32 %v2826, 0.0
        %v2893 = vmax.f32 %v2828, 0.0
        %v2894 = vmax.f32 %v2604, 0.0
        %v2895 = vmax.f32 %v2606, 0.0
        %v2896 = vmax.f32 %v2830, 0.0
        %v2897 = vmax.f32 %v2832, 0.0
        %v2898 = vpack.c.bf16 %v2838, %v2834
        %v2899 = vpack.c.bf16 %v2839, %v2835
        %v2900 = vpack.c.bf16 %v2840, %v2836
        %v2901 = vpack.c.bf16 %v2841, %v2837
        %v2902 = vpack.c.bf16 %v2846, %v2842
        %v2903 = vpack.c.bf16 %v2847, %v2843
        %v2904 = vpack.c.bf16 %v2848, %v2844
        %v2905 = vpack.c.bf16 %v2849, %v2845
        %v2906 = vpack.c.bf16 %v2854, %v2850
        %v2907 = vpack.c.bf16 %v2855, %v2851
        %v2908 = vpack.c.bf16 %v2856, %v2852
        %v2909 = vpack.c.bf16 %v2857, %v2853
        %v2910 = vpack.c.bf16 %v2862, %v2858
        %v2911 = vpack.c.bf16 %v2863, %v2859
        %v2912 = vpack.c.bf16 %v2864, %v2860
        %v2913 = vpack.c.bf16 %v2865, %v2861
        %v2914 = vpack.c.bf16 %v2870, %v2866
        %v2915 = vpack.c.bf16 %v2871, %v2867
        %v2916 = vpack.c.bf16 %v2872, %v2868
        %v2917 = vpack.c.bf16 %v2873, %v2869
        %v2918 = vpack.c.bf16 %v2878, %v2874
        %v2919 = vpack.c.bf16 %v2879, %v2875
        %v2920 = vpack.c.bf16 %v2880, %v2876
        %v2921 = vpack.c.bf16 %v2881, %v2877
        %v2922 = vpack.c.bf16 %v2886, %v2882
        %v2923 = vpack.c.bf16 %v2887, %v2883
        %v2924 = vpack.c.bf16 %v2888, %v2884
        %v2925 = vpack.c.bf16 %v2889, %v2885
        %v2926 = vpack.c.bf16 %v2894, %v2890
        %v2927 = vpack.c.bf16 %v2895, %v2891
        %v2928 = vpack.c.bf16 %v2896, %v2892
        %v2929 = vpack.c.bf16 %v2897, %v2893
        %v2930 = vld [vmem:[#allocation10] sm:$0xff]
        %v2931 = vld [vmem:[#allocation10 + $0x8] sm:$0xff]
        %v2932 = vld [vmem:[#allocation10 + $0x10] sm:$0xff]
        %v2933 = vld [vmem:[#allocation10 + $0x18] sm:$0xff]
        %v2934 = vld [vmem:[#allocation10 + $0x20] sm:$0xff]
        %v2935 = vld [vmem:[#allocation10 + $0x28] sm:$0xff]
        %v2936 = vld [vmem:[#allocation10 + $0x30] sm:$0xff]
        %v2937 = vld [vmem:[#allocation10 + $0x38] sm:$0xff]
        %v2938 = vld [vmem:[#allocation10 + $0x40] sm:$0xff]
        %v2939 = vld [vmem:[#allocation10 + $0x48] sm:$0xff]
        %v2940 = vld [vmem:[#allocation10 + $0x50] sm:$0xff]
        %v2941 = vld [vmem:[#allocation10 + $0x58] sm:$0xff]
        %v2942 = vld [vmem:[#allocation10 + $0x60] sm:$0xff]
        %v2943 = vld [vmem:[#allocation10 + $0x68] sm:$0xff]
        %v2944 = vld [vmem:[#allocation10 + $0x70] sm:$0xff]
        %v2945 = vld [vmem:[#allocation10 + $0x78] sm:$0xff]
        %v2946 = vld [vmem:[#allocation10 + $0x80] sm:$0xff]
        %v2947 = vld [vmem:[#allocation10 + $0x88] sm:$0xff]
        %v2948 = vld [vmem:[#allocation10 + $0x90] sm:$0xff]
        %v2949 = vld [vmem:[#allocation10 + $0x98] sm:$0xff]
        %v2950 = vld [vmem:[#allocation10 + $0xa0] sm:$0xff]
        %v2951 = vld [vmem:[#allocation10 + $0xa8] sm:$0xff]
        %v2952 = vld [vmem:[#allocation10 + $0xb0] sm:$0xff]
        %v2953 = vld [vmem:[#allocation10 + $0xb8] sm:$0xff]
        %v2954 = vld [vmem:[#allocation10 + $0xc0] sm:$0xff]
        %v2955 = vld [vmem:[#allocation10 + $0xc8] sm:$0xff]
        %v2956 = vld [vmem:[#allocation10 + $0xd0] sm:$0xff]
        %v2957 = vld [vmem:[#allocation10 + $0xd8] sm:$0xff]
        %v2958 = vld [vmem:[#allocation10 + $0xe0] sm:$0xff]
        %v2959 = vld [vmem:[#allocation10 + $0xe8] sm:$0xff]
        %v2960 = vld [vmem:[#allocation10 + $0xf0] sm:$0xff]
        %v2961 = vld [vmem:[#allocation10 + $0xf8] sm:$0xff]
        %v2962 = vld [vmem:[#allocation10 + $0x100] sm:$0xff]
        %v2963 = vld [vmem:[#allocation10 + $0x108] sm:$0xff]
        %v2964 = vld [vmem:[#allocation10 + $0x110] sm:$0xff]
        %v2965 = vld [vmem:[#allocation10 + $0x118] sm:$0xff]
        %v2966 = vld [vmem:[#allocation10 + $0x120] sm:$0xff]
        %v2967 = vld [vmem:[#allocation10 + $0x128] sm:$0xff]
        %v2968 = vld [vmem:[#allocation10 + $0x130] sm:$0xff]
        %v2969 = vld [vmem:[#allocation10 + $0x138] sm:$0xff]
        %v2970 = vld [vmem:[#allocation10 + $0x140] sm:$0xff]
        %v2971 = vld [vmem:[#allocation10 + $0x148] sm:$0xff]
        %v2972 = vld [vmem:[#allocation10 + $0x150] sm:$0xff]
        %v2973 = vld [vmem:[#allocation10 + $0x158] sm:$0xff]
        %v2974 = vld [vmem:[#allocation10 + $0x160] sm:$0xff]
        %v2975 = vld [vmem:[#allocation10 + $0x168] sm:$0xff]
        %v2976 = vld [vmem:[#allocation10 + $0x170] sm:$0xff]
        %v2977 = vld [vmem:[#allocation10 + $0x178] sm:$0xff]
        %v2978 = vld [vmem:[#allocation10 + $0x180] sm:$0xff]
        %v2979 = vld [vmem:[#allocation10 + $0x188] sm:$0xff]
        %v2980 = vld [vmem:[#allocation10 + $0x190] sm:$0xff]
        %v2981 = vld [vmem:[#allocation10 + $0x198] sm:$0xff]
        %v2982 = vld [vmem:[#allocation10 + $0x1a0] sm:$0xff]
        %v2983 = vld [vmem:[#allocation10 + $0x1a8] sm:$0xff]
        %v2984 = vld [vmem:[#allocation10 + $0x1b0] sm:$0xff]
        %v2985 = vld [vmem:[#allocation10 + $0x1b8] sm:$0xff]
        %v2986 = vld [vmem:[#allocation10 + $0x1c0] sm:$0xff]
        %v2987 = vld [vmem:[#allocation10 + $0x1c8] sm:$0xff]
        %v2988 = vld [vmem:[#allocation10 + $0x1d0] sm:$0xff]
        %v2989 = vld [vmem:[#allocation10 + $0x1d8] sm:$0xff]
        %v2990 = vld [vmem:[#allocation10 + $0x1e0] sm:$0xff]
        %v2991 = vld [vmem:[#allocation10 + $0x1e8] sm:$0xff]
        %v2992 = vld [vmem:[#allocation10 + $0x1f0] sm:$0xff]
        %v2993 = vld [vmem:[#allocation10 + $0x1f8] sm:$0xff]
        %v2994 = vld [vmem:[%s6] sm:$0x3]
        %v2996 = vlaneseq
        %v2997 = vshrl.u32 %v2996, 7
        %v2998 = vsub.s32 0, %v2997
        %v2999 = vrot.slane %v2994, %v2998
        %v3000 = vlaneseq
        %v3001 = vshrl.u32 %v3000, 7
        %v3002 = vsub.s32 1, %v3001
        %v3003 = vrot.slane %v2994, %v3002
        %v3070 = vunpack.c.l.b16 %v2930
        %v3071 = vunpack.c.h.b16 %v2930
        %v3072 = vunpack.c.l.b16 %v2931
        %v3073 = vunpack.c.h.b16 %v2931
        %v3074 = vunpack.c.l.b16 %v2932
        %v3075 = vunpack.c.h.b16 %v2932
        %v3076 = vunpack.c.l.b16 %v2933
        %v3077 = vunpack.c.h.b16 %v2933
        %v3078 = vunpack.c.l.b16 %v2934
        %v3079 = vunpack.c.h.b16 %v2934
        %v3080 = vunpack.c.l.b16 %v2935
        %v3081 = vunpack.c.h.b16 %v2935
        %v3082 = vunpack.c.l.b16 %v2936
        %v3083 = vunpack.c.h.b16 %v2936
        %v3084 = vunpack.c.l.b16 %v2937
        %v3085 = vunpack.c.h.b16 %v2937
        %v3086 = vunpack.c.l.b16 %v2938
        %v3087 = vunpack.c.h.b16 %v2938
        %v3088 = vunpack.c.l.b16 %v2939
        %v3089 = vunpack.c.h.b16 %v2939
        %v3090 = vunpack.c.l.b16 %v2940
        %v3091 = vunpack.c.h.b16 %v2940
        %v3092 = vunpack.c.l.b16 %v2941
        %v3093 = vunpack.c.h.b16 %v2941
        %v3094 = vunpack.c.l.b16 %v2942
        %v3095 = vunpack.c.h.b16 %v2942
        %v3096 = vunpack.c.l.b16 %v2943
        %v3097 = vunpack.c.h.b16 %v2943
        %v3098 = vunpack.c.l.b16 %v2944
        %v3099 = vunpack.c.h.b16 %v2944
        %v3100 = vunpack.c.l.b16 %v2945
        %v3101 = vunpack.c.h.b16 %v2945
        %v3102 = vunpack.c.l.b16 %v2946
        %v3103 = vunpack.c.h.b16 %v2946
        %v3104 = vunpack.c.l.b16 %v2947
        %v3105 = vunpack.c.h.b16 %v2947
        %v3106 = vunpack.c.l.b16 %v2948
        %v3107 = vunpack.c.h.b16 %v2948
        %v3108 = vunpack.c.l.b16 %v2949
        %v3109 = vunpack.c.h.b16 %v2949
        %v3110 = vunpack.c.l.b16 %v2950
        %v3111 = vunpack.c.h.b16 %v2950
        %v3112 = vunpack.c.l.b16 %v2951
        %v3113 = vunpack.c.h.b16 %v2951
        %v3114 = vunpack.c.l.b16 %v2952
        %v3115 = vunpack.c.h.b16 %v2952
        %v3116 = vunpack.c.l.b16 %v2953
        %v3117 = vunpack.c.h.b16 %v2953
        %v3118 = vunpack.c.l.b16 %v2954
        %v3119 = vunpack.c.h.b16 %v2954
        %v3120 = vunpack.c.l.b16 %v2955
        %v3121 = vunpack.c.h.b16 %v2955
        %v3122 = vunpack.c.l.b16 %v2956
        %v3123 = vunpack.c.h.b16 %v2956
        %v3124 = vunpack.c.l.b16 %v2957
        %v3125 = vunpack.c.h.b16 %v2957
        %v3126 = vunpack.c.l.b16 %v2958
        %v3127 = vunpack.c.h.b16 %v2958
        %v3128 = vunpack.c.l.b16 %v2959
        %v3129 = vunpack.c.h.b16 %v2959
        %v3130 = vunpack.c.l.b16 %v2960
        %v3131 = vunpack.c.h.b16 %v2960
        %v3132 = vunpack.c.l.b16 %v2961
        %v3133 = vunpack.c.h.b16 %v2961
        %v3134 = vunpack.c.l.b16 %v2962
        %v3135 = vunpack.c.h.b16 %v2962
        %v3136 = vunpack.c.l.b16 %v2963
        %v3137 = vunpack.c.h.b16 %v2963
        %v3138 = vunpack.c.l.b16 %v2964
        %v3139 = vunpack.c.h.b16 %v2964
        %v3140 = vunpack.c.l.b16 %v2965
        %v3141 = vunpack.c.h.b16 %v2965
        %v3142 = vunpack.c.l.b16 %v2966
        %v3143 = vunpack.c.h.b16 %v2966
        %v3144 = vunpack.c.l.b16 %v2967
        %v3145 = vunpack.c.h.b16 %v2967
        %v3146 = vunpack.c.l.b16 %v2968
        %v3147 = vunpack.c.h.b16 %v2968
        %v3148 = vunpack.c.l.b16 %v2969
        %v3149 = vunpack.c.h.b16 %v2969
        %v3150 = vunpack.c.l.b16 %v2970
        %v3151 = vunpack.c.h.b16 %v2970
        %v3152 = vunpack.c.l.b16 %v2971
        %v3153 = vunpack.c.h.b16 %v2971
        %v3154 = vunpack.c.l.b16 %v2972
        %v3155 = vunpack.c.h.b16 %v2972
        %v3156 = vunpack.c.l.b16 %v2973
        %v3157 = vunpack.c.h.b16 %v2973
        %v3158 = vunpack.c.l.b16 %v2974
        %v3159 = vunpack.c.h.b16 %v2974
        %v3160 = vunpack.c.l.b16 %v2975
        %v3161 = vunpack.c.h.b16 %v2975
        %v3162 = vunpack.c.l.b16 %v2976
        %v3163 = vunpack.c.h.b16 %v2976
        %v3164 = vunpack.c.l.b16 %v2977
        %v3165 = vunpack.c.h.b16 %v2977
        %v3166 = vunpack.c.l.b16 %v2978
        %v3167 = vunpack.c.h.b16 %v2978
        %v3168 = vunpack.c.l.b16 %v2979
        %v3169 = vunpack.c.h.b16 %v2979
        %v3170 = vunpack.c.l.b16 %v2980
        %v3171 = vunpack.c.h.b16 %v2980
        %v3172 = vunpack.c.l.b16 %v2981
        %v3173 = vunpack.c.h.b16 %v2981
        %v3174 = vunpack.c.l.b16 %v2982
        %v3175 = vunpack.c.h.b16 %v2982
        %v3176 = vunpack.c.l.b16 %v2983
        %v3177 = vunpack.c.h.b16 %v2983
        %v3178 = vunpack.c.l.b16 %v2984
        %v3179 = vunpack.c.h.b16 %v2984
        %v3180 = vunpack.c.l.b16 %v2985
        %v3181 = vunpack.c.h.b16 %v2985
        %v3182 = vunpack.c.l.b16 %v2986
        %v3183 = vunpack.c.h.b16 %v2986
        %v3184 = vunpack.c.l.b16 %v2987
        %v3185 = vunpack.c.h.b16 %v2987
        %v3186 = vunpack.c.l.b16 %v2988
        %v3187 = vunpack.c.h.b16 %v2988
        %v3188 = vunpack.c.l.b16 %v2989
        %v3189 = vunpack.c.h.b16 %v2989
        %v3190 = vunpack.c.l.b16 %v2990
        %v3191 = vunpack.c.h.b16 %v2990
        %v3192 = vunpack.c.l.b16 %v2991
        %v3193 = vunpack.c.h.b16 %v2991
        %v3194 = vunpack.c.l.b16 %v2992
        %v3195 = vunpack.c.h.b16 %v2992
        %v3196 = vunpack.c.l.b16 %v2993
        %v3197 = vunpack.c.h.b16 %v2993
        %v3198 = vpack.c.b16 %v3072, %v3070
        %v3199 = vpack.c.b16 %v3073, %v3071
        %v3200 = vpack.c.b16 %v3076, %v3074
        %v3201 = vpack.c.b16 %v3077, %v3075
        %v3202 = vpack.c.b16 %v3080, %v3078
        %v3203 = vpack.c.b16 %v3081, %v3079
        %v3204 = vpack.c.b16 %v3084, %v3082
        %v3205 = vpack.c.b16 %v3085, %v3083
        %v3206 = vpack.c.b16 %v3088, %v3086
        %v3207 = vpack.c.b16 %v3089, %v3087
        %v3208 = vpack.c.b16 %v3092, %v3090
        %v3209 = vpack.c.b16 %v3093, %v3091
        %v3210 = vpack.c.b16 %v3096, %v3094
        %v3211 = vpack.c.b16 %v3097, %v3095
        %v3212 = vpack.c.b16 %v3100, %v3098
        %v3213 = vpack.c.b16 %v3101, %v3099
        %v3214 = vpack.c.b16 %v3104, %v3102
        %v3215 = vpack.c.b16 %v3105, %v3103
        %v3216 = vpack.c.b16 %v3108, %v3106
        %v3217 = vpack.c.b16 %v3109, %v3107
        %v3218 = vpack.c.b16 %v3112, %v3110
        %v3219 = vpack.c.b16 %v3113, %v3111
        %v3220 = vpack.c.b16 %v3116, %v3114
        %v3221 = vpack.c.b16 %v3117, %v3115
        %v3222 = vpack.c.b16 %v3120, %v3118
        %v3223 = vpack.c.b16 %v3121, %v3119
        %v3224 = vpack.c.b16 %v3124, %v3122
        %v3225 = vpack.c.b16 %v3125, %v3123
        %v3226 = vpack.c.b16 %v3128, %v3126
        %v3227 = vpack.c.b16 %v3129, %v3127
        %v3228 = vpack.c.b16 %v3132, %v3130
        %v3229 = vpack.c.b16 %v3133, %v3131
        %v3230 = vpack.c.b16 %v3136, %v3134
        %v3231 = vpack.c.b16 %v3137, %v3135
        %v3232 = vpack.c.b16 %v3140, %v3138
        %v3233 = vpack.c.b16 %v3141, %v3139
        %v3234 = vpack.c.b16 %v3144, %v3142
        %v3235 = vpack.c.b16 %v3145, %v3143
        %v3236 = vpack.c.b16 %v3148, %v3146
        %v3237 = vpack.c.b16 %v3149, %v3147
        %v3238 = vpack.c.b16 %v3152, %v3150
        %v3239 = vpack.c.b16 %v3153, %v3151
        %v3240 = vpack.c.b16 %v3156, %v3154
        %v3241 = vpack.c.b16 %v3157, %v3155
        %v3242 = vpack.c.b16 %v3160, %v3158
        %v3243 = vpack.c.b16 %v3161, %v3159
        %v3244 = vpack.c.b16 %v3164, %v3162
        %v3245 = vpack.c.b16 %v3165, %v3163
        %v3246 = vpack.c.b16 %v3168, %v3166
        %v3247 = vpack.c.b16 %v3169, %v3167
        %v3248 = vpack.c.b16 %v3172, %v3170
        %v3249 = vpack.c.b16 %v3173, %v3171
        %v3250 = vpack.c.b16 %v3176, %v3174
        %v3251 = vpack.c.b16 %v3177, %v3175
        %v3252 = vpack.c.b16 %v3180, %v3178
        %v3253 = vpack.c.b16 %v3181, %v3179
        %v3254 = vpack.c.b16 %v3184, %v3182
        %v3255 = vpack.c.b16 %v3185, %v3183
        %v3256 = vpack.c.b16 %v3188, %v3186
        %v3257 = vpack.c.b16 %v3189, %v3187
        %v3258 = vpack.c.b16 %v3192, %v3190
        %v3259 = vpack.c.b16 %v3193, %v3191
        %v3260 = vpack.c.b16 %v3196, %v3194
        %v3261 = vpack.c.b16 %v3197, %v3195
        %3326 = vmatprep.subr.bf16.mxu0 %v3213
        %3327 = vmatpush1.bf16.msra.mxu0 %v3212
        %3328 = vmatprep.subr.bf16.mxu0 %v3211
        %3329 = vmatpush1.bf16.msra.mxu0 %v3210
        %3330 = vmatprep.subr.bf16.mxu0 %v3209
        %3331 = vmatpush1.bf16.msra.mxu0 %v3208
        %3332 = vmatprep.subr.bf16.mxu0 %v3207
        %3333 = vmatpush1.bf16.msra.mxu0 %v3206
        %3334 = vmatprep.subr.bf16.mxu0 %v3205
        %3335 = vmatpush1.bf16.msra.mxu0 %v3204
        %3336 = vmatprep.subr.bf16.mxu0 %v3203
        %3337 = vmatpush1.bf16.msra.mxu0 %v3202
        %3338 = vmatprep.subr.bf16.mxu0 %v3201
        %3339 = vmatpush1.bf16.msra.mxu0 %v3200
        %3340 = vmatprep.subr.bf16.mxu0 %v3199
        %3341 = vmatpush1.bf16.msra.mxu0 %v3198
        %3342 = vmatprep.subr.bf16.mxu0 %v3229
        %3343 = vmatpush2.bf16.msra.mxu0 %v3228
        %3344 = vmatprep.subr.bf16.mxu0 %v3227
        %3345 = vmatpush2.bf16.msra.mxu0 %v3226
        %3346 = vmatprep.subr.bf16.mxu0 %v3225
        %3347 = vmatpush2.bf16.msra.mxu0 %v3224
        %3348 = vmatprep.subr.bf16.mxu0 %v3223
        %3349 = vmatpush2.bf16.msra.mxu0 %v3222
        %3350 = vmatprep.subr.bf16.mxu0 %v3221
        %3351 = vmatpush2.bf16.msra.mxu0 %v3220
        %3352 = vmatprep.subr.bf16.mxu0 %v3219
        %3353 = vmatpush2.bf16.msra.mxu0 %v3218
        %3354 = vmatprep.subr.bf16.mxu0 %v3217
        %3355 = vmatpush2.bf16.msra.mxu0 %v3216
        %3356 = vmatprep.subr.bf16.mxu0 %v3215
        %3357 = vmatpush2.bf16.msra.mxu0 %v3214
        %3358 = vmatprep.mubr.bf16.mxu0 %v2899
        %3359 = vmatmul.mubr.bf16.gmra.mxu0 %v2898
        %v3360 = vpop.f32.mrf.mxu0
        %v3361 = vadd.f32 %v2999, %v3360
        %v3362 = vpop.f32.mrf.mxu0
        %v3363 = vadd.f32 %v3003, %v3362
        %v3364 = vpop.f32.mrf.mxu0
        %v3365 = vadd.f32 %v2999, %v3364
        %v3366 = vpop.f32.mrf.mxu0
        %v3367 = vadd.f32 %v3003, %v3366
        %3368 = vmatprep.mubr.bf16.mxu0 %v2903
        %3369 = vmatmul.mubr.bf16.gmra.mxu0 %v2902
        %v3370 = vpop.f32.mrf.mxu0
        %v3371 = vadd.f32 %v2999, %v3370
        %v3372 = vpop.f32.mrf.mxu0
        %v3373 = vadd.f32 %v3003, %v3372
        %v3374 = vpop.f32.mrf.mxu0
        %v3375 = vadd.f32 %v2999, %v3374
        %v3376 = vpop.f32.mrf.mxu0
        %v3377 = vadd.f32 %v3003, %v3376
        %3378 = vmatprep.mubr.bf16.mxu0 %v2907
        %3379 = vmatmul.mubr.bf16.gmra.mxu0 %v2906
        %v3380 = vpop.f32.mrf.mxu0
        %v3381 = vadd.f32 %v2999, %v3380
        %v3382 = vpop.f32.mrf.mxu0
        %v3383 = vadd.f32 %v3003, %v3382
        %v3384 = vpop.f32.mrf.mxu0
        %v3385 = vadd.f32 %v2999, %v3384
        %v3386 = vpop.f32.mrf.mxu0
        %v3387 = vadd.f32 %v3003, %v3386
        %3388 = vmatprep.mubr.bf16.mxu0 %v2911
        %3389 = vmatmul.mubr.bf16.gmra.mxu0 %v2910
        %v3390 = vpop.f32.mrf.mxu0
        %v3391 = vadd.f32 %v2999, %v3390
        %v3392 = vpop.f32.mrf.mxu0
        %v3393 = vadd.f32 %v3003, %v3392
        %v3394 = vpop.f32.mrf.mxu0
        %v3395 = vadd.f32 %v2999, %v3394
        %v3396 = vpop.f32.mrf.mxu0
        %v3397 = vadd.f32 %v3003, %v3396
        %3398 = vmatprep.mubr.bf16.mxu0 %v2915
        %3399 = vmatmul.mubr.bf16.gmra.mxu0 %v2914
        %v3400 = vpop.f32.mrf.mxu0
        %v3401 = vadd.f32 %v2999, %v3400
        %v3402 = vpop.f32.mrf.mxu0
        %v3403 = vadd.f32 %v3003, %v3402
        %v3404 = vpop.f32.mrf.mxu0
        %v3405 = vadd.f32 %v2999, %v3404
        %v3406 = vpop.f32.mrf.mxu0
        %v3407 = vadd.f32 %v3003, %v3406
        %3408 = vmatprep.mubr.bf16.mxu0 %v2919
        %3409 = vmatmul.mubr.bf16.gmra.mxu0 %v2918
        %v3410 = vpop.f32.mrf.mxu0
        %v3411 = vadd.f32 %v2999, %v3410
        %v3412 = vpop.f32.mrf.mxu0
        %v3413 = vadd.f32 %v3003, %v3412
        %v3414 = vpop.f32.mrf.mxu0
        %v3415 = vadd.f32 %v2999, %v3414
        %v3416 = vpop.f32.mrf.mxu0
        %v3417 = vadd.f32 %v3003, %v3416
        %3418 = vmatprep.mubr.bf16.mxu0 %v2923
        %3419 = vmatmul.mubr.bf16.gmra.mxu0 %v2922
        %v3420 = vpop.f32.mrf.mxu0
        %v3421 = vadd.f32 %v2999, %v3420
        %v3422 = vpop.f32.mrf.mxu0
        %v3423 = vadd.f32 %v3003, %v3422
        %v3424 = vpop.f32.mrf.mxu0
        %v3425 = vadd.f32 %v2999, %v3424
        %v3426 = vpop.f32.mrf.mxu0
        %v3427 = vadd.f32 %v3003, %v3426
        %3428 = vmatprep.mubr.bf16.mxu0 %v2927
        %3429 = vmatmul.mubr.bf16.gmra.mxu0 %v2926
        %v3430 = vpop.f32.mrf.mxu0
        %v3431 = vadd.f32 %v2999, %v3430
        %v3432 = vpop.f32.mrf.mxu0
        %v3433 = vadd.f32 %v3003, %v3432
        %v3434 = vpop.f32.mrf.mxu0
        %v3435 = vadd.f32 %v2999, %v3434
        %v3436 = vpop.f32.mrf.mxu0
        %v3437 = vadd.f32 %v3003, %v3436
        %3438 = vdwg.mxu0
        %3439 = vmatprep.subr.bf16.mxu0 %v3245
        %3440 = vmatpush1.bf16.msra.mxu0 %v3244
        %3441 = vmatprep.subr.bf16.mxu0 %v3243
        %3442 = vmatpush1.bf16.msra.mxu0 %v3242
        %3443 = vmatprep.subr.bf16.mxu0 %v3241
        %3444 = vmatpush1.bf16.msra.mxu0 %v3240
        %3445 = vmatprep.subr.bf16.mxu0 %v3239
        %3446 = vmatpush1.bf16.msra.mxu0 %v3238
        %3447 = vmatprep.subr.bf16.mxu0 %v3237
        %3448 = vmatpush1.bf16.msra.mxu0 %v3236
        %3449 = vmatprep.subr.bf16.mxu0 %v3235
        %3450 = vmatpush1.bf16.msra.mxu0 %v3234
        %3451 = vmatprep.subr.bf16.mxu0 %v3233
        %3452 = vmatpush1.bf16.msra.mxu0 %v3232
        %3453 = vmatprep.subr.bf16.mxu0 %v3231
        %3454 = vmatpush1.bf16.msra.mxu0 %v3230
        %3455 = vmatprep.subr.bf16.mxu0 %v3261
        %3456 = vmatpush2.bf16.msra.mxu0 %v3260
        %3457 = vmatprep.subr.bf16.mxu0 %v3259
        %3458 = vmatpush2.bf16.msra.mxu0 %v3258
        %3459 = vmatprep.subr.bf16.mxu0 %v3257
        %3460 = vmatpush2.bf16.msra.mxu0 %v3256
        %3461 = vmatprep.subr.bf16.mxu0 %v3255
        %3462 = vmatpush2.bf16.msra.mxu0 %v3254
        %3463 = vmatprep.subr.bf16.mxu0 %v3253
        %3464 = vmatpush2.bf16.msra.mxu0 %v3252
        %3465 = vmatprep.subr.bf16.mxu0 %v3251
        %3466 = vmatpush2.bf16.msra.mxu0 %v3250
        %3467 = vmatprep.subr.bf16.mxu0 %v3249
        %3468 = vmatpush2.bf16.msra.mxu0 %v3248
        %3469 = vmatprep.subr.bf16.mxu0 %v3247
        %3470 = vmatpush2.bf16.msra.mxu0 %v3246
        %3471 = vmatprep.mubr.bf16.mxu0 %v2901
        %3472 = vmatmul.mubr.bf16.gmra.mxu0 %v2900
        %v3473 = vpop.f32.mrf.mxu0
        %v3474 = vadd.f32 %v3361, %v3473
        %v3475 = vpop.f32.mrf.mxu0
        %v3476 = vadd.f32 %v3363, %v3475
        %v3477 = vpop.f32.mrf.mxu0
        %v3478 = vadd.f32 %v3365, %v3477
        %v3479 = vpop.f32.mrf.mxu0
        %v3480 = vadd.f32 %v3367, %v3479
        %3481 = vmatprep.mubr.bf16.mxu0 %v2905
        %3482 = vmatmul.mubr.bf16.gmra.mxu0 %v2904
        %v3483 = vpop.f32.mrf.mxu0
        %v3484 = vadd.f32 %v3371, %v3483
        %v3485 = vpop.f32.mrf.mxu0
        %v3486 = vadd.f32 %v3373, %v3485
        %v3487 = vpop.f32.mrf.mxu0
        %v3488 = vadd.f32 %v3375, %v3487
        %v3489 = vpop.f32.mrf.mxu0
        %v3490 = vadd.f32 %v3377, %v3489
        %3491 = vmatprep.mubr.bf16.mxu0 %v2909
        %3492 = vmatmul.mubr.bf16.gmra.mxu0 %v2908
        %v3493 = vpop.f32.mrf.mxu0
        %v3494 = vadd.f32 %v3381, %v3493
        %v3495 = vpop.f32.mrf.mxu0
        %v3496 = vadd.f32 %v3383, %v3495
        %v3497 = vpop.f32.mrf.mxu0
        %v3498 = vadd.f32 %v3385, %v3497
        %v3499 = vpop.f32.mrf.mxu0
        %v3500 = vadd.f32 %v3387, %v3499
        %3501 = vmatprep.mubr.bf16.mxu0 %v2913
        %3502 = vmatmul.mubr.bf16.gmra.mxu0 %v2912
        %v3503 = vpop.f32.mrf.mxu0
        %v3504 = vadd.f32 %v3391, %v3503
        %v3505 = vpop.f32.mrf.mxu0
        %v3506 = vadd.f32 %v3393, %v3505
        %v3507 = vpop.f32.mrf.mxu0
        %v3508 = vadd.f32 %v3395, %v3507
        %v3509 = vpop.f32.mrf.mxu0
        %v3510 = vadd.f32 %v3397, %v3509
        %3511 = vmatprep.mubr.bf16.mxu0 %v2917
        %3512 = vmatmul.mubr.bf16.gmra.mxu0 %v2916
        %v3513 = vpop.f32.mrf.mxu0
        %v3514 = vadd.f32 %v3401, %v3513
        %v3515 = vpop.f32.mrf.mxu0
        %v3516 = vadd.f32 %v3403, %v3515
        %v3517 = vpop.f32.mrf.mxu0
        %v3518 = vadd.f32 %v3405, %v3517
        %v3519 = vpop.f32.mrf.mxu0
        %v3520 = vadd.f32 %v3407, %v3519
        %3521 = vmatprep.mubr.bf16.mxu0 %v2921
        %3522 = vmatmul.mubr.bf16.gmra.mxu0 %v2920
        %v3523 = vpop.f32.mrf.mxu0
        %v3524 = vadd.f32 %v3411, %v3523
        %v3525 = vpop.f32.mrf.mxu0
        %v3526 = vadd.f32 %v3413, %v3525
        %v3527 = vpop.f32.mrf.mxu0
        %v3528 = vadd.f32 %v3415, %v3527
        %v3529 = vpop.f32.mrf.mxu0
        %v3530 = vadd.f32 %v3417, %v3529
        %3531 = vmatprep.mubr.bf16.mxu0 %v2925
        %3532 = vmatmul.mubr.bf16.gmra.mxu0 %v2924
        %v3533 = vpop.f32.mrf.mxu0
        %v3534 = vadd.f32 %v3421, %v3533
        %v3535 = vpop.f32.mrf.mxu0
        %v3536 = vadd.f32 %v3423, %v3535
        %v3537 = vpop.f32.mrf.mxu0
        %v3538 = vadd.f32 %v3425, %v3537
        %v3539 = vpop.f32.mrf.mxu0
        %v3540 = vadd.f32 %v3427, %v3539
        %3541 = vmatprep.mubr.bf16.mxu0 %v2929
        %3542 = vmatmul.mubr.bf16.gmra.mxu0 %v2928
        %v3543 = vpop.f32.mrf.mxu0
        %v3544 = vadd.f32 %v3431, %v3543
        %v3545 = vpop.f32.mrf.mxu0
        %v3546 = vadd.f32 %v3433, %v3545
        %v3547 = vpop.f32.mrf.mxu0
        %v3548 = vadd.f32 %v3435, %v3547
        %v3549 = vpop.f32.mrf.mxu0
        %v3550 = vadd.f32 %v3437, %v3549
        %3551 = vdwg.mxu0
        %v3552 = vmax.f32 %v3474, 0.0
        %v3553 = vmax.f32 %v3476, 0.0
        %v3554 = vmax.f32 %v3478, 0.0
        %v3555 = vmax.f32 %v3480, 0.0
        %v3556 = vmax.f32 %v3484, 0.0
        %v3557 = vmax.f32 %v3486, 0.0
        %v3558 = vmax.f32 %v3488, 0.0
        %v3559 = vmax.f32 %v3490, 0.0
        %v3560 = vmax.f32 %v3494, 0.0
        %v3561 = vmax.f32 %v3496, 0.0
        %v3562 = vmax.f32 %v3498, 0.0
        %v3563 = vmax.f32 %v3500, 0.0
        %v3564 = vmax.f32 %v3504, 0.0
        %v3565 = vmax.f32 %v3506, 0.0
        %v3566 = vmax.f32 %v3508, 0.0
        %v3567 = vmax.f32 %v3510, 0.0
        %v3568 = vmax.f32 %v3514, 0.0
        %v3569 = vmax.f32 %v3516, 0.0
        %v3570 = vmax.f32 %v3518, 0.0
        %v3571 = vmax.f32 %v3520, 0.0
        %v3572 = vmax.f32 %v3524, 0.0
        %v3573 = vmax.f32 %v3526, 0.0
        %v3574 = vmax.f32 %v3528, 0.0
        %v3575 = vmax.f32 %v3530, 0.0
        %v3576 = vmax.f32 %v3534, 0.0
        %v3577 = vmax.f32 %v3536, 0.0
        %v3578 = vmax.f32 %v3538, 0.0
        %v3579 = vmax.f32 %v3540, 0.0
        %v3580 = vmax.f32 %v3544, 0.0
        %v3581 = vmax.f32 %v3546, 0.0
        %v3582 = vmax.f32 %v3548, 0.0
        %v3583 = vmax.f32 %v3550, 0.0
        %v3584 = vpack.c.bf16 %v3554, %v3552
        %v3585 = vpack.c.bf16 %v3555, %v3553
        %v3586 = vpack.c.bf16 %v3558, %v3556
        %v3587 = vpack.c.bf16 %v3559, %v3557
        %v3588 = vpack.c.bf16 %v3562, %v3560
        %v3589 = vpack.c.bf16 %v3563, %v3561
        %v3590 = vpack.c.bf16 %v3566, %v3564
        %v3591 = vpack.c.bf16 %v3567, %v3565
        %v3592 = vpack.c.bf16 %v3570, %v3568
        %v3593 = vpack.c.bf16 %v3571, %v3569
        %v3594 = vpack.c.bf16 %v3574, %v3572
        %v3595 = vpack.c.bf16 %v3575, %v3573
        %v3596 = vpack.c.bf16 %v3578, %v3576
        %v3597 = vpack.c.bf16 %v3579, %v3577
        %v3598 = vpack.c.bf16 %v3582, %v3580
        %v3599 = vpack.c.bf16 %v3583, %v3581
        %v3600 = vld [vmem:[#allocation11] sm:$0xff]
        %v3601 = vld [vmem:[#allocation11 + $0x8] sm:$0xff]
        %v3602 = vld [vmem:[#allocation11 + $0x10] sm:$0xff]
        %v3603 = vld [vmem:[#allocation11 + $0x18] sm:$0xff]
        %v3604 = vld [vmem:[#allocation11 + $0x20] sm:$0xff]
        %v3605 = vld [vmem:[#allocation11 + $0x28] sm:$0xff]
        %v3606 = vld [vmem:[#allocation11 + $0x30] sm:$0xff]
        %v3607 = vld [vmem:[#allocation11 + $0x38] sm:$0xff]
        %v3608 = vld [vmem:[#allocation11 + $0x40] sm:$0xff]
        %v3609 = vld [vmem:[#allocation11 + $0x48] sm:$0xff]
        %v3610 = vld [vmem:[#allocation11 + $0x50] sm:$0xff]
        %v3611 = vld [vmem:[#allocation11 + $0x58] sm:$0xff]
        %v3612 = vld [vmem:[#allocation11 + $0x60] sm:$0xff]
        %v3613 = vld [vmem:[#allocation11 + $0x68] sm:$0xff]
        %v3614 = vld [vmem:[#allocation11 + $0x70] sm:$0xff]
        %v3615 = vld [vmem:[#allocation11 + $0x78] sm:$0xff]
        %v3616 = vld [vmem:[#allocation11 + $0x80] sm:$0xff]
        %v3617 = vld [vmem:[#allocation11 + $0x88] sm:$0xff]
        %v3618 = vld [vmem:[#allocation11 + $0x90] sm:$0xff]
        %v3619 = vld [vmem:[#allocation11 + $0x98] sm:$0xff]
        %v3620 = vld [vmem:[#allocation11 + $0xa0] sm:$0xff]
        %v3621 = vld [vmem:[#allocation11 + $0xa8] sm:$0xff]
        %v3622 = vld [vmem:[#allocation11 + $0xb0] sm:$0xff]
        %v3623 = vld [vmem:[#allocation11 + $0xb8] sm:$0xff]
        %v3624 = vld [vmem:[#allocation11 + $0xc0] sm:$0xff]
        %v3625 = vld [vmem:[#allocation11 + $0xc8] sm:$0xff]
        %v3626 = vld [vmem:[#allocation11 + $0xd0] sm:$0xff]
        %v3627 = vld [vmem:[#allocation11 + $0xd8] sm:$0xff]
        %v3628 = vld [vmem:[#allocation11 + $0xe0] sm:$0xff]
        %v3629 = vld [vmem:[#allocation11 + $0xe8] sm:$0xff]
        %v3630 = vld [vmem:[#allocation11 + $0xf0] sm:$0xff]
        %v3631 = vld [vmem:[#allocation11 + $0xf8] sm:$0xff]
        %v3632 = vld [vmem:[%s8] sm:$0x3]
        %v3634 = vlaneseq
        %v3635 = vshrl.u32 %v3634, 7
        %v3636 = vsub.s32 0, %v3635
        %v3637 = vrot.slane %v3632, %v3636
        %v3638 = vlaneseq
        %v3639 = vshrl.u32 %v3638, 7
        %v3640 = vsub.s32 1, %v3639
        %v3641 = vrot.slane %v3632, %v3640
        %v3676 = vunpack.c.l.b16 %v3600
        %v3677 = vunpack.c.h.b16 %v3600
        %v3678 = vunpack.c.l.b16 %v3601
        %v3679 = vunpack.c.h.b16 %v3601
        %v3680 = vunpack.c.l.b16 %v3602
        %v3681 = vunpack.c.h.b16 %v3602
        %v3682 = vunpack.c.l.b16 %v3603
        %v3683 = vunpack.c.h.b16 %v3603
        %v3684 = vunpack.c.l.b16 %v3604
        %v3685 = vunpack.c.h.b16 %v3604
        %v3686 = vunpack.c.l.b16 %v3605
        %v3687 = vunpack.c.h.b16 %v3605
        %v3688 = vunpack.c.l.b16 %v3606
        %v3689 = vunpack.c.h.b16 %v3606
        %v3690 = vunpack.c.l.b16 %v3607
        %v3691 = vunpack.c.h.b16 %v3607
        %v3692 = vunpack.c.l.b16 %v3608
        %v3693 = vunpack.c.h.b16 %v3608
        %v3694 = vunpack.c.l.b16 %v3609
        %v3695 = vunpack.c.h.b16 %v3609
        %v3696 = vunpack.c.l.b16 %v3610
        %v3697 = vunpack.c.h.b16 %v3610
        %v3698 = vunpack.c.l.b16 %v3611
        %v3699 = vunpack.c.h.b16 %v3611
        %v3700 = vunpack.c.l.b16 %v3612
        %v3701 = vunpack.c.h.b16 %v3612
        %v3702 = vunpack.c.l.b16 %v3613
        %v3703 = vunpack.c.h.b16 %v3613
        %v3704 = vunpack.c.l.b16 %v3614
        %v3705 = vunpack.c.h.b16 %v3614
        %v3706 = vunpack.c.l.b16 %v3615
        %v3707 = vunpack.c.h.b16 %v3615
        %v3708 = vunpack.c.l.b16 %v3616
        %v3709 = vunpack.c.h.b16 %v3616
        %v3710 = vunpack.c.l.b16 %v3617
        %v3711 = vunpack.c.h.b16 %v3617
        %v3712 = vunpack.c.l.b16 %v3618
        %v3713 = vunpack.c.h.b16 %v3618
        %v3714 = vunpack.c.l.b16 %v3619
        %v3715 = vunpack.c.h.b16 %v3619
        %v3716 = vunpack.c.l.b16 %v3620
        %v3717 = vunpack.c.h.b16 %v3620
        %v3718 = vunpack.c.l.b16 %v3621
        %v3719 = vunpack.c.h.b16 %v3621
        %v3720 = vunpack.c.l.b16 %v3622
        %v3721 = vunpack.c.h.b16 %v3622
        %v3722 = vunpack.c.l.b16 %v3623
        %v3723 = vunpack.c.h.b16 %v3623
        %v3724 = vunpack.c.l.b16 %v3624
        %v3725 = vunpack.c.h.b16 %v3624
        %v3726 = vunpack.c.l.b16 %v3625
        %v3727 = vunpack.c.h.b16 %v3625
        %v3728 = vunpack.c.l.b16 %v3626
        %v3729 = vunpack.c.h.b16 %v3626
        %v3730 = vunpack.c.l.b16 %v3627
        %v3731 = vunpack.c.h.b16 %v3627
        %v3732 = vunpack.c.l.b16 %v3628
        %v3733 = vunpack.c.h.b16 %v3628
        %v3734 = vunpack.c.l.b16 %v3629
        %v3735 = vunpack.c.h.b16 %v3629
        %v3736 = vunpack.c.l.b16 %v3630
        %v3737 = vunpack.c.h.b16 %v3630
        %v3738 = vunpack.c.l.b16 %v3631
        %v3739 = vunpack.c.h.b16 %v3631
        %v3740 = vpack.c.b16 %v3678, %v3676
        %v3741 = vpack.c.b16 %v3679, %v3677
        %v3742 = vpack.c.b16 %v3682, %v3680
        %v3743 = vpack.c.b16 %v3683, %v3681
        %v3744 = vpack.c.b16 %v3686, %v3684
        %v3745 = vpack.c.b16 %v3687, %v3685
        %v3746 = vpack.c.b16 %v3690, %v3688
        %v3747 = vpack.c.b16 %v3691, %v3689
        %v3748 = vpack.c.b16 %v3694, %v3692
        %v3749 = vpack.c.b16 %v3695, %v3693
        %v3750 = vpack.c.b16 %v3698, %v3696
        %v3751 = vpack.c.b16 %v3699, %v3697
        %v3752 = vpack.c.b16 %v3702, %v3700
        %v3753 = vpack.c.b16 %v3703, %v3701
        %v3754 = vpack.c.b16 %v3706, %v3704
        %v3755 = vpack.c.b16 %v3707, %v3705
        %v3756 = vpack.c.b16 %v3710, %v3708
        %v3757 = vpack.c.b16 %v3711, %v3709
        %v3758 = vpack.c.b16 %v3714, %v3712
        %v3759 = vpack.c.b16 %v3715, %v3713
        %v3760 = vpack.c.b16 %v3718, %v3716
        %v3761 = vpack.c.b16 %v3719, %v3717
        %v3762 = vpack.c.b16 %v3722, %v3720
        %v3763 = vpack.c.b16 %v3723, %v3721
        %v3764 = vpack.c.b16 %v3726, %v3724
        %v3765 = vpack.c.b16 %v3727, %v3725
        %v3766 = vpack.c.b16 %v3730, %v3728
        %v3767 = vpack.c.b16 %v3731, %v3729
        %v3768 = vpack.c.b16 %v3734, %v3732
        %v3769 = vpack.c.b16 %v3735, %v3733
        %v3770 = vpack.c.b16 %v3738, %v3736
        %v3771 = vpack.c.b16 %v3739, %v3737
        %3804 = vmatprep.subr.bf16.mxu0 %v3755
        %3805 = vmatpush1.bf16.msra.mxu0 %v3754
        %3806 = vmatprep.subr.bf16.mxu0 %v3753
        %3807 = vmatpush1.bf16.msra.mxu0 %v3752
        %3808 = vmatprep.subr.bf16.mxu0 %v3751
        %3809 = vmatpush1.bf16.msra.mxu0 %v3750
        %3810 = vmatprep.subr.bf16.mxu0 %v3749
        %3811 = vmatpush1.bf16.msra.mxu0 %v3748
        %3812 = vmatprep.subr.bf16.mxu0 %v3747
        %3813 = vmatpush1.bf16.msra.mxu0 %v3746
        %3814 = vmatprep.subr.bf16.mxu0 %v3745
        %3815 = vmatpush1.bf16.msra.mxu0 %v3744
        %3816 = vmatprep.subr.bf16.mxu0 %v3743
        %3817 = vmatpush1.bf16.msra.mxu0 %v3742
        %3818 = vmatprep.subr.bf16.mxu0 %v3741
        %3819 = vmatpush1.bf16.msra.mxu0 %v3740
        %3820 = vmatprep.subr.bf16.mxu0 %v3771
        %3821 = vmatpush2.bf16.msra.mxu0 %v3770
        %3822 = vmatprep.subr.bf16.mxu0 %v3769
        %3823 = vmatpush2.bf16.msra.mxu0 %v3768
        %3824 = vmatprep.subr.bf16.mxu0 %v3767
        %3825 = vmatpush2.bf16.msra.mxu0 %v3766
        %3826 = vmatprep.subr.bf16.mxu0 %v3765
        %3827 = vmatpush2.bf16.msra.mxu0 %v3764
        %3828 = vmatprep.subr.bf16.mxu0 %v3763
        %3829 = vmatpush2.bf16.msra.mxu0 %v3762
        %3830 = vmatprep.subr.bf16.mxu0 %v3761
        %3831 = vmatpush2.bf16.msra.mxu0 %v3760
        %3832 = vmatprep.subr.bf16.mxu0 %v3759
        %3833 = vmatpush2.bf16.msra.mxu0 %v3758
        %3834 = vmatprep.subr.bf16.mxu0 %v3757
        %3835 = vmatpush2.bf16.msra.mxu0 %v3756
        %3836 = vmatprep.mubr.bf16.mxu0 %v3585
        %3837 = vmatmul.mubr.bf16.gmra.mxu0 %v3584
        %v3838 = vpop.f32.mrf.mxu0
        %v3839 = vadd.f32 %v3637, %v3838
        %v3840 = vpop.f32.mrf.mxu0
        %v3841 = vadd.f32 %v3641, %v3840
        %v3842 = vpop.f32.mrf.mxu0
        %v3843 = vadd.f32 %v3637, %v3842
        %v3844 = vpop.f32.mrf.mxu0
        %v3845 = vadd.f32 %v3641, %v3844
        %3846 = vmatprep.mubr.bf16.mxu0 %v3587
        %3847 = vmatmul.mubr.bf16.gmra.mxu0 %v3586
        %v3848 = vpop.f32.mrf.mxu0
        %v3849 = vadd.f32 %v3637, %v3848
        %v3850 = vpop.f32.mrf.mxu0
        %v3851 = vadd.f32 %v3641, %v3850
        %v3852 = vpop.f32.mrf.mxu0
        %v3853 = vadd.f32 %v3637, %v3852
        %v3854 = vpop.f32.mrf.mxu0
        %v3855 = vadd.f32 %v3641, %v3854
        %3856 = vmatprep.mubr.bf16.mxu0 %v3589
        %3857 = vmatmul.mubr.bf16.gmra.mxu0 %v3588
        %v3858 = vpop.f32.mrf.mxu0
        %v3859 = vadd.f32 %v3637, %v3858
        %v3860 = vpop.f32.mrf.mxu0
        %v3861 = vadd.f32 %v3641, %v3860
        %v3862 = vpop.f32.mrf.mxu0
        %v3863 = vadd.f32 %v3637, %v3862
        %v3864 = vpop.f32.mrf.mxu0
        %v3865 = vadd.f32 %v3641, %v3864
        %3866 = vmatprep.mubr.bf16.mxu0 %v3591
        %3867 = vmatmul.mubr.bf16.gmra.mxu0 %v3590
        %v3868 = vpop.f32.mrf.mxu0
        %v3869 = vadd.f32 %v3637, %v3868
        %v3870 = vpop.f32.mrf.mxu0
        %v3871 = vadd.f32 %v3641, %v3870
        %v3872 = vpop.f32.mrf.mxu0
        %v3873 = vadd.f32 %v3637, %v3872
        %v3874 = vpop.f32.mrf.mxu0
        %v3875 = vadd.f32 %v3641, %v3874
        %3876 = vmatprep.mubr.bf16.mxu0 %v3593
        %3877 = vmatmul.mubr.bf16.gmra.mxu0 %v3592
        %v3878 = vpop.f32.mrf.mxu0
        %v3879 = vadd.f32 %v3637, %v3878
        %v3880 = vpop.f32.mrf.mxu0
        %v3881 = vadd.f32 %v3641, %v3880
        %v3882 = vpop.f32.mrf.mxu0
        %v3883 = vadd.f32 %v3637, %v3882
        %v3884 = vpop.f32.mrf.mxu0
        %v3885 = vadd.f32 %v3641, %v3884
        %3886 = vmatprep.mubr.bf16.mxu0 %v3595
        %3887 = vmatmul.mubr.bf16.gmra.mxu0 %v3594
        %v3888 = vpop.f32.mrf.mxu0
        %v3889 = vadd.f32 %v3637, %v3888
        %v3890 = vpop.f32.mrf.mxu0
        %v3891 = vadd.f32 %v3641, %v3890
        %v3892 = vpop.f32.mrf.mxu0
        %v3893 = vadd.f32 %v3637, %v3892
        %v3894 = vpop.f32.mrf.mxu0
        %v3895 = vadd.f32 %v3641, %v3894
        %3896 = vmatprep.mubr.bf16.mxu0 %v3597
        %3897 = vmatmul.mubr.bf16.gmra.mxu0 %v3596
        %v3898 = vpop.f32.mrf.mxu0
        %v3899 = vadd.f32 %v3637, %v3898
        %v3900 = vpop.f32.mrf.mxu0
        %v3901 = vadd.f32 %v3641, %v3900
        %v3902 = vpop.f32.mrf.mxu0
        %v3903 = vadd.f32 %v3637, %v3902
        %v3904 = vpop.f32.mrf.mxu0
        %v3905 = vadd.f32 %v3641, %v3904
        %3906 = vmatprep.mubr.bf16.mxu0 %v3599
        %3907 = vmatmul.mubr.bf16.gmra.mxu0 %v3598
        %v3908 = vpop.f32.mrf.mxu0
        %v3909 = vadd.f32 %v3637, %v3908
        %v3910 = vpop.f32.mrf.mxu0
        %v3911 = vadd.f32 %v3641, %v3910
        %v3912 = vpop.f32.mrf.mxu0
        %v3913 = vadd.f32 %v3637, %v3912
        %v3914 = vpop.f32.mrf.mxu0
        %v3915 = vadd.f32 %v3641, %v3914
        %3916 = vdwg.mxu0
        %v3917 = vmax.f32 %v3839, 0.0
        %v3918 = vmax.f32 %v3841, 0.0
        %v3919 = vmax.f32 %v3843, 0.0
        %v3920 = vmax.f32 %v3845, 0.0
        %v3921 = vmax.f32 %v3849, 0.0
        %v3922 = vmax.f32 %v3851, 0.0
        %v3923 = vmax.f32 %v3853, 0.0
        %v3924 = vmax.f32 %v3855, 0.0
        %v3925 = vmax.f32 %v3859, 0.0
        %v3926 = vmax.f32 %v3861, 0.0
        %v3927 = vmax.f32 %v3863, 0.0
        %v3928 = vmax.f32 %v3865, 0.0
        %v3929 = vmax.f32 %v3869, 0.0
        %v3930 = vmax.f32 %v3871, 0.0
        %v3931 = vmax.f32 %v3873, 0.0
        %v3932 = vmax.f32 %v3875, 0.0
        %v3933 = vmax.f32 %v3879, 0.0
        %v3934 = vmax.f32 %v3881, 0.0
        %v3935 = vmax.f32 %v3883, 0.0
        %v3936 = vmax.f32 %v3885, 0.0
        %v3937 = vmax.f32 %v3889, 0.0
        %v3938 = vmax.f32 %v3891, 0.0
        %v3939 = vmax.f32 %v3893, 0.0
        %v3940 = vmax.f32 %v3895, 0.0
        %v3941 = vmax.f32 %v3899, 0.0
        %v3942 = vmax.f32 %v3901, 0.0
        %v3943 = vmax.f32 %v3903, 0.0
        %v3944 = vmax.f32 %v3905, 0.0
        %v3945 = vmax.f32 %v3909, 0.0
        %v3946 = vmax.f32 %v3911, 0.0
        %v3947 = vmax.f32 %v3913, 0.0
        %v3948 = vmax.f32 %v3915, 0.0
        %v3949 = vpack.c.bf16 %v3919, %v3917
        %v3950 = vpack.c.bf16 %v3920, %v3918
        %v3951 = vpack.c.bf16 %v3923, %v3921
        %v3952 = vpack.c.bf16 %v3924, %v3922
        %v3953 = vpack.c.bf16 %v3927, %v3925
        %v3954 = vpack.c.bf16 %v3928, %v3926
        %v3955 = vpack.c.bf16 %v3931, %v3929
        %v3956 = vpack.c.bf16 %v3932, %v3930
        %v3957 = vpack.c.bf16 %v3935, %v3933
        %v3958 = vpack.c.bf16 %v3936, %v3934
        %v3959 = vpack.c.bf16 %v3939, %v3937
        %v3960 = vpack.c.bf16 %v3940, %v3938
        %v3961 = vpack.c.bf16 %v3943, %v3941
        %v3962 = vpack.c.bf16 %v3944, %v3942
        %v3963 = vpack.c.bf16 %v3947, %v3945
        %v3964 = vpack.c.bf16 %v3948, %v3946
        %v3965 = vld [vmem:[#allocation13] sm:$0xff]
        %v3966 = vld [vmem:[#allocation13 + $0x8] sm:$0xff]
        %v3967 = vld [vmem:[#allocation13 + $0x10] sm:$0xff]
        %v3968 = vld [vmem:[#allocation13 + $0x18] sm:$0xff]
        %v3969 = vld [vmem:[#allocation13 + $0x20] sm:$0xff]
        %v3970 = vld [vmem:[#allocation13 + $0x28] sm:$0xff]
        %v3971 = vld [vmem:[#allocation13 + $0x30] sm:$0xff]
        %v3972 = vld [vmem:[#allocation13 + $0x38] sm:$0xff]
        %v3973 = vld [vmem:[#allocation13 + $0x40] sm:$0xff]
        %v3974 = vld [vmem:[#allocation13 + $0x48] sm:$0xff]
        %v3975 = vld [vmem:[#allocation13 + $0x50] sm:$0xff]
        %v3976 = vld [vmem:[#allocation13 + $0x58] sm:$0xff]
        %v3977 = vld [vmem:[#allocation13 + $0x60] sm:$0xff]
        %v3978 = vld [vmem:[#allocation13 + $0x68] sm:$0xff]
        %v3979 = vld [vmem:[#allocation13 + $0x70] sm:$0xff]
        %v3980 = vld [vmem:[#allocation13 + $0x78] sm:$0xff]
        %v3981 = vld [vmem:[#allocation13 + $0x80] sm:$0xff]
        %v3982 = vld [vmem:[#allocation13 + $0x88] sm:$0xff]
        %v3983 = vld [vmem:[#allocation13 + $0x90] sm:$0xff]
        %v3984 = vld [vmem:[#allocation13 + $0x98] sm:$0xff]
        %v3985 = vld [vmem:[#allocation13 + $0xa0] sm:$0xff]
        %v3986 = vld [vmem:[#allocation13 + $0xa8] sm:$0xff]
        %v3987 = vld [vmem:[#allocation13 + $0xb0] sm:$0xff]
        %v3988 = vld [vmem:[#allocation13 + $0xb8] sm:$0xff]
        %v3989 = vld [vmem:[#allocation13 + $0xc0] sm:$0xff]
        %v3990 = vld [vmem:[#allocation13 + $0xc8] sm:$0xff]
        %v3991 = vld [vmem:[#allocation13 + $0xd0] sm:$0xff]
        %v3992 = vld [vmem:[#allocation13 + $0xd8] sm:$0xff]
        %v3993 = vld [vmem:[#allocation13 + $0xe0] sm:$0xff]
        %v3994 = vld [vmem:[#allocation13 + $0xe8] sm:$0xff]
        %v3995 = vld [vmem:[#allocation13 + $0xf0] sm:$0xff]
        %v3996 = vld [vmem:[#allocation13 + $0xf8] sm:$0xff]
        %v3997 = vld [vmem:[#allocation13 + $0x100] sm:$0xff]
        %v3998 = vld [vmem:[#allocation13 + $0x108] sm:$0xff]
        %v3999 = vld [vmem:[#allocation13 + $0x110] sm:$0xff]
        %v4000 = vld [vmem:[#allocation13 + $0x118] sm:$0xff]
        %v4001 = vld [vmem:[#allocation13 + $0x120] sm:$0xff]
        %v4002 = vld [vmem:[#allocation13 + $0x128] sm:$0xff]
        %v4003 = vld [vmem:[#allocation13 + $0x130] sm:$0xff]
        %v4004 = vld [vmem:[#allocation13 + $0x138] sm:$0xff]
        %v4005 = vld [vmem:[#allocation13 + $0x140] sm:$0xff]
        %v4006 = vld [vmem:[#allocation13 + $0x148] sm:$0xff]
        %v4007 = vld [vmem:[#allocation13 + $0x150] sm:$0xff]
        %v4008 = vld [vmem:[#allocation13 + $0x158] sm:$0xff]
        %v4009 = vld [vmem:[#allocation13 + $0x160] sm:$0xff]
        %v4010 = vld [vmem:[#allocation13 + $0x168] sm:$0xff]
        %v4011 = vld [vmem:[#allocation13 + $0x170] sm:$0xff]
        %v4012 = vld [vmem:[#allocation13 + $0x178] sm:$0xff]
        %v4013 = vld [vmem:[#allocation13 + $0x180] sm:$0xff]
        %v4014 = vld [vmem:[#allocation13 + $0x188] sm:$0xff]
        %v4015 = vld [vmem:[#allocation13 + $0x190] sm:$0xff]
        %v4016 = vld [vmem:[#allocation13 + $0x198] sm:$0xff]
        %v4017 = vld [vmem:[#allocation13 + $0x1a0] sm:$0xff]
        %v4018 = vld [vmem:[#allocation13 + $0x1a8] sm:$0xff]
        %v4019 = vld [vmem:[#allocation13 + $0x1b0] sm:$0xff]
        %v4020 = vld [vmem:[#allocation13 + $0x1b8] sm:$0xff]
        %v4021 = vld [vmem:[#allocation13 + $0x1c0] sm:$0xff]
        %v4022 = vld [vmem:[#allocation13 + $0x1c8] sm:$0xff]
        %v4023 = vld [vmem:[#allocation13 + $0x1d0] sm:$0xff]
        %v4024 = vld [vmem:[#allocation13 + $0x1d8] sm:$0xff]
        %v4025 = vld [vmem:[#allocation13 + $0x1e0] sm:$0xff]
        %v4026 = vld [vmem:[#allocation13 + $0x1e8] sm:$0xff]
        %v4027 = vld [vmem:[#allocation13 + $0x1f0] sm:$0xff]
        %v4028 = vld [vmem:[#allocation13 + $0x1f8] sm:$0xff]
        %v4029 = vld [vmem:[%s10] sm:$0xf]
        %v4031 = vlaneseq
        %v4032 = vshrl.u32 %v4031, 7
        %v4033 = vsub.s32 0, %v4032
        %v4034 = vrot.slane %v4029, %v4033
        %v4035 = vlaneseq
        %v4036 = vshrl.u32 %v4035, 7
        %v4037 = vsub.s32 1, %v4036
        %v4038 = vrot.slane %v4029, %v4037
        %v4039 = vlaneseq
        %v4040 = vshrl.u32 %v4039, 7
        %v4041 = vsub.s32 2, %v4040
        %v4042 = vrot.slane %v4029, %v4041
        %v4043 = vlaneseq
        %v4044 = vshrl.u32 %v4043, 7
        %v4045 = vsub.s32 3, %v4044
        %v4046 = vrot.slane %v4029, %v4045
        %v4115 = vunpack.c.l.b16 %v3965
        %v4116 = vunpack.c.h.b16 %v3965
        %v4117 = vunpack.c.l.b16 %v3966
        %v4118 = vunpack.c.h.b16 %v3966
        %v4119 = vunpack.c.l.b16 %v3967
        %v4120 = vunpack.c.h.b16 %v3967
        %v4121 = vunpack.c.l.b16 %v3968
        %v4122 = vunpack.c.h.b16 %v3968
        %v4123 = vunpack.c.l.b16 %v3969
        %v4124 = vunpack.c.h.b16 %v3969
        %v4125 = vunpack.c.l.b16 %v3970
        %v4126 = vunpack.c.h.b16 %v3970
        %v4127 = vunpack.c.l.b16 %v3971
        %v4128 = vunpack.c.h.b16 %v3971
        %v4129 = vunpack.c.l.b16 %v3972
        %v4130 = vunpack.c.h.b16 %v3972
        %v4131 = vunpack.c.l.b16 %v3973
        %v4132 = vunpack.c.h.b16 %v3973
        %v4133 = vunpack.c.l.b16 %v3974
        %v4134 = vunpack.c.h.b16 %v3974
        %v4135 = vunpack.c.l.b16 %v3975
        %v4136 = vunpack.c.h.b16 %v3975
        %v4137 = vunpack.c.l.b16 %v3976
        %v4138 = vunpack.c.h.b16 %v3976
        %v4139 = vunpack.c.l.b16 %v3977
        %v4140 = vunpack.c.h.b16 %v3977
        %v4141 = vunpack.c.l.b16 %v3978
        %v4142 = vunpack.c.h.b16 %v3978
        %v4143 = vunpack.c.l.b16 %v3979
        %v4144 = vunpack.c.h.b16 %v3979
        %v4145 = vunpack.c.l.b16 %v3980
        %v4146 = vunpack.c.h.b16 %v3980
        %v4147 = vunpack.c.l.b16 %v3981
        %v4148 = vunpack.c.h.b16 %v3981
        %v4149 = vunpack.c.l.b16 %v3982
        %v4150 = vunpack.c.h.b16 %v3982
        %v4151 = vunpack.c.l.b16 %v3983
        %v4152 = vunpack.c.h.b16 %v3983
        %v4153 = vunpack.c.l.b16 %v3984
        %v4154 = vunpack.c.h.b16 %v3984
        %v4155 = vunpack.c.l.b16 %v3985
        %v4156 = vunpack.c.h.b16 %v3985
        %v4157 = vunpack.c.l.b16 %v3986
        %v4158 = vunpack.c.h.b16 %v3986
        %v4159 = vunpack.c.l.b16 %v3987
        %v4160 = vunpack.c.h.b16 %v3987
        %v4161 = vunpack.c.l.b16 %v3988
        %v4162 = vunpack.c.h.b16 %v3988
        %v4163 = vunpack.c.l.b16 %v3989
        %v4164 = vunpack.c.h.b16 %v3989
        %v4165 = vunpack.c.l.b16 %v3990
        %v4166 = vunpack.c.h.b16 %v3990
        %v4167 = vunpack.c.l.b16 %v3991
        %v4168 = vunpack.c.h.b16 %v3991
        %v4169 = vunpack.c.l.b16 %v3992
        %v4170 = vunpack.c.h.b16 %v3992
        %v4171 = vunpack.c.l.b16 %v3993
        %v4172 = vunpack.c.h.b16 %v3993
        %v4173 = vunpack.c.l.b16 %v3994
        %v4174 = vunpack.c.h.b16 %v3994
        %v4175 = vunpack.c.l.b16 %v3995
        %v4176 = vunpack.c.h.b16 %v3995
        %v4177 = vunpack.c.l.b16 %v3996
        %v4178 = vunpack.c.h.b16 %v3996
        %v4179 = vunpack.c.l.b16 %v3997
        %v4180 = vunpack.c.h.b16 %v3997
        %v4181 = vunpack.c.l.b16 %v3998
        %v4182 = vunpack.c.h.b16 %v3998
        %v4183 = vunpack.c.l.b16 %v3999
        %v4184 = vunpack.c.h.b16 %v3999
        %v4185 = vunpack.c.l.b16 %v4000
        %v4186 = vunpack.c.h.b16 %v4000
        %v4187 = vunpack.c.l.b16 %v4001
        %v4188 = vunpack.c.h.b16 %v4001
        %v4189 = vunpack.c.l.b16 %v4002
        %v4190 = vunpack.c.h.b16 %v4002
        %v4191 = vunpack.c.l.b16 %v4003
        %v4192 = vunpack.c.h.b16 %v4003
        %v4193 = vunpack.c.l.b16 %v4004
        %v4194 = vunpack.c.h.b16 %v4004
        %v4195 = vunpack.c.l.b16 %v4005
        %v4196 = vunpack.c.h.b16 %v4005
        %v4197 = vunpack.c.l.b16 %v4006
        %v4198 = vunpack.c.h.b16 %v4006
        %v4199 = vunpack.c.l.b16 %v4007
        %v4200 = vunpack.c.h.b16 %v4007
        %v4201 = vunpack.c.l.b16 %v4008
        %v4202 = vunpack.c.h.b16 %v4008
        %v4203 = vunpack.c.l.b16 %v4009
        %v4204 = vunpack.c.h.b16 %v4009
        %v4205 = vunpack.c.l.b16 %v4010
        %v4206 = vunpack.c.h.b16 %v4010
        %v4207 = vunpack.c.l.b16 %v4011
        %v4208 = vunpack.c.h.b16 %v4011
        %v4209 = vunpack.c.l.b16 %v4012
        %v4210 = vunpack.c.h.b16 %v4012
        %v4211 = vunpack.c.l.b16 %v4013
        %v4212 = vunpack.c.h.b16 %v4013
        %v4213 = vunpack.c.l.b16 %v4014
        %v4214 = vunpack.c.h.b16 %v4014
        %v4215 = vunpack.c.l.b16 %v4015
        %v4216 = vunpack.c.h.b16 %v4015
        %v4217 = vunpack.c.l.b16 %v4016
        %v4218 = vunpack.c.h.b16 %v4016
        %v4219 = vunpack.c.l.b16 %v4017
        %v4220 = vunpack.c.h.b16 %v4017
        %v4221 = vunpack.c.l.b16 %v4018
        %v4222 = vunpack.c.h.b16 %v4018
        %v4223 = vunpack.c.l.b16 %v4019
        %v4224 = vunpack.c.h.b16 %v4019
        %v4225 = vunpack.c.l.b16 %v4020
        %v4226 = vunpack.c.h.b16 %v4020
        %v4227 = vunpack.c.l.b16 %v4021
        %v4228 = vunpack.c.h.b16 %v4021
        %v4229 = vunpack.c.l.b16 %v4022
        %v4230 = vunpack.c.h.b16 %v4022
        %v4231 = vunpack.c.l.b16 %v4023
        %v4232 = vunpack.c.h.b16 %v4023
        %v4233 = vunpack.c.l.b16 %v4024
        %v4234 = vunpack.c.h.b16 %v4024
        %v4235 = vunpack.c.l.b16 %v4025
        %v4236 = vunpack.c.h.b16 %v4025
        %v4237 = vunpack.c.l.b16 %v4026
        %v4238 = vunpack.c.h.b16 %v4026
        %v4239 = vunpack.c.l.b16 %v4027
        %v4240 = vunpack.c.h.b16 %v4027
        %v4241 = vunpack.c.l.b16 %v4028
        %v4242 = vunpack.c.h.b16 %v4028
        %v4243 = vpack.c.b16 %v4119, %v4115
        %v4244 = vpack.c.b16 %v4120, %v4116
        %v4245 = vpack.c.b16 %v4121, %v4117
        %v4246 = vpack.c.b16 %v4122, %v4118
        %v4247 = vpack.c.b16 %v4127, %v4123
        %v4248 = vpack.c.b16 %v4128, %v4124
        %v4249 = vpack.c.b16 %v4129, %v4125
        %v4250 = vpack.c.b16 %v4130, %v4126
        %v4251 = vpack.c.b16 %v4135, %v4131
        %v4252 = vpack.c.b16 %v4136, %v4132
        %v4253 = vpack.c.b16 %v4137, %v4133
        %v4254 = vpack.c.b16 %v4138, %v4134
        %v4255 = vpack.c.b16 %v4143, %v4139
        %v4256 = vpack.c.b16 %v4144, %v4140
        %v4257 = vpack.c.b16 %v4145, %v4141
        %v4258 = vpack.c.b16 %v4146, %v4142
        %v4259 = vpack.c.b16 %v4151, %v4147
        %v4260 = vpack.c.b16 %v4152, %v4148
        %v4261 = vpack.c.b16 %v4153, %v4149
        %v4262 = vpack.c.b16 %v4154, %v4150
        %v4263 = vpack.c.b16 %v4159, %v4155
        %v4264 = vpack.c.b16 %v4160, %v4156
        %v4265 = vpack.c.b16 %v4161, %v4157
        %v4266 = vpack.c.b16 %v4162, %v4158
        %v4267 = vpack.c.b16 %v4167, %v4163
        %v4268 = vpack.c.b16 %v4168, %v4164
        %v4269 = vpack.c.b16 %v4169, %v4165
        %v4270 = vpack.c.b16 %v4170, %v4166
        %v4271 = vpack.c.b16 %v4175, %v4171
        %v4272 = vpack.c.b16 %v4176, %v4172
        %v4273 = vpack.c.b16 %v4177, %v4173
        %v4274 = vpack.c.b16 %v4178, %v4174
        %v4275 = vpack.c.b16 %v4183, %v4179
        %v4276 = vpack.c.b16 %v4184, %v4180
        %v4277 = vpack.c.b16 %v4185, %v4181
        %v4278 = vpack.c.b16 %v4186, %v4182
        %v4279 = vpack.c.b16 %v4191, %v4187
        %v4280 = vpack.c.b16 %v4192, %v4188
        %v4281 = vpack.c.b16 %v4193, %v4189
        %v4282 = vpack.c.b16 %v4194, %v4190
        %v4283 = vpack.c.b16 %v4199, %v4195
        %v4284 = vpack.c.b16 %v4200, %v4196
        %v4285 = vpack.c.b16 %v4201, %v4197
        %v4286 = vpack.c.b16 %v4202, %v4198
        %v4287 = vpack.c.b16 %v4207, %v4203
        %v4288 = vpack.c.b16 %v4208, %v4204
        %v4289 = vpack.c.b16 %v4209, %v4205
        %v4290 = vpack.c.b16 %v4210, %v4206
        %v4291 = vpack.c.b16 %v4215, %v4211
        %v4292 = vpack.c.b16 %v4216, %v4212
        %v4293 = vpack.c.b16 %v4217, %v4213
        %v4294 = vpack.c.b16 %v4218, %v4214
        %v4295 = vpack.c.b16 %v4223, %v4219
        %v4296 = vpack.c.b16 %v4224, %v4220
        %v4297 = vpack.c.b16 %v4225, %v4221
        %v4298 = vpack.c.b16 %v4226, %v4222
        %v4299 = vpack.c.b16 %v4231, %v4227
        %v4300 = vpack.c.b16 %v4232, %v4228
        %v4301 = vpack.c.b16 %v4233, %v4229
        %v4302 = vpack.c.b16 %v4234, %v4230
        %v4303 = vpack.c.b16 %v4239, %v4235
        %v4304 = vpack.c.b16 %v4240, %v4236
        %v4305 = vpack.c.b16 %v4241, %v4237
        %v4306 = vpack.c.b16 %v4242, %v4238
        %4371 = vmatprep.subr.bf16.mxu0 %v4272
        %4372 = vmatpush1.bf16.msra.mxu0 %v4271
        %4373 = vmatprep.subr.bf16.mxu0 %v4268
        %4374 = vmatpush1.bf16.msra.mxu0 %v4267
        %4375 = vmatprep.subr.bf16.mxu0 %v4264
        %4376 = vmatpush1.bf16.msra.mxu0 %v4263
        %4377 = vmatprep.subr.bf16.mxu0 %v4260
        %4378 = vmatpush1.bf16.msra.mxu0 %v4259
        %4379 = vmatprep.subr.bf16.mxu0 %v4256
        %4380 = vmatpush1.bf16.msra.mxu0 %v4255
        %4381 = vmatprep.subr.bf16.mxu0 %v4252
        %4382 = vmatpush1.bf16.msra.mxu0 %v4251
        %4383 = vmatprep.subr.bf16.mxu0 %v4248
        %4384 = vmatpush1.bf16.msra.mxu0 %v4247
        %4385 = vmatprep.subr.bf16.mxu0 %v4244
        %4386 = vmatpush1.bf16.msra.mxu0 %v4243
        %4387 = vmatprep.subr.bf16.mxu0 %v4304
        %4388 = vmatpush2.bf16.msra.mxu0 %v4303
        %4389 = vmatprep.subr.bf16.mxu0 %v4300
        %4390 = vmatpush2.bf16.msra.mxu0 %v4299
        %4391 = vmatprep.subr.bf16.mxu0 %v4296
        %4392 = vmatpush2.bf16.msra.mxu0 %v4295
        %4393 = vmatprep.subr.bf16.mxu0 %v4292
        %4394 = vmatpush2.bf16.msra.mxu0 %v4291
        %4395 = vmatprep.subr.bf16.mxu0 %v4288
        %4396 = vmatpush2.bf16.msra.mxu0 %v4287
        %4397 = vmatprep.subr.bf16.mxu0 %v4284
        %4398 = vmatpush2.bf16.msra.mxu0 %v4283
        %4399 = vmatprep.subr.bf16.mxu0 %v4280
        %4400 = vmatpush2.bf16.msra.mxu0 %v4279
        %4401 = vmatprep.subr.bf16.mxu0 %v4276
        %4402 = vmatpush2.bf16.msra.mxu0 %v4275
        %4403 = vmatprep.mubr.bf16.mxu0 %v3950
        %4404 = vmatmul.mubr.bf16.gmra.mxu0 %v3949
        %v4405 = vpop.f32.mrf.mxu0
        %v4406 = vadd.f32 %v4034, %v4405
        %v4407 = vpop.f32.mrf.mxu0
        %v4408 = vadd.f32 %v4038, %v4407
        %v4409 = vpop.f32.mrf.mxu0
        %v4410 = vadd.f32 %v4034, %v4409
        %v4411 = vpop.f32.mrf.mxu0
        %v4412 = vadd.f32 %v4038, %v4411
        %4413 = vmatprep.mubr.bf16.mxu0 %v3952
        %4414 = vmatmul.mubr.bf16.gmra.mxu0 %v3951
        %v4415 = vpop.f32.mrf.mxu0
        %v4416 = vadd.f32 %v4034, %v4415
        %v4417 = vpop.f32.mrf.mxu0
        %v4418 = vadd.f32 %v4038, %v4417
        %v4419 = vpop.f32.mrf.mxu0
        %v4420 = vadd.f32 %v4034, %v4419
        %v4421 = vpop.f32.mrf.mxu0
        %v4422 = vadd.f32 %v4038, %v4421
        %4423 = vmatprep.mubr.bf16.mxu0 %v3954
        %4424 = vmatmul.mubr.bf16.gmra.mxu0 %v3953
        %v4425 = vpop.f32.mrf.mxu0
        %v4426 = vadd.f32 %v4034, %v4425
        %v4427 = vpop.f32.mrf.mxu0
        %v4428 = vadd.f32 %v4038, %v4427
        %v4429 = vpop.f32.mrf.mxu0
        %v4430 = vadd.f32 %v4034, %v4429
        %v4431 = vpop.f32.mrf.mxu0
        %v4432 = vadd.f32 %v4038, %v4431
        %4433 = vmatprep.mubr.bf16.mxu0 %v3956
        %4434 = vmatmul.mubr.bf16.gmra.mxu0 %v3955
        %v4435 = vpop.f32.mrf.mxu0
        %v4436 = vadd.f32 %v4034, %v4435
        %v4437 = vpop.f32.mrf.mxu0
        %v4438 = vadd.f32 %v4038, %v4437
        %v4439 = vpop.f32.mrf.mxu0
        %v4440 = vadd.f32 %v4034, %v4439
        %v4441 = vpop.f32.mrf.mxu0
        %v4442 = vadd.f32 %v4038, %v4441
        %4443 = vmatprep.mubr.bf16.mxu0 %v3958
        %4444 = vmatmul.mubr.bf16.gmra.mxu0 %v3957
        %v4445 = vpop.f32.mrf.mxu0
        %v4446 = vadd.f32 %v4034, %v4445
        %v4447 = vpop.f32.mrf.mxu0
        %v4448 = vadd.f32 %v4038, %v4447
        %v4449 = vpop.f32.mrf.mxu0
        %v4450 = vadd.f32 %v4034, %v4449
        %v4451 = vpop.f32.mrf.mxu0
        %v4452 = vadd.f32 %v4038, %v4451
        %4453 = vmatprep.mubr.bf16.mxu0 %v3960
        %4454 = vmatmul.mubr.bf16.gmra.mxu0 %v3959
        %v4455 = vpop.f32.mrf.mxu0
        %v4456 = vadd.f32 %v4034, %v4455
        %v4457 = vpop.f32.mrf.mxu0
        %v4458 = vadd.f32 %v4038, %v4457
        %v4459 = vpop.f32.mrf.mxu0
        %v4460 = vadd.f32 %v4034, %v4459
        %v4461 = vpop.f32.mrf.mxu0
        %v4462 = vadd.f32 %v4038, %v4461
        %4463 = vmatprep.mubr.bf16.mxu0 %v3962
        %4464 = vmatmul.mubr.bf16.gmra.mxu0 %v3961
        %v4465 = vpop.f32.mrf.mxu0
        %v4466 = vadd.f32 %v4034, %v4465
        %v4467 = vpop.f32.mrf.mxu0
        %v4468 = vadd.f32 %v4038, %v4467
        %v4469 = vpop.f32.mrf.mxu0
        %v4470 = vadd.f32 %v4034, %v4469
        %v4471 = vpop.f32.mrf.mxu0
        %v4472 = vadd.f32 %v4038, %v4471
        %4473 = vmatprep.mubr.bf16.mxu0 %v3964
        %4474 = vmatmul.mubr.bf16.gmra.mxu0 %v3963
        %v4475 = vpop.f32.mrf.mxu0
        %v4476 = vadd.f32 %v4034, %v4475
        %v4477 = vpop.f32.mrf.mxu0
        %v4478 = vadd.f32 %v4038, %v4477
        %v4479 = vpop.f32.mrf.mxu0
        %v4480 = vadd.f32 %v4034, %v4479
        %v4481 = vpop.f32.mrf.mxu0
        %v4482 = vadd.f32 %v4038, %v4481
        %4483 = vdwg.mxu0
        %4484 = vmatprep.subr.bf16.mxu0 %v4274
        %4485 = vmatpush1.bf16.msra.mxu0 %v4273
        %4486 = vmatprep.subr.bf16.mxu0 %v4270
        %4487 = vmatpush1.bf16.msra.mxu0 %v4269
        %4488 = vmatprep.subr.bf16.mxu0 %v4266
        %4489 = vmatpush1.bf16.msra.mxu0 %v4265
        %4490 = vmatprep.subr.bf16.mxu0 %v4262
        %4491 = vmatpush1.bf16.msra.mxu0 %v4261
        %4492 = vmatprep.subr.bf16.mxu0 %v4258
        %4493 = vmatpush1.bf16.msra.mxu0 %v4257
        %4494 = vmatprep.subr.bf16.mxu0 %v4254
        %4495 = vmatpush1.bf16.msra.mxu0 %v4253
        %4496 = vmatprep.subr.bf16.mxu0 %v4250
        %4497 = vmatpush1.bf16.msra.mxu0 %v4249
        %4498 = vmatprep.subr.bf16.mxu0 %v4246
        %4499 = vmatpush1.bf16.msra.mxu0 %v4245
        %4500 = vmatprep.subr.bf16.mxu0 %v4306
        %4501 = vmatpush2.bf16.msra.mxu0 %v4305
        %4502 = vmatprep.subr.bf16.mxu0 %v4302
        %4503 = vmatpush2.bf16.msra.mxu0 %v4301
        %4504 = vmatprep.subr.bf16.mxu0 %v4298
        %4505 = vmatpush2.bf16.msra.mxu0 %v4297
        %4506 = vmatprep.subr.bf16.mxu0 %v4294
        %4507 = vmatpush2.bf16.msra.mxu0 %v4293
        %4508 = vmatprep.subr.bf16.mxu0 %v4290
        %4509 = vmatpush2.bf16.msra.mxu0 %v4289
        %4510 = vmatprep.subr.bf16.mxu0 %v4286
        %4511 = vmatpush2.bf16.msra.mxu0 %v4285
        %4512 = vmatprep.subr.bf16.mxu0 %v4282
        %4513 = vmatpush2.bf16.msra.mxu0 %v4281
        %4514 = vmatprep.subr.bf16.mxu0 %v4278
        %4515 = vmatpush2.bf16.msra.mxu0 %v4277
        %4516 = vmatprep.mubr.bf16.mxu0 %v3950
        %4517 = vmatmul.mubr.bf16.gmra.mxu0 %v3949
        %v4518 = vpop.f32.mrf.mxu0
        %v4519 = vadd.f32 %v4042, %v4518
        %v4520 = vpop.f32.mrf.mxu0
        %v4521 = vadd.f32 %v4046, %v4520
        %v4522 = vpop.f32.mrf.mxu0
        %v4523 = vadd.f32 %v4042, %v4522
        %v4524 = vpop.f32.mrf.mxu0
        %v4525 = vadd.f32 %v4046, %v4524
        %4526 = vmatprep.mubr.bf16.mxu0 %v3952
        %4527 = vmatmul.mubr.bf16.gmra.mxu0 %v3951
        %v4528 = vpop.f32.mrf.mxu0
        %v4529 = vadd.f32 %v4042, %v4528
        %v4530 = vpop.f32.mrf.mxu0
        %v4531 = vadd.f32 %v4046, %v4530
        %v4532 = vpop.f32.mrf.mxu0
        %v4533 = vadd.f32 %v4042, %v4532
        %v4534 = vpop.f32.mrf.mxu0
        %v4535 = vadd.f32 %v4046, %v4534
        %4536 = vmatprep.mubr.bf16.mxu0 %v3954
        %4537 = vmatmul.mubr.bf16.gmra.mxu0 %v3953
        %v4538 = vpop.f32.mrf.mxu0
        %v4539 = vadd.f32 %v4042, %v4538
        %v4540 = vpop.f32.mrf.mxu0
        %v4541 = vadd.f32 %v4046, %v4540
        %v4542 = vpop.f32.mrf.mxu0
        %v4543 = vadd.f32 %v4042, %v4542
        %v4544 = vpop.f32.mrf.mxu0
        %v4545 = vadd.f32 %v4046, %v4544
        %4546 = vmatprep.mubr.bf16.mxu0 %v3956
        %4547 = vmatmul.mubr.bf16.gmra.mxu0 %v3955
        %v4548 = vpop.f32.mrf.mxu0
        %v4549 = vadd.f32 %v4042, %v4548
        %v4550 = vpop.f32.mrf.mxu0
        %v4551 = vadd.f32 %v4046, %v4550
        %v4552 = vpop.f32.mrf.mxu0
        %v4553 = vadd.f32 %v4042, %v4552
        %v4554 = vpop.f32.mrf.mxu0
        %v4555 = vadd.f32 %v4046, %v4554
        %4556 = vmatprep.mubr.bf16.mxu0 %v3958
        %4557 = vmatmul.mubr.bf16.gmra.mxu0 %v3957
        %v4558 = vpop.f32.mrf.mxu0
        %v4559 = vadd.f32 %v4042, %v4558
        %v4560 = vpop.f32.mrf.mxu0
        %v4561 = vadd.f32 %v4046, %v4560
        %v4562 = vpop.f32.mrf.mxu0
        %v4563 = vadd.f32 %v4042, %v4562
        %v4564 = vpop.f32.mrf.mxu0
        %v4565 = vadd.f32 %v4046, %v4564
        %4566 = vmatprep.mubr.bf16.mxu0 %v3960
        %4567 = vmatmul.mubr.bf16.gmra.mxu0 %v3959
        %v4568 = vpop.f32.mrf.mxu0
        %v4569 = vadd.f32 %v4042, %v4568
        %v4570 = vpop.f32.mrf.mxu0
        %v4571 = vadd.f32 %v4046, %v4570
        %v4572 = vpop.f32.mrf.mxu0
        %v4573 = vadd.f32 %v4042, %v4572
        %v4574 = vpop.f32.mrf.mxu0
        %v4575 = vadd.f32 %v4046, %v4574
        %4576 = vmatprep.mubr.bf16.mxu0 %v3962
        %4577 = vmatmul.mubr.bf16.gmra.mxu0 %v3961
        %v4578 = vpop.f32.mrf.mxu0
        %v4579 = vadd.f32 %v4042, %v4578
        %v4580 = vpop.f32.mrf.mxu0
        %v4581 = vadd.f32 %v4046, %v4580
        %v4582 = vpop.f32.mrf.mxu0
        %v4583 = vadd.f32 %v4042, %v4582
        %v4584 = vpop.f32.mrf.mxu0
        %v4585 = vadd.f32 %v4046, %v4584
        %4586 = vmatprep.mubr.bf16.mxu0 %v3964
        %4587 = vmatmul.mubr.bf16.gmra.mxu0 %v3963
        %v4588 = vpop.f32.mrf.mxu0
        %v4589 = vadd.f32 %v4042, %v4588
        %v4590 = vpop.f32.mrf.mxu0
        %v4591 = vadd.f32 %v4046, %v4590
        %v4592 = vpop.f32.mrf.mxu0
        %v4593 = vadd.f32 %v4042, %v4592
        %v4594 = vpop.f32.mrf.mxu0
        %v4595 = vadd.f32 %v4046, %v4594
        %4596 = vdwg.mxu0
        %v4597 = vmax.f32 %v4406, 0.0
        %v4598 = vmax.f32 %v4408, 0.0
        %v4599 = vmax.f32 %v4519, 0.0
        %v4600 = vmax.f32 %v4521, 0.0
        %v4601 = vmax.f32 %v4410, 0.0
        %v4602 = vmax.f32 %v4412, 0.0
        %v4603 = vmax.f32 %v4523, 0.0
        %v4604 = vmax.f32 %v4525, 0.0
        %v4605 = vmax.f32 %v4416, 0.0
        %v4606 = vmax.f32 %v4418, 0.0
        %v4607 = vmax.f32 %v4529, 0.0
        %v4608 = vmax.f32 %v4531, 0.0
        %v4609 = vmax.f32 %v4420, 0.0
        %v4610 = vmax.f32 %v4422, 0.0
        %v4611 = vmax.f32 %v4533, 0.0
        %v4612 = vmax.f32 %v4535, 0.0
        %v4613 = vmax.f32 %v4426, 0.0
        %v4614 = vmax.f32 %v4428, 0.0
        %v4615 = vmax.f32 %v4539, 0.0
        %v4616 = vmax.f32 %v4541, 0.0
        %v4617 = vmax.f32 %v4430, 0.0
        %v4618 = vmax.f32 %v4432, 0.0
        %v4619 = vmax.f32 %v4543, 0.0
        %v4620 = vmax.f32 %v4545, 0.0
        %v4621 = vmax.f32 %v4436, 0.0
        %v4622 = vmax.f32 %v4438, 0.0
        %v4623 = vmax.f32 %v4549, 0.0
        %v4624 = vmax.f32 %v4551, 0.0
        %v4625 = vmax.f32 %v4440, 0.0
        %v4626 = vmax.f32 %v4442, 0.0
        %v4627 = vmax.f32 %v4553, 0.0
        %v4628 = vmax.f32 %v4555, 0.0
        %v4629 = vmax.f32 %v4446, 0.0
        %v4630 = vmax.f32 %v4448, 0.0
        %v4631 = vmax.f32 %v4559, 0.0
        %v4632 = vmax.f32 %v4561, 0.0
        %v4633 = vmax.f32 %v4450, 0.0
        %v4634 = vmax.f32 %v4452, 0.0
        %v4635 = vmax.f32 %v4563, 0.0
        %v4636 = vmax.f32 %v4565, 0.0
        %v4637 = vmax.f32 %v4456, 0.0
        %v4638 = vmax.f32 %v4458, 0.0
        %v4639 = vmax.f32 %v4569, 0.0
        %v4640 = vmax.f32 %v4571, 0.0
        %v4641 = vmax.f32 %v4460, 0.0
        %v4642 = vmax.f32 %v4462, 0.0
        %v4643 = vmax.f32 %v4573, 0.0
        %v4644 = vmax.f32 %v4575, 0.0
        %v4645 = vmax.f32 %v4466, 0.0
        %v4646 = vmax.f32 %v4468, 0.0
        %v4647 = vmax.f32 %v4579, 0.0
        %v4648 = vmax.f32 %v4581, 0.0
        %v4649 = vmax.f32 %v4470, 0.0
        %v4650 = vmax.f32 %v4472, 0.0
        %v4651 = vmax.f32 %v4583, 0.0
        %v4652 = vmax.f32 %v4585, 0.0
        %v4653 = vmax.f32 %v4476, 0.0
        %v4654 = vmax.f32 %v4478, 0.0
        %v4655 = vmax.f32 %v4589, 0.0
        %v4656 = vmax.f32 %v4591, 0.0
        %v4657 = vmax.f32 %v4480, 0.0
        %v4658 = vmax.f32 %v4482, 0.0
        %v4659 = vmax.f32 %v4593, 0.0
        %v4660 = vmax.f32 %v4595, 0.0
        %v4661 = vpack.c.bf16 %v4601, %v4597
        %v4662 = vpack.c.bf16 %v4602, %v4598
        %v4663 = vpack.c.bf16 %v4603, %v4599
        %v4664 = vpack.c.bf16 %v4604, %v4600
        %v4665 = vpack.c.bf16 %v4609, %v4605
        %v4666 = vpack.c.bf16 %v4610, %v4606
        %v4667 = vpack.c.bf16 %v4611, %v4607
        %v4668 = vpack.c.bf16 %v4612, %v4608
        %v4669 = vpack.c.bf16 %v4617, %v4613
        %v4670 = vpack.c.bf16 %v4618, %v4614
        %v4671 = vpack.c.bf16 %v4619, %v4615
        %v4672 = vpack.c.bf16 %v4620, %v4616
        %v4673 = vpack.c.bf16 %v4625, %v4621
        %v4674 = vpack.c.bf16 %v4626, %v4622
        %v4675 = vpack.c.bf16 %v4627, %v4623
        %v4676 = vpack.c.bf16 %v4628, %v4624
        %v4677 = vpack.c.bf16 %v4633, %v4629
        %v4678 = vpack.c.bf16 %v4634, %v4630
        %v4679 = vpack.c.bf16 %v4635, %v4631
        %v4680 = vpack.c.bf16 %v4636, %v4632
        %v4681 = vpack.c.bf16 %v4641, %v4637
        %v4682 = vpack.c.bf16 %v4642, %v4638
        %v4683 = vpack.c.bf16 %v4643, %v4639
        %v4684 = vpack.c.bf16 %v4644, %v4640
        %v4685 = vpack.c.bf16 %v4649, %v4645
        %v4686 = vpack.c.bf16 %v4650, %v4646
        %v4687 = vpack.c.bf16 %v4651, %v4647
        %v4688 = vpack.c.bf16 %v4652, %v4648
        %v4689 = vpack.c.bf16 %v4657, %v4653
        %v4690 = vpack.c.bf16 %v4658, %v4654
        %v4691 = vpack.c.bf16 %v4659, %v4655
        %v4692 = vpack.c.bf16 %v4660, %v4656
        %v4693 = vld [vmem:[#allocation14] sm:$0xf]
        %v4694 = vld [vmem:[#allocation14 + $0x4] sm:$0xf]
        %v4695 = vld [vmem:[#allocation14 + $0x8] sm:$0xf]
        %v4696 = vld [vmem:[#allocation14 + $0xc] sm:$0xf]
        %v4697 = vld [vmem:[#allocation14 + $0x10] sm:$0xf]
        %v4698 = vld [vmem:[#allocation14 + $0x14] sm:$0xf]
        %v4699 = vld [vmem:[#allocation14 + $0x18] sm:$0xf]
        %v4700 = vld [vmem:[#allocation14 + $0x1c] sm:$0xf]
        %v4701 = vld [vmem:[#allocation14 + $0x20] sm:$0xf]
        %v4702 = vld [vmem:[#allocation14 + $0x24] sm:$0xf]
        %v4703 = vld [vmem:[#allocation14 + $0x28] sm:$0xf]
        %v4704 = vld [vmem:[#allocation14 + $0x2c] sm:$0xf]
        %v4705 = vld [vmem:[#allocation14 + $0x30] sm:$0xf]
        %v4706 = vld [vmem:[#allocation14 + $0x34] sm:$0xf]
        %v4707 = vld [vmem:[#allocation14 + $0x38] sm:$0xf]
        %v4708 = vld [vmem:[#allocation14 + $0x3c] sm:$0xf]
        %v4709 = vld [vmem:[#allocation14 + $0x40] sm:$0xf]
        %v4710 = vld [vmem:[#allocation14 + $0x44] sm:$0xf]
        %v4711 = vld [vmem:[#allocation14 + $0x48] sm:$0xf]
        %v4712 = vld [vmem:[#allocation14 + $0x4c] sm:$0xf]
        %v4713 = vld [vmem:[#allocation14 + $0x50] sm:$0xf]
        %v4714 = vld [vmem:[#allocation14 + $0x54] sm:$0xf]
        %v4715 = vld [vmem:[#allocation14 + $0x58] sm:$0xf]
        %v4716 = vld [vmem:[#allocation14 + $0x5c] sm:$0xf]
        %v4717 = vld [vmem:[#allocation14 + $0x60] sm:$0xf]
        %v4718 = vld [vmem:[#allocation14 + $0x64] sm:$0xf]
        %v4719 = vld [vmem:[#allocation14 + $0x68] sm:$0xf]
        %v4720 = vld [vmem:[#allocation14 + $0x6c] sm:$0xf]
        %v4721 = vld [vmem:[#allocation14 + $0x70] sm:$0xf]
        %v4722 = vld [vmem:[#allocation14 + $0x74] sm:$0xf]
        %v4723 = vld [vmem:[#allocation14 + $0x78] sm:$0xf]
        %v4724 = vld [vmem:[#allocation14 + $0x7c] sm:$0xf]
        %v4725 = vld [vmem:[%s12] sm:$0x1]
        %v4727 = vlaneseq
        %v4728 = vshrl.u32 %v4727, 7
        %v4729 = vsub.s32 0, %v4728
        %v4730 = vrot.slane %v4725, %v4729
        %v4764 = vunpack.c.l.b16 %v4693
        %v4765 = vunpack.c.l.b16 %v4694
        %v4766 = vunpack.c.l.b16 %v4695
        %v4767 = vunpack.c.l.b16 %v4696
        %v4768 = vunpack.c.l.b16 %v4697
        %v4769 = vunpack.c.l.b16 %v4698
        %v4770 = vunpack.c.l.b16 %v4699
        %v4771 = vunpack.c.l.b16 %v4700
        %v4772 = vunpack.c.l.b16 %v4701
        %v4773 = vunpack.c.l.b16 %v4702
        %v4774 = vunpack.c.l.b16 %v4703
        %v4775 = vunpack.c.l.b16 %v4704
        %v4776 = vunpack.c.l.b16 %v4705
        %v4777 = vunpack.c.l.b16 %v4706
        %v4778 = vunpack.c.l.b16 %v4707
        %v4779 = vunpack.c.l.b16 %v4708
        %v4780 = vunpack.c.l.b16 %v4709
        %v4781 = vunpack.c.l.b16 %v4710
        %v4782 = vunpack.c.l.b16 %v4711
        %v4783 = vunpack.c.l.b16 %v4712
        %v4784 = vunpack.c.l.b16 %v4713
        %v4785 = vunpack.c.l.b16 %v4714
        %v4786 = vunpack.c.l.b16 %v4715
        %v4787 = vunpack.c.l.b16 %v4716
        %v4788 = vunpack.c.l.b16 %v4717
        %v4789 = vunpack.c.l.b16 %v4718
        %v4790 = vunpack.c.l.b16 %v4719
        %v4791 = vunpack.c.l.b16 %v4720
        %v4792 = vunpack.c.l.b16 %v4721
        %v4793 = vunpack.c.l.b16 %v4722
        %v4794 = vunpack.c.l.b16 %v4723
        %v4795 = vunpack.c.l.b16 %v4724
        %v4796 = vpack.c.b16 %v4765, %v4764
        %v4797 = vpack.c.b16 %v4767, %v4766
        %v4798 = vpack.c.b16 %v4769, %v4768
        %v4799 = vpack.c.b16 %v4771, %v4770
        %v4800 = vpack.c.b16 %v4773, %v4772
        %v4801 = vpack.c.b16 %v4775, %v4774
        %v4802 = vpack.c.b16 %v4777, %v4776
        %v4803 = vpack.c.b16 %v4779, %v4778
        %v4804 = vpack.c.b16 %v4781, %v4780
        %v4805 = vpack.c.b16 %v4783, %v4782
        %v4806 = vpack.c.b16 %v4785, %v4784
        %v4807 = vpack.c.b16 %v4787, %v4786
        %v4808 = vpack.c.b16 %v4789, %v4788
        %v4809 = vpack.c.b16 %v4791, %v4790
        %v4810 = vpack.c.b16 %v4793, %v4792
        %v4811 = vpack.c.b16 %v4795, %v4794
        %4828 = vmatprep.subr.bf16.mxu0 0
        %4829 = vmatpush1.bf16.msra.mxu0 %v4803
        %4830 = vmatprep.subr.bf16.mxu0 0
        %4831 = vmatpush1.bf16.msra.mxu0 %v4802
        %4832 = vmatprep.subr.bf16.mxu0 0
        %4833 = vmatpush1.bf16.msra.mxu0 %v4801
        %4834 = vmatprep.subr.bf16.mxu0 0
        %4835 = vmatpush1.bf16.msra.mxu0 %v4800
        %4836 = vmatprep.subr.bf16.mxu0 0
        %4837 = vmatpush1.bf16.msra.mxu0 %v4799
        %4838 = vmatprep.subr.bf16.mxu0 0
        %4839 = vmatpush1.bf16.msra.mxu0 %v4798
        %4840 = vmatprep.subr.bf16.mxu0 0
        %4841 = vmatpush1.bf16.msra.mxu0 %v4797
        %4842 = vmatprep.subr.bf16.mxu0 0
        %4843 = vmatpush1.bf16.msra.mxu0 %v4796
        %4844 = vmatprep.subr.bf16.mxu0 0
        %4845 = vmatpush2.bf16.msra.mxu0 %v4811
        %4846 = vmatprep.subr.bf16.mxu0 0
        %4847 = vmatpush2.bf16.msra.mxu0 %v4810
        %4848 = vmatprep.subr.bf16.mxu0 0
        %4849 = vmatpush2.bf16.msra.mxu0 %v4809
        %4850 = vmatprep.subr.bf16.mxu0 0
        %4851 = vmatpush2.bf16.msra.mxu0 %v4808
        %4852 = vmatprep.subr.bf16.mxu0 0
        %4853 = vmatpush2.bf16.msra.mxu0 %v4807
        %4854 = vmatprep.subr.bf16.mxu0 0
        %4855 = vmatpush2.bf16.msra.mxu0 %v4806
        %4856 = vmatprep.subr.bf16.mxu0 0
        %4857 = vmatpush2.bf16.msra.mxu0 %v4805
        %4858 = vmatprep.subr.bf16.mxu0 0
        %4859 = vmatpush2.bf16.msra.mxu0 %v4804
        %4860 = vmatprep.mubr.bf16.mxu0 %v4662
        %4861 = vmatmul.mubr.bf16.gmra.mxu0 %v4661
        %v4862 = vpop.f32.mrf.mxu0
        %v4863 = vadd.f32 %v4730, %v4862
        %v4864 = vpop.f32.mrf.mxu0
        %v4865 = vpop.f32.mrf.mxu0
        %v4866 = vadd.f32 %v4730, %v4865
        %v4867 = vpop.f32.mrf.mxu0
        %4868 = vmatprep.mubr.bf16.mxu0 %v4666
        %4869 = vmatmul.mubr.bf16.gmra.mxu0 %v4665
        %v4870 = vpop.f32.mrf.mxu0
        %v4871 = vadd.f32 %v4730, %v4870
        %v4872 = vpop.f32.mrf.mxu0
        %v4873 = vpop.f32.mrf.mxu0
        %v4874 = vadd.f32 %v4730, %v4873
        %v4875 = vpop.f32.mrf.mxu0
        %4876 = vmatprep.mubr.bf16.mxu0 %v4670
        %4877 = vmatmul.mubr.bf16.gmra.mxu0 %v4669
        %v4878 = vpop.f32.mrf.mxu0
        %v4879 = vadd.f32 %v4730, %v4878
        %v4880 = vpop.f32.mrf.mxu0
        %v4881 = vpop.f32.mrf.mxu0
        %v4882 = vadd.f32 %v4730, %v4881
        %v4883 = vpop.f32.mrf.mxu0
        %4884 = vmatprep.mubr.bf16.mxu0 %v4674
        %4885 = vmatmul.mubr.bf16.gmra.mxu0 %v4673
        %v4886 = vpop.f32.mrf.mxu0
        %v4887 = vadd.f32 %v4730, %v4886
        %v4888 = vpop.f32.mrf.mxu0
        %v4889 = vpop.f32.mrf.mxu0
        %v4890 = vadd.f32 %v4730, %v4889
        %v4891 = vpop.f32.mrf.mxu0
        %4892 = vmatprep.mubr.bf16.mxu0 %v4678
        %4893 = vmatmul.mubr.bf16.gmra.mxu0 %v4677
        %v4894 = vpop.f32.mrf.mxu0
        %v4895 = vadd.f32 %v4730, %v4894
        %v4896 = vpop.f32.mrf.mxu0
        %v4897 = vpop.f32.mrf.mxu0
        %v4898 = vadd.f32 %v4730, %v4897
        %v4899 = vpop.f32.mrf.mxu0
        %4900 = vmatprep.mubr.bf16.mxu0 %v4682
        %4901 = vmatmul.mubr.bf16.gmra.mxu0 %v4681
        %v4902 = vpop.f32.mrf.mxu0
        %v4903 = vadd.f32 %v4730, %v4902
        %v4904 = vpop.f32.mrf.mxu0
        %v4905 = vpop.f32.mrf.mxu0
        %v4906 = vadd.f32 %v4730, %v4905
        %v4907 = vpop.f32.mrf.mxu0
        %4908 = vmatprep.mubr.bf16.mxu0 %v4686
        %4909 = vmatmul.mubr.bf16.gmra.mxu0 %v4685
        %v4910 = vpop.f32.mrf.mxu0
        %v4911 = vadd.f32 %v4730, %v4910
        %v4912 = vpop.f32.mrf.mxu0
        %v4913 = vpop.f32.mrf.mxu0
        %v4914 = vadd.f32 %v4730, %v4913
        %v4915 = vpop.f32.mrf.mxu0
        %4916 = vmatprep.mubr.bf16.mxu0 %v4690
        %4917 = vmatmul.mubr.bf16.gmra.mxu0 %v4689
        %v4918 = vpop.f32.mrf.mxu0
        %v4919 = vadd.f32 %v4730, %v4918
        %v4920 = vpop.f32.mrf.mxu0
        %v4921 = vpop.f32.mrf.mxu0
        %v4922 = vadd.f32 %v4730, %v4921
        %v4923 = vpop.f32.mrf.mxu0
        %4924 = vdwg.mxu0
        %v4925 = vmax.f32 %v4863, 0.0
        %v4926 = vmax.f32 %v4866, 0.0
        %v4927 = vmax.f32 %v4871, 0.0
        %v4928 = vmax.f32 %v4874, 0.0
        %v4929 = vmax.f32 %v4879, 0.0
        %v4930 = vmax.f32 %v4882, 0.0
        %v4931 = vmax.f32 %v4887, 0.0
        %v4932 = vmax.f32 %v4890, 0.0
        %v4933 = vmax.f32 %v4895, 0.0
        %v4934 = vmax.f32 %v4898, 0.0
        %v4935 = vmax.f32 %v4903, 0.0
        %v4936 = vmax.f32 %v4906, 0.0
        %v4937 = vmax.f32 %v4911, 0.0
        %v4938 = vmax.f32 %v4914, 0.0
        %v4939 = vmax.f32 %v4919, 0.0
        %v4940 = vmax.f32 %v4922, 0.0
        %v4941 = vpack.c.bf16 %v4926, %v4925
        %v4942 = vpack.c.bf16 %v4928, %v4927
        %v4943 = vpack.c.bf16 %v4930, %v4929
        %v4944 = vpack.c.bf16 %v4932, %v4931
        %v4945 = vpack.c.bf16 %v4934, %v4933
        %v4946 = vpack.c.bf16 %v4936, %v4935
        %v4947 = vpack.c.bf16 %v4938, %v4937
        %v4948 = vpack.c.bf16 %v4940, %v4939
        %v4949 = vld [vmem:[#allocation16] sm:$0xf]
        %v4950 = vld [vmem:[#allocation16 + $0x4] sm:$0xf]
        %v4951 = vld [vmem:[#allocation16 + $0x8] sm:$0xf]
        %v4952 = vld [vmem:[#allocation16 + $0xc] sm:$0xf]
        %v4953 = vld [vmem:[#allocation16 + $0x10] sm:$0xf]
        %v4954 = vld [vmem:[#allocation16 + $0x14] sm:$0xf]
        %v4955 = vld [vmem:[#allocation16 + $0x18] sm:$0xf]
        %v4956 = vld [vmem:[#allocation16 + $0x1c] sm:$0xf]
        %v4957 = vld [vmem:[#allocation16 + $0x20] sm:$0xf]
        %v4958 = vld [vmem:[#allocation16 + $0x24] sm:$0xf]
        %v4959 = vld [vmem:[#allocation16 + $0x28] sm:$0xf]
        %v4960 = vld [vmem:[#allocation16 + $0x2c] sm:$0xf]
        %v4961 = vld [vmem:[#allocation16 + $0x30] sm:$0xf]
        %v4962 = vld [vmem:[#allocation16 + $0x34] sm:$0xf]
        %v4963 = vld [vmem:[#allocation16 + $0x38] sm:$0xf]
        %v4964 = vld [vmem:[#allocation16 + $0x3c] sm:$0xf]
        %v4965 = vld [vmem:[#allocation16 + $0x40] sm:$0xf]
        %v4966 = vld [vmem:[#allocation16 + $0x44] sm:$0xf]
        %v4967 = vld [vmem:[#allocation16 + $0x48] sm:$0xf]
        %v4968 = vld [vmem:[#allocation16 + $0x4c] sm:$0xf]
        %v4969 = vld [vmem:[#allocation16 + $0x50] sm:$0xf]
        %v4970 = vld [vmem:[#allocation16 + $0x54] sm:$0xf]
        %v4971 = vld [vmem:[#allocation16 + $0x58] sm:$0xf]
        %v4972 = vld [vmem:[#allocation16 + $0x5c] sm:$0xf]
        %v4973 = vld [vmem:[#allocation16 + $0x60] sm:$0xf]
        %v4974 = vld [vmem:[#allocation16 + $0x64] sm:$0xf]
        %v4975 = vld [vmem:[#allocation16 + $0x68] sm:$0xf]
        %v4976 = vld [vmem:[#allocation16 + $0x6c] sm:$0xf]
        %v4977 = vld [vmem:[#allocation16 + $0x70] sm:$0xf]
        %v4978 = vld [vmem:[#allocation16 + $0x74] sm:$0xf]
        %v4979 = vld [vmem:[#allocation16 + $0x78] sm:$0xf]
        %v4980 = vld [vmem:[#allocation16 + $0x7c] sm:$0xf]
        %v4981 = vld [vmem:[%s14] sm:$0x1]
        %v4983 = vlaneseq
        %v4984 = vshrl.u32 %v4983, 7
        %v4985 = vsub.s32 0, %v4984
        %v4986 = vrot.slane %v4981, %v4985
        %v5020 = vunpack.c.l.b16 %v4949
        %v5021 = vunpack.c.l.b16 %v4950
        %v5022 = vunpack.c.l.b16 %v4951
        %v5023 = vunpack.c.l.b16 %v4952
        %v5024 = vunpack.c.l.b16 %v4953
        %v5025 = vunpack.c.l.b16 %v4954
        %v5026 = vunpack.c.l.b16 %v4955
        %v5027 = vunpack.c.l.b16 %v4956
        %v5028 = vunpack.c.l.b16 %v4957
        %v5029 = vunpack.c.l.b16 %v4958
        %v5030 = vunpack.c.l.b16 %v4959
        %v5031 = vunpack.c.l.b16 %v4960
        %v5032 = vunpack.c.l.b16 %v4961
        %v5033 = vunpack.c.l.b16 %v4962
        %v5034 = vunpack.c.l.b16 %v4963
        %v5035 = vunpack.c.l.b16 %v4964
        %v5036 = vunpack.c.l.b16 %v4965
        %v5037 = vunpack.c.l.b16 %v4966
        %v5038 = vunpack.c.l.b16 %v4967
        %v5039 = vunpack.c.l.b16 %v4968
        %v5040 = vunpack.c.l.b16 %v4969
        %v5041 = vunpack.c.l.b16 %v4970
        %v5042 = vunpack.c.l.b16 %v4971
        %v5043 = vunpack.c.l.b16 %v4972
        %v5044 = vunpack.c.l.b16 %v4973
        %v5045 = vunpack.c.l.b16 %v4974
        %v5046 = vunpack.c.l.b16 %v4975
        %v5047 = vunpack.c.l.b16 %v4976
        %v5048 = vunpack.c.l.b16 %v4977
        %v5049 = vunpack.c.l.b16 %v4978
        %v5050 = vunpack.c.l.b16 %v4979
        %v5051 = vunpack.c.l.b16 %v4980
        %v5052 = vpack.c.b16 %v5021, %v5020
        %v5053 = vpack.c.b16 %v5023, %v5022
        %v5054 = vpack.c.b16 %v5025, %v5024
        %v5055 = vpack.c.b16 %v5027, %v5026
        %v5056 = vpack.c.b16 %v5029, %v5028
        %v5057 = vpack.c.b16 %v5031, %v5030
        %v5058 = vpack.c.b16 %v5033, %v5032
        %v5059 = vpack.c.b16 %v5035, %v5034
        %v5060 = vpack.c.b16 %v5037, %v5036
        %v5061 = vpack.c.b16 %v5039, %v5038
        %v5062 = vpack.c.b16 %v5041, %v5040
        %v5063 = vpack.c.b16 %v5043, %v5042
        %v5064 = vpack.c.b16 %v5045, %v5044
        %v5065 = vpack.c.b16 %v5047, %v5046
        %v5066 = vpack.c.b16 %v5049, %v5048
        %v5067 = vpack.c.b16 %v5051, %v5050
        %5084 = vmatprep.subr.bf16.mxu0 0
        %5085 = vmatpush1.bf16.msra.mxu0 %v5059
        %5086 = vmatprep.subr.bf16.mxu0 0
        %5087 = vmatpush1.bf16.msra.mxu0 %v5058
        %5088 = vmatprep.subr.bf16.mxu0 0
        %5089 = vmatpush1.bf16.msra.mxu0 %v5057
        %5090 = vmatprep.subr.bf16.mxu0 0
        %5091 = vmatpush1.bf16.msra.mxu0 %v5056
        %5092 = vmatprep.subr.bf16.mxu0 0
        %5093 = vmatpush1.bf16.msra.mxu0 %v5055
        %5094 = vmatprep.subr.bf16.mxu0 0
        %5095 = vmatpush1.bf16.msra.mxu0 %v5054
        %5096 = vmatprep.subr.bf16.mxu0 0
        %5097 = vmatpush1.bf16.msra.mxu0 %v5053
        %5098 = vmatprep.subr.bf16.mxu0 0
        %5099 = vmatpush1.bf16.msra.mxu0 %v5052
        %5100 = vmatprep.subr.bf16.mxu0 0
        %5101 = vmatpush2.bf16.msra.mxu0 %v5067
        %5102 = vmatprep.subr.bf16.mxu0 0
        %5103 = vmatpush2.bf16.msra.mxu0 %v5066
        %5104 = vmatprep.subr.bf16.mxu0 0
        %5105 = vmatpush2.bf16.msra.mxu0 %v5065
        %5106 = vmatprep.subr.bf16.mxu0 0
        %5107 = vmatpush2.bf16.msra.mxu0 %v5064
        %5108 = vmatprep.subr.bf16.mxu0 0
        %5109 = vmatpush2.bf16.msra.mxu0 %v5063
        %5110 = vmatprep.subr.bf16.mxu0 0
        %5111 = vmatpush2.bf16.msra.mxu0 %v5062
        %5112 = vmatprep.subr.bf16.mxu0 0
        %5113 = vmatpush2.bf16.msra.mxu0 %v5061
        %5114 = vmatprep.subr.bf16.mxu0 0
        %5115 = vmatpush2.bf16.msra.mxu0 %v5060
        %5116 = vmatprep.mubr.bf16.mxu0 %v4664
        %5117 = vmatmul.mubr.bf16.gmra.mxu0 %v4663
        %v5118 = vpop.f32.mrf.mxu0
        %v5119 = vadd.f32 %v4986, %v5118
        %v5120 = vpop.f32.mrf.mxu0
        %v5121 = vpop.f32.mrf.mxu0
        %v5122 = vadd.f32 %v4986, %v5121
        %v5123 = vpop.f32.mrf.mxu0
        %5124 = vmatprep.mubr.bf16.mxu0 %v4668
        %5125 = vmatmul.mubr.bf16.gmra.mxu0 %v4667
        %v5126 = vpop.f32.mrf.mxu0
        %v5127 = vadd.f32 %v4986, %v5126
        %v5128 = vpop.f32.mrf.mxu0
        %v5129 = vpop.f32.mrf.mxu0
        %v5130 = vadd.f32 %v4986, %v5129
        %v5131 = vpop.f32.mrf.mxu0
        %5132 = vmatprep.mubr.bf16.mxu0 %v4672
        %5133 = vmatmul.mubr.bf16.gmra.mxu0 %v4671
        %v5134 = vpop.f32.mrf.mxu0
        %v5135 = vadd.f32 %v4986, %v5134
        %v5136 = vpop.f32.mrf.mxu0
        %v5137 = vpop.f32.mrf.mxu0
        %v5138 = vadd.f32 %v4986, %v5137
        %v5139 = vpop.f32.mrf.mxu0
        %5140 = vmatprep.mubr.bf16.mxu0 %v4676
        %5141 = vmatmul.mubr.bf16.gmra.mxu0 %v4675
        %v5142 = vpop.f32.mrf.mxu0
        %v5143 = vadd.f32 %v4986, %v5142
        %v5144 = vpop.f32.mrf.mxu0
        %v5145 = vpop.f32.mrf.mxu0
        %v5146 = vadd.f32 %v4986, %v5145
        %v5147 = vpop.f32.mrf.mxu0
        %5148 = vmatprep.mubr.bf16.mxu0 %v4680
        %5149 = vmatmul.mubr.bf16.gmra.mxu0 %v4679
        %v5150 = vpop.f32.mrf.mxu0
        %v5151 = vadd.f32 %v4986, %v5150
        %v5152 = vpop.f32.mrf.mxu0
        %v5153 = vpop.f32.mrf.mxu0
        %v5154 = vadd.f32 %v4986, %v5153
        %v5155 = vpop.f32.mrf.mxu0
        %5156 = vmatprep.mubr.bf16.mxu0 %v4684
        %5157 = vmatmul.mubr.bf16.gmra.mxu0 %v4683
        %v5158 = vpop.f32.mrf.mxu0
        %v5159 = vadd.f32 %v4986, %v5158
        %v5160 = vpop.f32.mrf.mxu0
        %v5161 = vpop.f32.mrf.mxu0
        %v5162 = vadd.f32 %v4986, %v5161
        %v5163 = vpop.f32.mrf.mxu0
        %5164 = vmatprep.mubr.bf16.mxu0 %v4688
        %5165 = vmatmul.mubr.bf16.gmra.mxu0 %v4687
        %v5166 = vpop.f32.mrf.mxu0
        %v5167 = vadd.f32 %v4986, %v5166
        %v5168 = vpop.f32.mrf.mxu0
        %v5169 = vpop.f32.mrf.mxu0
        %v5170 = vadd.f32 %v4986, %v5169
        %v5171 = vpop.f32.mrf.mxu0
        %5172 = vmatprep.mubr.bf16.mxu0 %v4692
        %5173 = vmatmul.mubr.bf16.gmra.mxu0 %v4691
        %v5174 = vpop.f32.mrf.mxu0
        %v5175 = vadd.f32 %v4986, %v5174
        %v5176 = vpop.f32.mrf.mxu0
        %v5177 = vpop.f32.mrf.mxu0
        %v5178 = vadd.f32 %v4986, %v5177
        %v5179 = vpop.f32.mrf.mxu0
        %5180 = vdwg.mxu0
        %v5181 = vmax.f32 %v5119, 0.0
        %v5182 = vmax.f32 %v5122, 0.0
        %v5183 = vmax.f32 %v5127, 0.0
        %v5184 = vmax.f32 %v5130, 0.0
        %v5185 = vmax.f32 %v5135, 0.0
        %v5186 = vmax.f32 %v5138, 0.0
        %v5187 = vmax.f32 %v5143, 0.0
        %v5188 = vmax.f32 %v5146, 0.0
        %v5189 = vmax.f32 %v5151, 0.0
        %v5190 = vmax.f32 %v5154, 0.0
        %v5191 = vmax.f32 %v5159, 0.0
        %v5192 = vmax.f32 %v5162, 0.0
        %v5193 = vmax.f32 %v5167, 0.0
        %v5194 = vmax.f32 %v5170, 0.0
        %v5195 = vmax.f32 %v5175, 0.0
        %v5196 = vmax.f32 %v5178, 0.0
        %v5197 = vpack.c.bf16 %v5182, %v5181
        %v5198 = vpack.c.bf16 %v5184, %v5183
        %v5199 = vpack.c.bf16 %v5186, %v5185
        %v5200 = vpack.c.bf16 %v5188, %v5187
        %v5201 = vpack.c.bf16 %v5190, %v5189
        %v5202 = vpack.c.bf16 %v5192, %v5191
        %v5203 = vpack.c.bf16 %v5194, %v5193
        %v5204 = vpack.c.bf16 %v5196, %v5195
        %v5205 = vld [vmem:[#allocation17] sm:$0xf]
        %v5206 = vld [vmem:[#allocation17 + $0x4] sm:$0xf]
        %v5207 = vld [vmem:[#allocation17 + $0x8] sm:$0xf]
        %v5208 = vld [vmem:[#allocation17 + $0xc] sm:$0xf]
        %v5209 = vld [vmem:[#allocation17 + $0x10] sm:$0xf]
        %v5210 = vld [vmem:[#allocation17 + $0x14] sm:$0xf]
        %v5211 = vld [vmem:[#allocation17 + $0x18] sm:$0xf]
        %v5212 = vld [vmem:[#allocation17 + $0x1c] sm:$0xf]
        %v5213 = vld [vmem:[#allocation17 + $0x20] sm:$0xf]
        %v5214 = vld [vmem:[#allocation17 + $0x24] sm:$0xf]
        %v5215 = vld [vmem:[#allocation17 + $0x28] sm:$0xf]
        %v5216 = vld [vmem:[#allocation17 + $0x2c] sm:$0xf]
        %v5217 = vld [vmem:[#allocation17 + $0x30] sm:$0xf]
        %v5218 = vld [vmem:[#allocation17 + $0x34] sm:$0xf]
        %v5219 = vld [vmem:[#allocation17 + $0x38] sm:$0xf]
        %v5220 = vld [vmem:[#allocation17 + $0x3c] sm:$0xf]
        %v5221 = vld [vmem:[%s16] sm:$0x1]
        %v5223 = vlaneseq
        %v5224 = vshrl.u32 %v5223, 7
        %v5225 = vsub.s32 0, %v5224
        %v5226 = vrot.slane %v5221, %v5225
        %v5244 = vunpack.c.l.b16 %v5205
        %v5245 = vunpack.c.l.b16 %v5206
        %v5246 = vunpack.c.l.b16 %v5207
        %v5247 = vunpack.c.l.b16 %v5208
        %v5248 = vunpack.c.l.b16 %v5209
        %v5249 = vunpack.c.l.b16 %v5210
        %v5250 = vunpack.c.l.b16 %v5211
        %v5251 = vunpack.c.l.b16 %v5212
        %v5252 = vunpack.c.l.b16 %v5213
        %v5253 = vunpack.c.l.b16 %v5214
        %v5254 = vunpack.c.l.b16 %v5215
        %v5255 = vunpack.c.l.b16 %v5216
        %v5256 = vunpack.c.l.b16 %v5217
        %v5257 = vunpack.c.l.b16 %v5218
        %v5258 = vunpack.c.l.b16 %v5219
        %v5259 = vunpack.c.l.b16 %v5220
        %v5260 = vpack.c.b16 %v5245, %v5244
        %v5261 = vpack.c.b16 %v5247, %v5246
        %v5262 = vpack.c.b16 %v5249, %v5248
        %v5263 = vpack.c.b16 %v5251, %v5250
        %v5264 = vpack.c.b16 %v5253, %v5252
        %v5265 = vpack.c.b16 %v5255, %v5254
        %v5266 = vpack.c.b16 %v5257, %v5256
        %v5267 = vpack.c.b16 %v5259, %v5258
        %5276 = vmatprep.subr.bf16.mxu0 0
        %5277 = vmatpush1.bf16.msra.mxu0 %v5267
        %5278 = vmatprep.subr.bf16.mxu0 0
        %5279 = vmatpush1.bf16.msra.mxu0 %v5266
        %5280 = vmatprep.subr.bf16.mxu0 0
        %5281 = vmatpush1.bf16.msra.mxu0 %v5265
        %5282 = vmatprep.subr.bf16.mxu0 0
        %5283 = vmatpush1.bf16.msra.mxu0 %v5264
        %5284 = vmatprep.subr.bf16.mxu0 0
        %5285 = vmatpush1.bf16.msra.mxu0 %v5263
        %5286 = vmatprep.subr.bf16.mxu0 0
        %5287 = vmatpush1.bf16.msra.mxu0 %v5262
        %5288 = vmatprep.subr.bf16.mxu0 0
        %5289 = vmatpush1.bf16.msra.mxu0 %v5261
        %5290 = vmatprep.subr.bf16.mxu0 0
        %5291 = vmatpush1.bf16.msra.mxu0 %v5260
        %5292 = vmatprep.subr.bf16.mxu0 0
        %5293 = vmatpush2.bf16.msra.mxu0 0
        %5294 = vmatprep.subr.bf16.mxu0 0
        %5295 = vmatpush2.bf16.msra.mxu0 0
        %5296 = vmatprep.subr.bf16.mxu0 0
        %5297 = vmatpush2.bf16.msra.mxu0 0
        %5298 = vmatprep.subr.bf16.mxu0 0
        %5299 = vmatpush2.bf16.msra.mxu0 0
        %5300 = vmatprep.subr.bf16.mxu0 0
        %5301 = vmatpush2.bf16.msra.mxu0 0
        %5302 = vmatprep.subr.bf16.mxu0 0
        %5303 = vmatpush2.bf16.msra.mxu0 0
        %5304 = vmatprep.subr.bf16.mxu0 0
        %5305 = vmatpush2.bf16.msra.mxu0 0
        %5306 = vmatprep.subr.bf16.mxu0 0
        %5307 = vmatpush2.bf16.msra.mxu0 0
        %5308 = vmatprep.mubr.bf16.mxu0 0
        %5309 = vmatmul.mubr.bf16.gmra.mxu0 %v4941
        %v5310 = vpop.f32.mrf.mxu0
        %v5311 = vadd.f32 %v5226, %v5310
        %v5312 = vpop.f32.mrf.mxu0
        %v5313 = vpop.f32.mrf.mxu0
        %v5314 = vadd.f32 %v5226, %v5313
        %v5315 = vpop.f32.mrf.mxu0
        %5316 = vmatprep.mubr.bf16.mxu0 0
        %5317 = vmatmul.mubr.bf16.gmra.mxu0 %v4942
        %v5318 = vpop.f32.mrf.mxu0
        %v5319 = vadd.f32 %v5226, %v5318
        %v5320 = vpop.f32.mrf.mxu0
        %v5321 = vpop.f32.mrf.mxu0
        %v5322 = vadd.f32 %v5226, %v5321
        %v5323 = vpop.f32.mrf.mxu0
        %5324 = vmatprep.mubr.bf16.mxu0 0
        %5325 = vmatmul.mubr.bf16.gmra.mxu0 %v4943
        %v5326 = vpop.f32.mrf.mxu0
        %v5327 = vadd.f32 %v5226, %v5326
        %v5328 = vpop.f32.mrf.mxu0
        %v5329 = vpop.f32.mrf.mxu0
        %v5330 = vadd.f32 %v5226, %v5329
        %v5331 = vpop.f32.mrf.mxu0
        %5332 = vmatprep.mubr.bf16.mxu0 0
        %5333 = vmatmul.mubr.bf16.gmra.mxu0 %v4944
        %v5334 = vpop.f32.mrf.mxu0
        %v5335 = vadd.f32 %v5226, %v5334
        %v5336 = vpop.f32.mrf.mxu0
        %v5337 = vpop.f32.mrf.mxu0
        %v5338 = vadd.f32 %v5226, %v5337
        %v5339 = vpop.f32.mrf.mxu0
        %5340 = vmatprep.mubr.bf16.mxu0 0
        %5341 = vmatmul.mubr.bf16.gmra.mxu0 %v4945
        %v5342 = vpop.f32.mrf.mxu0
        %v5343 = vadd.f32 %v5226, %v5342
        %v5344 = vpop.f32.mrf.mxu0
        %v5345 = vpop.f32.mrf.mxu0
        %v5346 = vadd.f32 %v5226, %v5345
        %v5347 = vpop.f32.mrf.mxu0
        %5348 = vmatprep.mubr.bf16.mxu0 0
        %5349 = vmatmul.mubr.bf16.gmra.mxu0 %v4946
        %v5350 = vpop.f32.mrf.mxu0
        %v5351 = vadd.f32 %v5226, %v5350
        %v5352 = vpop.f32.mrf.mxu0
        %v5353 = vpop.f32.mrf.mxu0
        %v5354 = vadd.f32 %v5226, %v5353
        %v5355 = vpop.f32.mrf.mxu0
        %5356 = vmatprep.mubr.bf16.mxu0 0
        %5357 = vmatmul.mubr.bf16.gmra.mxu0 %v4947
        %v5358 = vpop.f32.mrf.mxu0
        %v5359 = vadd.f32 %v5226, %v5358
        %v5360 = vpop.f32.mrf.mxu0
        %v5361 = vpop.f32.mrf.mxu0
        %v5362 = vadd.f32 %v5226, %v5361
        %v5363 = vpop.f32.mrf.mxu0
        %5364 = vmatprep.mubr.bf16.mxu0 0
        %5365 = vmatmul.mubr.bf16.gmra.mxu0 %v4948
        %v5366 = vpop.f32.mrf.mxu0
        %v5367 = vadd.f32 %v5226, %v5366
        %v5368 = vpop.f32.mrf.mxu0
        %v5369 = vpop.f32.mrf.mxu0
        %v5370 = vadd.f32 %v5226, %v5369
        %v5371 = vpop.f32.mrf.mxu0
        %5372 = vdwg.mxu0
        %5373 = vst [vmem:[%s764] sm:$0xff] %v5311
        %5374 = vst [vmem:[%s764 + $0x10] sm:$0xff] %v5314
        %5375 = vst [vmem:[%s764 + $0x20] sm:$0xff] %v5319
        %5376 = vst [vmem:[%s764 + $0x30] sm:$0xff] %v5322
        %5377 = vst [vmem:[%s764 + $0x40] sm:$0xff] %v5327
        %5378 = vst [vmem:[%s764 + $0x50] sm:$0xff] %v5330
        %5379 = vst [vmem:[%s764 + $0x60] sm:$0xff] %v5335
        %5380 = vst [vmem:[%s764 + $0x70] sm:$0xff] %v5338
        %5381 = vst [vmem:[%s764 + $0x80] sm:$0xff] %v5343
        %5382 = vst [vmem:[%s764 + $0x90] sm:$0xff] %v5346
        %5383 = vst [vmem:[%s764 + $0xa0] sm:$0xff] %v5351
        %5384 = vst [vmem:[%s764 + $0xb0] sm:$0xff] %v5354
        %5385 = vst [vmem:[%s764 + $0xc0] sm:$0xff] %v5359
        %5386 = vst [vmem:[%s764 + $0xd0] sm:$0xff] %v5362
        %5387 = vst [vmem:[%s764 + $0xe0] sm:$0xff] %v5367
        %5388 = vst [vmem:[%s764 + $0xf0] sm:$0xff] %v5370
        %v5389 = vld [vmem:[#allocation19] sm:$0xf]
        %v5390 = vld [vmem:[#allocation19 + $0x4] sm:$0xf]
        %v5391 = vld [vmem:[#allocation19 + $0x8] sm:$0xf]
        %v5392 = vld [vmem:[#allocation19 + $0xc] sm:$0xf]
        %v5393 = vld [vmem:[#allocation19 + $0x10] sm:$0xf]
        %v5394 = vld [vmem:[#allocation19 + $0x14] sm:$0xf]
        %v5395 = vld [vmem:[#allocation19 + $0x18] sm:$0xf]
        %v5396 = vld [vmem:[#allocation19 + $0x1c] sm:$0xf]
        %v5397 = vld [vmem:[#allocation19 + $0x20] sm:$0xf]
        %v5398 = vld [vmem:[#allocation19 + $0x24] sm:$0xf]
        %v5399 = vld [vmem:[#allocation19 + $0x28] sm:$0xf]
        %v5400 = vld [vmem:[#allocation19 + $0x2c] sm:$0xf]
        %v5401 = vld [vmem:[#allocation19 + $0x30] sm:$0xf]
        %v5402 = vld [vmem:[#allocation19 + $0x34] sm:$0xf]
        %v5403 = vld [vmem:[#allocation19 + $0x38] sm:$0xf]
        %v5404 = vld [vmem:[#allocation19 + $0x3c] sm:$0xf]
        %v5405 = vld [vmem:[%s18] sm:$0x1]
        %v5407 = vlaneseq
        %v5408 = vshrl.u32 %v5407, 7
        %v5409 = vsub.s32 0, %v5408
        %v5410 = vrot.slane %v5405, %v5409
        %v5428 = vunpack.c.l.b16 %v5389
        %v5429 = vunpack.c.l.b16 %v5390
        %v5430 = vunpack.c.l.b16 %v5391
        %v5431 = vunpack.c.l.b16 %v5392
        %v5432 = vunpack.c.l.b16 %v5393
        %v5433 = vunpack.c.l.b16 %v5394
        %v5434 = vunpack.c.l.b16 %v5395
        %v5435 = vunpack.c.l.b16 %v5396
        %v5436 = vunpack.c.l.b16 %v5397
        %v5437 = vunpack.c.l.b16 %v5398
        %v5438 = vunpack.c.l.b16 %v5399
        %v5439 = vunpack.c.l.b16 %v5400
        %v5440 = vunpack.c.l.b16 %v5401
        %v5441 = vunpack.c.l.b16 %v5402
        %v5442 = vunpack.c.l.b16 %v5403
        %v5443 = vunpack.c.l.b16 %v5404
        %v5444 = vpack.c.b16 %v5429, %v5428
        %v5445 = vpack.c.b16 %v5431, %v5430
        %v5446 = vpack.c.b16 %v5433, %v5432
        %v5447 = vpack.c.b16 %v5435, %v5434
        %v5448 = vpack.c.b16 %v5437, %v5436
        %v5449 = vpack.c.b16 %v5439, %v5438
        %v5450 = vpack.c.b16 %v5441, %v5440
        %v5451 = vpack.c.b16 %v5443, %v5442
        %5460 = vmatprep.subr.bf16.mxu0 0
        %5461 = vmatpush1.bf16.msra.mxu0 %v5451
        %5462 = vmatprep.subr.bf16.mxu0 0
        %5463 = vmatpush1.bf16.msra.mxu0 %v5450
        %5464 = vmatprep.subr.bf16.mxu0 0
        %5465 = vmatpush1.bf16.msra.mxu0 %v5449
        %5466 = vmatprep.subr.bf16.mxu0 0
        %5467 = vmatpush1.bf16.msra.mxu0 %v5448
        %5468 = vmatprep.subr.bf16.mxu0 0
        %5469 = vmatpush1.bf16.msra.mxu0 %v5447
        %5470 = vmatprep.subr.bf16.mxu0 0
        %5471 = vmatpush1.bf16.msra.mxu0 %v5446
        %5472 = vmatprep.subr.bf16.mxu0 0
        %5473 = vmatpush1.bf16.msra.mxu0 %v5445
        %5474 = vmatprep.subr.bf16.mxu0 0
        %5475 = vmatpush1.bf16.msra.mxu0 %v5444
        %5476 = vmatprep.subr.bf16.mxu0 0
        %5477 = vmatpush2.bf16.msra.mxu0 0
        %5478 = vmatprep.subr.bf16.mxu0 0
        %5479 = vmatpush2.bf16.msra.mxu0 0
        %5480 = vmatprep.subr.bf16.mxu0 0
        %5481 = vmatpush2.bf16.msra.mxu0 0
        %5482 = vmatprep.subr.bf16.mxu0 0
        %5483 = vmatpush2.bf16.msra.mxu0 0
        %5484 = vmatprep.subr.bf16.mxu0 0
        %5485 = vmatpush2.bf16.msra.mxu0 0
        %5486 = vmatprep.subr.bf16.mxu0 0
        %5487 = vmatpush2.bf16.msra.mxu0 0
        %5488 = vmatprep.subr.bf16.mxu0 0
        %5489 = vmatpush2.bf16.msra.mxu0 0
        %5490 = vmatprep.subr.bf16.mxu0 0
        %5491 = vmatpush2.bf16.msra.mxu0 0
        %5492 = vmatprep.mubr.bf16.mxu0 0
        %5493 = vmatmul.mubr.bf16.gmra.mxu0 %v5197
        %v5494 = vpop.f32.mrf.mxu0
        %v5495 = vadd.f32 %v5410, %v5494
        %v5496 = vpop.f32.mrf.mxu0
        %v5497 = vpop.f32.mrf.mxu0
        %v5498 = vadd.f32 %v5410, %v5497
        %v5499 = vpop.f32.mrf.mxu0
        %5500 = vmatprep.mubr.bf16.mxu0 0
        %5501 = vmatmul.mubr.bf16.gmra.mxu0 %v5198
        %v5502 = vpop.f32.mrf.mxu0
        %v5503 = vadd.f32 %v5410, %v5502
        %v5504 = vpop.f32.mrf.mxu0
        %v5505 = vpop.f32.mrf.mxu0
        %v5506 = vadd.f32 %v5410, %v5505
        %v5507 = vpop.f32.mrf.mxu0
        %5508 = vmatprep.mubr.bf16.mxu0 0
        %5509 = vmatmul.mubr.bf16.gmra.mxu0 %v5199
        %v5510 = vpop.f32.mrf.mxu0
        %v5511 = vadd.f32 %v5410, %v5510
        %v5512 = vpop.f32.mrf.mxu0
        %v5513 = vpop.f32.mrf.mxu0
        %v5514 = vadd.f32 %v5410, %v5513
        %v5515 = vpop.f32.mrf.mxu0
        %5516 = vmatprep.mubr.bf16.mxu0 0
        %5517 = vmatmul.mubr.bf16.gmra.mxu0 %v5200
        %v5518 = vpop.f32.mrf.mxu0
        %v5519 = vadd.f32 %v5410, %v5518
        %v5520 = vpop.f32.mrf.mxu0
        %v5521 = vpop.f32.mrf.mxu0
        %v5522 = vadd.f32 %v5410, %v5521
        %v5523 = vpop.f32.mrf.mxu0
        %5524 = vmatprep.mubr.bf16.mxu0 0
        %5525 = vmatmul.mubr.bf16.gmra.mxu0 %v5201
        %v5526 = vpop.f32.mrf.mxu0
        %v5527 = vadd.f32 %v5410, %v5526
        %v5528 = vpop.f32.mrf.mxu0
        %v5529 = vpop.f32.mrf.mxu0
        %v5530 = vadd.f32 %v5410, %v5529
        %v5531 = vpop.f32.mrf.mxu0
        %5532 = vmatprep.mubr.bf16.mxu0 0
        %5533 = vmatmul.mubr.bf16.gmra.mxu0 %v5202
        %v5534 = vpop.f32.mrf.mxu0
        %v5535 = vadd.f32 %v5410, %v5534
        %v5536 = vpop.f32.mrf.mxu0
        %v5537 = vpop.f32.mrf.mxu0
        %v5538 = vadd.f32 %v5410, %v5537
        %v5539 = vpop.f32.mrf.mxu0
        %5540 = vmatprep.mubr.bf16.mxu0 0
        %5541 = vmatmul.mubr.bf16.gmra.mxu0 %v5203
        %v5542 = vpop.f32.mrf.mxu0
        %v5543 = vadd.f32 %v5410, %v5542
        %v5544 = vpop.f32.mrf.mxu0
        %v5545 = vpop.f32.mrf.mxu0
        %v5546 = vadd.f32 %v5410, %v5545
        %v5547 = vpop.f32.mrf.mxu0
        %5548 = vmatprep.mubr.bf16.mxu0 0
        %5549 = vmatmul.mubr.bf16.gmra.mxu0 %v5204
        %v5550 = vpop.f32.mrf.mxu0
        %v5551 = vadd.f32 %v5410, %v5550
        %v5552 = vpop.f32.mrf.mxu0
        %v5553 = vpop.f32.mrf.mxu0
        %v5554 = vadd.f32 %v5410, %v5553
        %v5555 = vpop.f32.mrf.mxu0
        %5556 = vdwg.mxu0
        %5557 = vst [vmem:[%s764 + $0x8] sm:$0xff] %v5495
        %5558 = vst [vmem:[%s764 + $0x18] sm:$0xff] %v5498
        %5559 = vst [vmem:[%s764 + $0x28] sm:$0xff] %v5503
        %5560 = vst [vmem:[%s764 + $0x38] sm:$0xff] %v5506
        %5561 = vst [vmem:[%s764 + $0x48] sm:$0xff] %v5511
        %5562 = vst [vmem:[%s764 + $0x58] sm:$0xff] %v5514
        %5563 = vst [vmem:[%s764 + $0x68] sm:$0xff] %v5519
        %5564 = vst [vmem:[%s764 + $0x78] sm:$0xff] %v5522
        %5565 = vst [vmem:[%s764 + $0x88] sm:$0xff] %v5527
        %5566 = vst [vmem:[%s764 + $0x98] sm:$0xff] %v5530
        %5567 = vst [vmem:[%s764 + $0xa8] sm:$0xff] %v5535
        %5568 = vst [vmem:[%s764 + $0xb8] sm:$0xff] %v5538
        %5569 = vst [vmem:[%s764 + $0xc8] sm:$0xff] %v5543
        %5570 = vst [vmem:[%s764 + $0xd8] sm:$0xff] %v5546
        %5571 = vst [vmem:[%s764 + $0xe8] sm:$0xff] %v5551
        %5572 = vst [vmem:[%s764 + $0xf8] sm:$0xff] %v5554
        %s5573 = sand.u32 %s453, 1
        %s5574 = scalar_lea.sflag [#allocation4], %s5573
        %s5575 = sand.u32 %s453, 1
        %s5576 = smul.addr %s5575, 256
        %s5577 = scalar_lea.vmem [#allocation20], %s5576
        // Predicated region
        $region141: #{tpu_custom_call.1} parent=95 // pred_check
          %p5578 = pneg %p463
        $region142: #{tpu_custom_call.1} parent=95 // pred_check_branch
          %5580 = sbr.rel (%p5578) target = $region144
        $region143: #{tpu_custom_call.1} parent=95 // pred_region
          %s5581 = smul.u32 16, %s41
          %s5583 = ssub.s32 4096, 4096
          %5584 = vsyncadd %s5574, %s5583
          %s5585 = smul.addr %s5581, 2
          %s5586 = smul.addr %s5585, 128
          %s5587 = scalar_lea.hbm %s19, %s5586
          %s5588 = sshll.u32 %s5577, 4
          %s5589 = int_to_ptr.vmem [resolvable:$true] %s5588
          %5594 = dma.vmem_to_hbm [thread:$0]  %s5589, 4096, %s5587, %s5574, 256, 256, 16
        $region144: #{tpu_custom_call.1} parent=95 // pred_fallthru
          _
      $region96: #{tpu_custom_call.1} parent=5 // pred_fallthru
        _
      %p5595 = scmp.le.s32.totalorder 2, %s36
      // Predicated region
      $region145: #{tpu_custom_call.1} parent=5 // pred_check
        %p5596 = pneg %p5595
      $region146: #{tpu_custom_call.1} parent=5 // pred_check_branch
        %5598 = sbr.rel (%p5596) target = $region148
      $region147: #{tpu_custom_call.1} parent=5 // pred_region
        %s5599 = ssub.s32 %s36, 2
        // Predicated region
        $region149: #{tpu_custom_call.1} parent=147 // pred_check
          %p5600 = pneg %p469
        $region150: #{tpu_custom_call.1} parent=147 // pred_check_branch
          %5602 = sbr.rel (%p5600) target = $region152
        $region151: #{tpu_custom_call.1} parent=147 // pred_region
          %s5603 = sand.u32 %s454, 1
          %s5604 = scalar_lea.sflag [#allocation4], %s5603
          %s5605 = sand.u32 %s454, 1
          %s5606 = smul.addr %s5605, 256
          %s5607 = scalar_lea.vmem [#allocation20], %s5606
          %5608 = dma.done %s5604, 4096
        $region152: #{tpu_custom_call.1} parent=147 // pred_fallthru
          _
      $region148: #{tpu_custom_call.1} parent=5 // pred_fallthru
        _
    $region6: #{tpu_custom_call.1} parent=1 // loop_footer
      %s40 = sadd.s32 1, %s36
    $region7: #{tpu_custom_call.1} parent=1 // loop_footer_branch
      %35 = sbr.rel target = $region3
    $region8: #{tpu_custom_call.1} parent=1 // loop_exit
      _
    %5609 = vsyncpa [#allocation3], 1
    %s5610 = scalar_lea.sflag [#allocation3], 1
    %5611 = vsyncpa %s5610, 1
    %5612 = vsyncpa [#allocation6], 1
    %5613 = vsyncpa [#allocation9], 1
    %5614 = vsyncpa [#allocation12], 1
    %5615 = vsyncpa [#allocation15], 1
    %5616 = vsyncpa [#allocation18], 1
    %5617 = vsyncpa [#allocation4], 1
    %s5618 = scalar_lea.sflag [#allocation4], 1
    %5619 = vsyncpa %s5618, 1

</llo_original>
